<compile_context>
chip_gen: v5e
topology: v5e:2x2
jax: 0.10.0
libtpu: 0.0.40
codegen_flags: <defaults>
</compile_context>

<pallas_src>
import functools

import jax
import jax.numpy as jnp
from jax.experimental import pallas as pl
from jax.experimental.pallas import tpu as pltpu


# ---------------------------------------------------------------------------
# In-kernel helpers
# ---------------------------------------------------------------------------
def _im2col_conv(src_ref, w, scale, bias, KH, KW, H, W, Cin):
    """src_ref: (H+KH-1, W+KW-1, Cin) zero-padded VMEM ref.
       w: (KH*KW*Cin, Cout) bf16, scale/bias: (1, Cout) f32.
       Returns f32 (H*W, Cout) after folded-BN + ReLU (single wide-K matmul)."""
    patches = []
    for kh in range(KH):
        for kw in range(KW):
            p = src_ref[pl.ds(kh, H), pl.ds(kw, W), :]
            patches.append(p.reshape(H * W, Cin))
    col = jnp.concatenate(patches, axis=1)               # (H*W, KH*KW*Cin)
    y = jnp.dot(col, w, preferred_element_type=jnp.float32)
    return jnp.maximum(y * scale + bias, 0.0)


# ---------------------------------------------------------------------------
# Stage 1 kernel: fused 1x1 convs on x  +  avgpool(3x3) + pool 1x1 conv
# ---------------------------------------------------------------------------
def _stage1_kernel(x_ref, w3_ref, s3_ref, c3_ref, wp_ref, sp_ref, cp_ref,
                   o1_ref, o5_ref, od_ref, op_ref, xpad_ref,
                   *, H, W, Cin):
    x = x_ref[...]                                        # (H, W, Cin) bf16
    xf = x.reshape(H * W, Cin)

    # branch1x1(64) | branch5x5_1(48) | branch3x3dbl_1(64): one K=Cin matmul.
    y = jnp.dot(xf, w3_ref[...], preferred_element_type=jnp.float32)
    y = jnp.maximum(y * s3_ref[...] + c3_ref[...], 0.0)
    o1_ref[...] = y[:, 0:64].reshape(H, W, 64).astype(o1_ref.dtype)
    o5_ref[...] = y[:, 64:112].reshape(H, W, 48).astype(o5_ref.dtype)
    od_ref[...] = y[:, 112:176].reshape(H, W, 64).astype(od_ref.dtype)

    # avg_pool2d(3, stride=1, pad=1, count_include_pad=True) -> 1x1 conv.
    xpad_ref[...] = jnp.zeros_like(xpad_ref)
    xpad_ref[pl.ds(1, H), pl.ds(1, W), :] = x
    acc = jnp.zeros((H, W, Cin), jnp.float32)
    for kh in range(3):
        for kw in range(3):
            acc = acc + xpad_ref[pl.ds(kh, H), pl.ds(kw, W), :].astype(
                jnp.float32)
    pooled = (acc * (1.0 / 9.0)).reshape(H * W, Cin).astype(jnp.bfloat16)
    z = jnp.dot(pooled, wp_ref[...], preferred_element_type=jnp.float32)
    z = jnp.maximum(z * sp_ref[...] + cp_ref[...], 0.0)
    op_ref[...] = z.reshape(H, W, z.shape[1]).astype(op_ref.dtype)


# ---------------------------------------------------------------------------
# Stage 2 kernel: 5x5 branch, chained 3x3dbl branch, fused channel concat
# ---------------------------------------------------------------------------
def _stage2_kernel(b1_ref, b5_ref, d1_ref, bp_ref,
                   w5_ref, s5_ref, c5_ref,
                   wd2_ref, sd2_ref, cd2_ref,
                   wd3_ref, sd3_ref, cd3_ref,
                   o_ref, pad5_ref, padd2_ref, padd3_ref,
                   *, H, W):
    # branch5x5_2: 5x5 conv, pad=2, 48 -> 64  (one matmul, K = 1200).
    pad5_ref[...] = jnp.zeros_like(pad5_ref)
    pad5_ref[pl.ds(2, H), pl.ds(2, W), :] = b5_ref[...]
    y5 = _im2col_conv(pad5_ref, w5_ref[...], s5_ref[...], c5_ref[...],
                      5, 5, H, W, 48)

    # branch3x3dbl_2 -> _3 chained in VMEM (intermediate stays on chip).
    padd2_ref[...] = jnp.zeros_like(padd2_ref)
    padd2_ref[pl.ds(1, H), pl.ds(1, W), :] = d1_ref[...]
    d2 = _im2col_conv(padd2_ref, wd2_ref[...], sd2_ref[...], cd2_ref[...],
                      3, 3, H, W, 64)                     # (H*W, 96) f32
    padd3_ref[...] = jnp.zeros_like(padd3_ref)
    padd3_ref[pl.ds(1, H), pl.ds(1, W), :] = (
        d2.reshape(H, W, 96).astype(jnp.bfloat16))
    y3 = _im2col_conv(padd3_ref, wd3_ref[...], sd3_ref[...], cd3_ref[...],
                      3, 3, H, W, 96)

    # torch.cat([branch1x1, branch5x5, branch3x3dbl, branch_pool], dim=1),
    # assembled in VMEM -> one lane-dense store of the full channel block.
    out = jnp.concatenate(
        [b1_ref[...].reshape(H * W, 64).astype(jnp.float32),
         y5,
         y3,
         bp_ref[...].reshape(H * W, -1).astype(jnp.float32)],
        axis=1)
    o_ref[...] = out.reshape(H, W, out.shape[1]).astype(o_ref.dtype)


# ---------------------------------------------------------------------------
# Pallas wrappers (NHWC, bf16 activations)
# ---------------------------------------------------------------------------
def _stage1(x_nhwc, w3, s3, c3, wp, sp, cp):
    N, H, W, Cin = x_nhwc.shape
    C3 = w3.shape[1]
    Cpool = wp.shape[1]
    kernel = functools.partial(_stage1_kernel, H=H, W=W, Cin=Cin)
    out_shape = (
        jax.ShapeDtypeStruct((N, H, W, 64), jnp.bfloat16),
        jax.ShapeDtypeStruct((N, H, W, 48), jnp.bfloat16),
        jax.ShapeDtypeStruct((N, H, W, 64), jnp.bfloat16),
        jax.ShapeDtypeStruct((N, H, W, Cpool), jnp.bfloat16),
    )
    out_specs = (
        pl.BlockSpec((None, H, W, 64), lambda n: (n, 0, 0, 0)),
        pl.BlockSpec((None, H, W, 48), lambda n: (n, 0, 0, 0)),
        pl.BlockSpec((None, H, W, 64), lambda n: (n, 0, 0, 0)),
        pl.BlockSpec((None, H, W, Cpool), lambda n: (n, 0, 0, 0)),
    )
    return pl.pallas_call(
        kernel,
        out_shape=out_shape,
        grid=(N,),
        in_specs=[
            pl.BlockSpec((None, H, W, Cin), lambda n: (n, 0, 0, 0)),
            pl.BlockSpec((Cin, C3), lambda n: (0, 0)),
            pl.BlockSpec((1, C3), lambda n: (0, 0)),
            pl.BlockSpec((1, C3), lambda n: (0, 0)),
            pl.BlockSpec((Cin, Cpool), lambda n: (0, 0)),
            pl.BlockSpec((1, Cpool), lambda n: (0, 0)),
            pl.BlockSpec((1, Cpool), lambda n: (0, 0)),
        ],
        out_specs=out_specs,
        scratch_shapes=[pltpu.VMEM((H + 2, W + 2, Cin), jnp.bfloat16)],
        compiler_params=pltpu.CompilerParams(
            dimension_semantics=("parallel",)),
    )(x_nhwc, w3, s3, c3, wp, sp, cp)


def _stage2(b1, b5, d1, bp, w5, s5, c5, wd2, sd2, cd2, wd3, sd3, cd3,
            out_dtype):
    N, H, W, _ = b1.shape
    Cpool = bp.shape[-1]
    Ctot = 64 + 64 + 96 + Cpool
    kernel = functools.partial(_stage2_kernel, H=H, W=W)
    const2d = lambda arr: pl.BlockSpec(arr.shape, lambda n: (0, 0))
    return pl.pallas_call(
        kernel,
        out_shape=jax.ShapeDtypeStruct((N, H, W, Ctot), out_dtype),
        grid=(N,),
        in_specs=[
            pl.BlockSpec((None, H, W, 64), lambda n: (n, 0, 0, 0)),
            pl.BlockSpec((None, H, W, 48), lambda n: (n, 0, 0, 0)),
            pl.BlockSpec((None, H, W, 64), lambda n: (n, 0, 0, 0)),
            pl.BlockSpec((None, H, W, Cpool), lambda n: (n, 0, 0, 0)),
            const2d(w5), const2d(s5), const2d(c5),
            const2d(wd2), const2d(sd2), const2d(cd2),
            const2d(wd3), const2d(sd3), const2d(cd3),
        ],
        out_specs=pl.BlockSpec((None, H, W, Ctot), lambda n: (n, 0, 0, 0)),
        scratch_shapes=[
            pltpu.VMEM((H + 4, W + 4, 48), jnp.bfloat16),
            pltpu.VMEM((H + 2, W + 2, 64), jnp.bfloat16),
            pltpu.VMEM((H + 2, W + 2, 96), jnp.bfloat16),
        ],
        compiler_params=pltpu.CompilerParams(
            dimension_semantics=("parallel",)),
    )(b1, b5, d1, bp, w5, s5, c5, wd2, sd2, cd2, wd3, sd3, cd3)


# ---------------------------------------------------------------------------
# Parameters (synthetic, deterministic).  BN folded to scale/bias (eval mode).
# ---------------------------------------------------------------------------
def _init_basic_conv(key, cin, cout, kh, kw, eps=1e-3):
    k1, k2, k3, k4, k5 = jax.random.split(key, 5)
    w = 0.05 * jax.random.normal(k1, (kh, kw, cin, cout), jnp.float32)
    gamma = 1.0 + 0.1 * jax.random.normal(k2, (cout,), jnp.float32)
    beta = 0.1 * jax.random.normal(k3, (cout,), jnp.float32)
    run_mean = 0.1 * jax.random.normal(k4, (cout,), jnp.float32)
    run_var = 0.5 + jnp.abs(jax.random.normal(k5, (cout,), jnp.float32))
    scale = gamma / jnp.sqrt(run_var + eps)
    bias = beta - run_mean * scale
    return {"w": w, "scale": scale, "bias": bias}


def init_inception_a_params(key, in_channels, pool_features):
    ks = jax.random.split(key, 7)
    return {
        "branch1x1":      _init_basic_conv(ks[0], in_channels, 64, 1, 1),
        "branch5x5_1":    _init_basic_conv(ks[1], in_channels, 48, 1, 1),
        "branch5x5_2":    _init_basic_conv(ks[2], 48, 64, 5, 5),
        "branch3x3dbl_1": _init_basic_conv(ks[3], in_channels, 64, 1, 1),
        "branch3x3dbl_2": _init_basic_conv(ks[4], 64, 96, 3, 3),
        "branch3x3dbl_3": _init_basic_conv(ks[5], 96, 96, 3, 3),
        "branch_pool":    _init_basic_conv(ks[6], in_channels,
                                           pool_features, 1, 1),
    }


def _flatten(p):
    kh, kw, cin, cout = p["w"].shape
    return (p["w"].reshape(kh * kw * cin, cout).astype(jnp.bfloat16),
            p["scale"].reshape(1, cout).astype(jnp.float32),
            p["bias"].reshape(1, cout).astype(jnp.float32))


# ---------------------------------------------------------------------------
# InceptionA forward (NCHW in, NCHW out)
# ---------------------------------------------------------------------------
def inception_a_forward(x_nchw, params):
    x = jnp.transpose(x_nchw, (0, 2, 3, 1)).astype(jnp.bfloat16)  # NHWC bf16

    p1, p5a, pda = (params["branch1x1"], params["branch5x5_1"],
                    params["branch3x3dbl_1"])
    w3 = jnp.concatenate(
        [p1["w"].reshape(-1, 64), p5a["w"].reshape(-1, 48),
         pda["w"].reshape(-1, 64)], axis=1).astype(jnp.bfloat16)
    s3 = jnp.concatenate([p1["scale"], p5a["scale"],
                          pda["scale"]]).reshape(1, -1).astype(jnp.float32)
    c3 = jnp.concatenate([p1["bias"], p5a["bias"],
                          pda["bias"]]).reshape(1, -1).astype(jnp.float32)
    wp, sp, cp = _flatten(params["branch_pool"])

    b1o, b5o, d1o, bpo = _stage1(x, w3, s3, c3, wp, sp, cp)

    w5, s5, c5 = _flatten(params["branch5x5_2"])
    wd2, sd2, cd2 = _flatten(params["branch3x3dbl_2"])
    wd3, sd3, cd3 = _flatten(params["branch3x3dbl_3"])

    out_nhwc = _stage2(b1o, b5o, d1o, bpo, w5, s5, c5,
                       wd2, sd2, cd2, wd3, sd3, cd3, x_nchw.dtype)
    return jnp.transpose(out_nhwc, (0, 3, 1, 2))          # NHWC -> NCHW


# ---------------------------------------------------------------------------
# Pure-JAX reference (f32) for a correctness check
# ---------------------------------------------------------------------------
def reference_forward(x_nchw, params):
    x = jnp.transpose(x_nchw, (0, 2, 3, 1)).astype(jnp.float32)

    def cbr(inp, p, pad):
        y = jax.lax.conv_general_dilated(
            inp, p["w"], window_strides=(1, 1),
            padding=[(pad, pad), (pad, pad)],
            dimension_numbers=("NHWC", "HWIO", "NHWC"),
            precision=jax.lax.Precision.HIGHEST)
        return jnp.maximum(y * p["scale"] + p["bias"], 0.0)

    b1 = cbr(x, params["branch1x1"], 0)
    b5 = cbr(cbr(x, params["branch5x5_1"], 0), params["branch5x5_2"], 2)
    bd = cbr(cbr(cbr(x, params["branch3x3dbl_1"], 0),
                 params["branch3x3dbl_2"], 1), params["branch3x3dbl_3"], 1)
    pooled = jax.lax.reduce_window(
        x, 0.0, jax.lax.add, (1, 3, 3, 1), (1, 1, 1, 1),
        ((0, 0), (1, 1), (1, 1), (0, 0))) / 9.0
    bp = cbr(pooled, params["branch_pool"], 0)
    out = jnp.concatenate([b1, b5, bd, bp], axis=-1)
    return jnp.transpose(out, (0, 3, 1, 2))


if __name__ == "__main__":
    key = jax.random.PRNGKey(0)
    kx, kp = jax.random.split(key)

    N, Cin, H, W = 2, 16, 16, 16
    pool_features = 32                     # total channels = 256 (lane-dense)
    x = jax.random.normal(kx, (N, Cin, H, W), jnp.float32)
    params = init_inception_a_params(kp, Cin, pool_features)

    out = jax.block_until_ready(inception_a_forward(x, params))

    expected = (N, 64 + 64 + 96 + pool_features, H, W)
    assert out.shape == expected, (out.shape, expected)
    assert bool(jnp.all(jnp.isfinite(out)))

    ref = reference_forward(x, params)
    err = float(jnp.max(jnp.abs(out - ref)) / (jnp.max(jnp.abs(ref)) + 1e-6))
    assert err < 3e-2, f"max normalized error {err}"

    print("KERNEL_OK")
</pallas_src>

<mosaic_0001>
module attributes {stable_mosaic.version = 11 : i64} {
  func.func @_stage1_kernel(%arg0: i32, %arg1: memref<1x16x16x16xbf16, #tpu.memory_space<vmem>>, %arg2: memref<16x176xbf16, #tpu.memory_space<vmem>>, %arg3: memref<1x176xf32, #tpu.memory_space<vmem>>, %arg4: memref<1x176xf32, #tpu.memory_space<vmem>>, %arg5: memref<16x32xbf16, #tpu.memory_space<vmem>>, %arg6: memref<1x32xf32, #tpu.memory_space<vmem>>, %arg7: memref<1x32xf32, #tpu.memory_space<vmem>>, %arg8: memref<1x16x16x64xbf16, #tpu.memory_space<vmem>>, %arg9: memref<1x16x16x48xbf16, #tpu.memory_space<vmem>>, %arg10: memref<1x16x16x64xbf16, #tpu.memory_space<vmem>>, %arg11: memref<1x16x16x32xbf16, #tpu.memory_space<vmem>>, %arg12: memref<18x18x16xbf16, #tpu.memory_space<vmem>>) attributes {dimension_semantics = [#tpu.dimension_semantics<parallel>], iteration_bounds = array<i64: 2>, scalar_prefetch = 0 : i64, scratch_operands = 1 : i64, tpu.core_type = #tpu.core_type<tc>, window_params = [{transform_indices = @transform_0, window_bounds = array<i64: 1, 16, 16, 16>}, {pipeline_mode = #tpu.pipeline_mode<synchronous>, transform_indices = @transform_1, window_bounds = array<i64: 16, 176>}, {pipeline_mode = #tpu.pipeline_mode<synchronous>, transform_indices = @transform_2, window_bounds = array<i64: 1, 176>}, {pipeline_mode = #tpu.pipeline_mode<synchronous>, transform_indices = @transform_3, window_bounds = array<i64: 1, 176>}, {pipeline_mode = #tpu.pipeline_mode<synchronous>, transform_indices = @transform_4, window_bounds = array<i64: 16, 32>}, {pipeline_mode = #tpu.pipeline_mode<synchronous>, transform_indices = @transform_5, window_bounds = array<i64: 1, 32>}, {pipeline_mode = #tpu.pipeline_mode<synchronous>, transform_indices = @transform_6, window_bounds = array<i64: 1, 32>}, {transform_indices = @transform_7, window_bounds = array<i64: 1, 16, 16, 64>}, {transform_indices = @transform_8, window_bounds = array<i64: 1, 16, 16, 48>}, {transform_indices = @transform_9, window_bounds = array<i64: 1, 16, 16, 64>}, {transform_indices = @transform_10, window_bounds = array<i64: 1, 16, 16, 32>}]} {
    %c0 = arith.constant 0 : index
    %c0_0 = arith.constant 0 : index
    %c0_1 = arith.constant 0 : index
    %c0_2 = arith.constant 0 : index
    %0 = vector.load %arg1[%c0, %c0_0, %c0_1, %c0_2] : memref<1x16x16x16xbf16, #tpu.memory_space<vmem>>, vector<1x16x16x16xbf16>
    %1 = vector.shape_cast %0 : vector<1x16x16x16xbf16> to vector<16x16x16xbf16>
    %2 = vector.shape_cast %1 : vector<16x16x16xbf16> to vector<256x16xbf16>
    %c0_3 = arith.constant 0 : index
    %c0_4 = arith.constant 0 : index
    %3 = vector.load %arg2[%c0_3, %c0_4] : memref<16x176xbf16, #tpu.memory_space<vmem>>, vector<16x176xbf16>
    %cst = arith.constant dense<0.000000e+00> : vector<256x176xf32>
    %4 = tpu.matmul %2, %3, %cst {dimension_numbers = #tpu.dot_dimension_numbers<[1], [0], [0], [1], [0, 0, 1, 1], [], []>} : vector<256x16xbf16>, vector<16x176xbf16>, vector<256x176xf32> -> vector<256x176xf32>
    %c0_5 = arith.constant 0 : index
    %c0_6 = arith.constant 0 : index
    %5 = vector.load %arg3[%c0_5, %c0_6] : memref<1x176xf32, #tpu.memory_space<vmem>>, vector<1x176xf32>
    %6 = vector.broadcast %5 : vector<1x176xf32> to vector<256x176xf32>
    %7 = arith.mulf %4, %6 : vector<256x176xf32>
    %c0_7 = arith.constant 0 : index
    %c0_8 = arith.constant 0 : index
    %8 = vector.load %arg4[%c0_7, %c0_8] : memref<1x176xf32, #tpu.memory_space<vmem>>, vector<1x176xf32>
    %9 = vector.broadcast %8 : vector<1x176xf32> to vector<256x176xf32>
    %10 = arith.addf %7, %9 : vector<256x176xf32>
    %cst_9 = arith.constant 0.000000e+00 : f32
    %11 = vector.broadcast %cst_9 : f32 to vector<256x176xf32>
    %12 = arith.maximumf %10, %11 : vector<256x176xf32>
    %13 = vector.extract_strided_slice %12 {offsets = [0, 0], sizes = [256, 64], strides = [1, 1]} : vector<256x176xf32> to vector<256x64xf32>
    %14 = vector.shape_cast %13 : vector<256x64xf32> to vector<16x16x64xf32>
    %15 = arith.truncf %14 : vector<16x16x64xf32> to vector<16x16x64xbf16>
    %c0_10 = arith.constant 0 : index
    %c0_11 = arith.constant 0 : index
    %c0_12 = arith.constant 0 : index
    %c0_13 = arith.constant 0 : index
    %16 = vector.load %arg8[%c0_10, %c0_11, %c0_12, %c0_13] : memref<1x16x16x64xbf16, #tpu.memory_space<vmem>>, vector<1x16x16x64xbf16>
    %17 = vector.shape_cast %16 : vector<1x16x16x64xbf16> to vector<16x16x64xbf16>
    %18 = vector.shape_cast %15 : vector<16x16x64xbf16> to vector<1x16x16x64xbf16>
    tpu.vector_store %arg8[%c0_10, %c0_11, %c0_12, %c0_13], %18 {strides = array<i32>} : memref<1x16x16x64xbf16, #tpu.memory_space<vmem>>, vector<1x16x16x64xbf16>,
    %19 = vector.extract_strided_slice %12 {offsets = [0, 64], sizes = [256, 48], strides = [1, 1]} : vector<256x176xf32> to vector<256x48xf32>
    %20 = vector.shape_cast %19 : vector<256x48xf32> to vector<16x16x48xf32>
    %21 = arith.truncf %20 : vector<16x16x48xf32> to vector<16x16x48xbf16>
    %c0_14 = arith.constant 0 : index
    %c0_15 = arith.constant 0 : index
    %c0_16 = arith.constant 0 : index
    %c0_17 = arith.constant 0 : index
    %22 = vector.load %arg9[%c0_14, %c0_15, %c0_16, %c0_17] : memref<1x16x16x48xbf16, #tpu.memory_space<vmem>>, vector<1x16x16x48xbf16>
    %23 = vector.shape_cast %22 : vector<1x16x16x48xbf16> to vector<16x16x48xbf16>
    %24 = vector.shape_cast %21 : vector<16x16x48xbf16> to vector<1x16x16x48xbf16>
    tpu.vector_store %arg9[%c0_14, %c0_15, %c0_16, %c0_17], %24 {strides = array<i32>} : memref<1x16x16x48xbf16, #tpu.memory_space<vmem>>, vector<1x16x16x48xbf16>,
    %25 = vector.extract_strided_slice %12 {offsets = [0, 112], sizes = [256, 64], strides = [1, 1]} : vector<256x176xf32> to vector<256x64xf32>
    %26 = vector.shape_cast %25 : vector<256x64xf32> to vector<16x16x64xf32>
    %27 = arith.truncf %26 : vector<16x16x64xf32> to vector<16x16x64xbf16>
    %c0_18 = arith.constant 0 : index
    %c0_19 = arith.constant 0 : index
    %c0_20 = arith.constant 0 : index
    %c0_21 = arith.constant 0 : index
    %28 = vector.load %arg10[%c0_18, %c0_19, %c0_20, %c0_21] : memref<1x16x16x64xbf16, #tpu.memory_space<vmem>>, vector<1x16x16x64xbf16>
    %29 = vector.shape_cast %28 : vector<1x16x16x64xbf16> to vector<16x16x64xbf16>
    %30 = vector.shape_cast %27 : vector<16x16x64xbf16> to vector<1x16x16x64xbf16>
    tpu.vector_store %arg10[%c0_18, %c0_19, %c0_20, %c0_21], %30 {strides = array<i32>} : memref<1x16x16x64xbf16, #tpu.memory_space<vmem>>, vector<1x16x16x64xbf16>,
    %cst_22 = arith.constant 0.000000e+00 : bf16
    %31 = vector.broadcast %cst_22 : bf16 to vector<18x18x16xbf16>
    %c0_23 = arith.constant 0 : index
    %c0_24 = arith.constant 0 : index
    %c0_25 = arith.constant 0 : index
    %32 = vector.load %arg12[%c0_23, %c0_24, %c0_25] : memref<18x18x16xbf16, #tpu.memory_space<vmem>>, vector<18x18x16xbf16>
    tpu.vector_store %arg12[%c0_23, %c0_24, %c0_25], %31 {strides = array<i32>} : memref<18x18x16xbf16, #tpu.memory_space<vmem>>, vector<18x18x16xbf16>,
    %c1 = arith.constant 1 : index
    %c1_26 = arith.constant 1 : index
    %c0_27 = arith.constant 0 : index
    %33 = vector.load %arg12[%c1, %c1_26, %c0_27] : memref<18x18x16xbf16, #tpu.memory_space<vmem>>, vector<16x16x16xbf16>
    tpu.vector_store %arg12[%c1, %c1_26, %c0_27], %1 {strides = array<i32>} : memref<18x18x16xbf16, #tpu.memory_space<vmem>>, vector<16x16x16xbf16>,
    %cst_28 = arith.constant 0.000000e+00 : f32
    %34 = vector.broadcast %cst_28 : f32 to vector<16x16x16xf32>
    %c0_29 = arith.constant 0 : index
    %c0_30 = arith.constant 0 : index
    %c0_31 = arith.constant 0 : index
    %35 = vector.load %arg12[%c0_29, %c0_30, %c0_31] : memref<18x18x16xbf16, #tpu.memory_space<vmem>>, vector<16x16x16xbf16>
    %36 = arith.extf %35 : vector<16x16x16xbf16> to vector<16x16x16xf32>
    %37 = arith.addf %34, %36 : vector<16x16x16xf32>
    %c0_32 = arith.constant 0 : index
    %c1_33 = arith.constant 1 : index
    %c0_34 = arith.constant 0 : index
    %38 = vector.load %arg12[%c0_32, %c1_33, %c0_34] : memref<18x18x16xbf16, #tpu.memory_space<vmem>>, vector<16x16x16xbf16>
    %39 = arith.extf %38 : vector<16x16x16xbf16> to vector<16x16x16xf32>
    %40 = arith.addf %37, %39 : vector<16x16x16xf32>
    %c0_35 = arith.constant 0 : index
    %c2 = arith.constant 2 : index
    %c0_36 = arith.constant 0 : index
    %41 = vector.load %arg12[%c0_35, %c2, %c0_36] : memref<18x18x16xbf16, #tpu.memory_space<vmem>>, vector<16x16x16xbf16>
    %42 = arith.extf %41 : vector<16x16x16xbf16> to vector<16x16x16xf32>
    %43 = arith.addf %40, %42 : vector<16x16x16xf32>
    %c1_37 = arith.constant 1 : index
    %c0_38 = arith.constant 0 : index
    %c0_39 = arith.constant 0 : index
    %44 = vector.load %arg12[%c1_37, %c0_38, %c0_39] : memref<18x18x16xbf16, #tpu.memory_space<vmem>>, vector<16x16x16xbf16>
    %45 = arith.extf %44 : vector<16x16x16xbf16> to vector<16x16x16xf32>
    %46 = arith.addf %43, %45 : vector<16x16x16xf32>
    %c1_40 = arith.constant 1 : index
    %c1_41 = arith.constant 1 : index
    %c0_42 = arith.constant 0 : index
    %47 = vector.load %arg12[%c1_40, %c1_41, %c0_42] : memref<18x18x16xbf16, #tpu.memory_space<vmem>>, vector<16x16x16xbf16>
    %48 = arith.extf %47 : vector<16x16x16xbf16> to vector<16x16x16xf32>
    %49 = arith.addf %46, %48 : vector<16x16x16xf32>
    %c1_43 = arith.constant 1 : index
    %c2_44 = arith.constant 2 : index
    %c0_45 = arith.constant 0 : index
    %50 = vector.load %arg12[%c1_43, %c2_44, %c0_45] : memref<18x18x16xbf16, #tpu.memory_space<vmem>>, vector<16x16x16xbf16>
    %51 = arith.extf %50 : vector<16x16x16xbf16> to vector<16x16x16xf32>
    %52 = arith.addf %49, %51 : vector<16x16x16xf32>
    %c2_46 = arith.constant 2 : index
    %c0_47 = arith.constant 0 : index
    %c0_48 = arith.constant 0 : index
    %53 = vector.load %arg12[%c2_46, %c0_47, %c0_48] : memref<18x18x16xbf16, #tpu.memory_space<vmem>>, vector<16x16x16xbf16>
    %54 = arith.extf %53 : vector<16x16x16xbf16> to vector<16x16x16xf32>
    %55 = arith.addf %52, %54 : vector<16x16x16xf32>
    %c2_49 = arith.constant 2 : index
    %c1_50 = arith.constant 1 : index
    %c0_51 = arith.constant 0 : index
    %56 = vector.load %arg12[%c2_49, %c1_50, %c0_51] : memref<18x18x16xbf16, #tpu.memory_space<vmem>>, vector<16x16x16xbf16>
    %57 = arith.extf %56 : vector<16x16x16xbf16> to vector<16x16x16xf32>
    %58 = arith.addf %55, %57 : vector<16x16x16xf32>
    %c2_52 = arith.constant 2 : index
    %c2_53 = arith.constant 2 : index
    %c0_54 = arith.constant 0 : index
    %59 = vector.load %arg12[%c2_52, %c2_53, %c0_54] : memref<18x18x16xbf16, #tpu.memory_space<vmem>>, vector<16x16x16xbf16>
    %60 = arith.extf %59 : vector<16x16x16xbf16> to vector<16x16x16xf32>
    %61 = arith.addf %58, %60 : vector<16x16x16xf32>
    %cst_55 = arith.constant 0.111111112 : f32
    %62 = vector.broadcast %cst_55 : f32 to vector<16x16x16xf32>
    %63 = arith.mulf %61, %62 : vector<16x16x16xf32>
    %64 = vector.shape_cast %63 : vector<16x16x16xf32> to vector<256x16xf32>
    %65 = arith.truncf %64 : vector<256x16xf32> to vector<256x16xbf16>
    %c0_56 = arith.constant 0 : index
    %c0_57 = arith.constant 0 : index
    %66 = vector.load %arg5[%c0_56, %c0_57] : memref<16x32xbf16, #tpu.memory_space<vmem>>, vector<16x32xbf16>
    %cst_58 = arith.constant dense<0.000000e+00> : vector<256x32xf32>
    %67 = tpu.matmul %65, %66, %cst_58 {dimension_numbers = #tpu.dot_dimension_numbers<[1], [0], [0], [1], [0, 0, 1, 1], [], []>} : vector<256x16xbf16>, vector<16x32xbf16>, vector<256x32xf32> -> vector<256x32xf32>
    %c0_59 = arith.constant 0 : index
    %c0_60 = arith.constant 0 : index
    %68 = vector.load %arg6[%c0_59, %c0_60] : memref<1x32xf32, #tpu.memory_space<vmem>>, vector<1x32xf32>
    %69 = vector.broadcast %68 : vector<1x32xf32> to vector<256x32xf32>
    %70 = arith.mulf %67, %69 : vector<256x32xf32>
    %c0_61 = arith.constant 0 : index
    %c0_62 = arith.constant 0 : index
    %71 = vector.load %arg7[%c0_61, %c0_62] : memref<1x32xf32, #tpu.memory_space<vmem>>, vector<1x32xf32>
    %72 = vector.broadcast %71 : vector<1x32xf32> to vector<256x32xf32>
    %73 = arith.addf %70, %72 : vector<256x32xf32>
    %cst_63 = arith.constant 0.000000e+00 : f32
    %74 = vector.broadcast %cst_63 : f32 to vector<256x32xf32>
    %75 = arith.maximumf %73, %74 : vector<256x32xf32>
    %76 = vector.shape_cast %75 : vector<256x32xf32> to vector<16x16x32xf32>
    %77 = arith.truncf %76 : vector<16x16x32xf32> to vector<16x16x32xbf16>
    %c0_64 = arith.constant 0 : index
    %c0_65 = arith.constant 0 : index
    %c0_66 = arith.constant 0 : index
    %c0_67 = arith.constant 0 : index
    %78 = vector.load %arg11[%c0_64, %c0_65, %c0_66, %c0_67] : memref<1x16x16x32xbf16, #tpu.memory_space<vmem>>, vector<1x16x16x32xbf16>
    %79 = vector.shape_cast %78 : vector<1x16x16x32xbf16> to vector<16x16x32xbf16>
    %80 = vector.shape_cast %77 : vector<16x16x32xbf16> to vector<1x16x16x32xbf16>
    tpu.vector_store %arg11[%c0_64, %c0_65, %c0_66, %c0_67], %80 {strides = array<i32>} : memref<1x16x16x32xbf16, #tpu.memory_space<vmem>>, vector<1x16x16x32xbf16>,
    return
  }
  func.func @transform_0(%arg0: i32) -> (i32, i32, i32, i32) {
    %c0_i32 = arith.constant 0 : i32
    %c0_i32_0 = arith.constant 0 : i32
    %c0_i32_1 = arith.constant 0 : i32
    %c0_i32_2 = arith.constant 0 : i32
    return %arg0, %c0_i32, %c0_i32_0, %c0_i32_1 : i32, i32, i32, i32
  }
  func.func @transform_1(%arg0: i32) -> (i32, i32) {
    %c0_i32 = arith.constant 0 : i32
    %c0_i32_0 = arith.constant 0 : i32
    %c0_i32_1 = arith.constant 0 : i32
    return %c0_i32, %c0_i32_0 : i32, i32
  }
  func.func @transform_2(%arg0: i32) -> (i32, i32) {
    %c0_i32 = arith.constant 0 : i32
    %c0_i32_0 = arith.constant 0 : i32
    %c0_i32_1 = arith.constant 0 : i32
    return %c0_i32, %c0_i32_0 : i32, i32
  }
  func.func @transform_3(%arg0: i32) -> (i32, i32) {
    %c0_i32 = arith.constant 0 : i32
    %c0_i32_0 = arith.constant 0 : i32
    %c0_i32_1 = arith.constant 0 : i32
    return %c0_i32, %c0_i32_0 : i32, i32
  }
  func.func @transform_4(%arg0: i32) -> (i32, i32) {
    %c0_i32 = arith.constant 0 : i32
    %c0_i32_0 = arith.constant 0 : i32
    %c0_i32_1 = arith.constant 0 : i32
    return %c0_i32, %c0_i32_0 : i32, i32
  }
  func.func @transform_5(%arg0: i32) -> (i32, i32) {
    %c0_i32 = arith.constant 0 : i32
    %c0_i32_0 = arith.constant 0 : i32
    %c0_i32_1 = arith.constant 0 : i32
    return %c0_i32, %c0_i32_0 : i32, i32
  }
  func.func @transform_6(%arg0: i32) -> (i32, i32) {
    %c0_i32 = arith.constant 0 : i32
    %c0_i32_0 = arith.constant 0 : i32
    %c0_i32_1 = arith.constant 0 : i32
    return %c0_i32, %c0_i32_0 : i32, i32
  }
  func.func @transform_7(%arg0: i32) -> (i32, i32, i32, i32) {
    %c0_i32 = arith.constant 0 : i32
    %c0_i32_0 = arith.constant 0 : i32
    %c0_i32_1 = arith.constant 0 : i32
    %c0_i32_2 = arith.constant 0 : i32
    return %arg0, %c0_i32, %c0_i32_0, %c0_i32_1 : i32, i32, i32, i32
  }
  func.func @transform_8(%arg0: i32) -> (i32, i32, i32, i32) {
    %c0_i32 = arith.constant 0 : i32
    %c0_i32_0 = arith.constant 0 : i32
    %c0_i32_1 = arith.constant 0 : i32
    %c0_i32_2 = arith.constant 0 : i32
    return %arg0, %c0_i32, %c0_i32_0, %c0_i32_1 : i32, i32, i32, i32
  }
  func.func @transform_9(%arg0: i32) -> (i32, i32, i32, i32) {
    %c0_i32 = arith.constant 0 : i32
    %c0_i32_0 = arith.constant 0 : i32
    %c0_i32_1 = arith.constant 0 : i32
    %c0_i32_2 = arith.constant 0 : i32
    return %arg0, %c0_i32, %c0_i32_0, %c0_i32_1 : i32, i32, i32, i32
  }
  func.func @transform_10(%arg0: i32) -> (i32, i32, i32, i32) {
    %c0_i32 = arith.constant 0 : i32
    %c0_i32_0 = arith.constant 0 : i32
    %c0_i32_1 = arith.constant 0 : i32
    %c0_i32_2 = arith.constant 0 : i32
    return %arg0, %c0_i32, %c0_i32_0, %c0_i32_1 : i32, i32, i32, i32
  }
}

</mosaic_0001>

<llo_original>
// kernel: tpu_custom_call.1
$region0: #{tpu_custom_call.1}
  #allocation0 [shape = 'u32[]', space=smem, size = 0x4, offset = 0x4, fixed_abs, tag = 'smem constant byte address 0x4 - core index']
  #allocation1 [shape = 'u32[72,128]{1,0:T(1,128)}', space=vmem, size = 0x9000, scoped, tag = 'internal scratch']
  #allocation2 [shape = 'bf16[18,18,16]{2,1,0:T(8,128)(2,1)}', space=vmem, size = 0x1b000, scoped, tag = 'scratch operand']
  %s0 = inlined_call_operand.hbm [shape: bf16[2,16,16,16], index: 0, kind: input, shape index: {}]
  %s1 = inlined_call_operand.hbm [shape: bf16[16,176], index: 1, kind: input, shape index: {}]
  %s2 = inlined_call_operand.hbm [shape: f32[1,176], index: 2, kind: input, shape index: {}]
  %s3 = inlined_call_operand.vmem [shape: f32[1,176], index: 3, kind: input, shape index: {}]
  %s4 = inlined_call_operand.hbm [shape: bf16[16,32], index: 4, kind: input, shape index: {}]
  %s5 = inlined_call_operand.vmem [shape: f32[1,32], index: 5, kind: input, shape index: {}]
  %s6 = inlined_call_operand.vmem [shape: f32[1,32], index: 6, kind: input, shape index: {}]
  %s7 = inlined_call_operand.hbm [shape: bf16[2,16,16,64], index: 7, kind: output, shape index: {0}]
  %s8 = inlined_call_operand.hbm [shape: bf16[2,16,16,48], index: 8, kind: output, shape index: {1}]
  %s9 = inlined_call_operand.hbm [shape: bf16[2,16,16,64], index: 9, kind: output, shape index: {2}]
  %s10 = inlined_call_operand.hbm [shape: bf16[2,16,16,32], index: 10, kind: output, shape index: {3}]
  %11 = xla_tuple %s7, %s8, %s9, %s10
  %s12 = sld [smem:[#allocation0]]
  $region101: #{tpu_custom_call.1} parent=0
    _
  %s14 = ssub.s32 1, %s12
  %s15 = scalar_select 0, %s14, %s12
  $region1: #{tpu_custom_call.1} parent=0
    #allocation3 [shape = 'u8[131072]{0}', space=vmem, size = 0x20000, scoped, tag = 'input window, operand 0']
    #allocation4 [shape = 's32[2]{0}', space=sflag, size = 0x8, scoped, tag = 'scoped memory for tpu_custom_call.1']
    #allocation5 [shape = 's32[2]{0}', space=sflag, size = 0x8, scoped, tag = 'scoped memory for tpu_custom_call.1']
    #allocation6 [shape = 'u8[8192]{0}', space=vmem, size = 0x2000, scoped, tag = 'input window, operand 1, single buffered']
    #allocation7 [shape = 's32[1]{0}', space=sflag, size = 0x4, scoped, tag = 'scoped memory for tpu_custom_call.1']
    #allocation8 [shape = 'u8[1024]{0}', space=vmem, size = 0x400, scoped, tag = 'input window, operand 2, single buffered']
    #allocation9 [shape = 'u8[4096]{0}', space=vmem, size = 0x1000, scoped, tag = 'input window, operand 4, single buffered']
    #allocation10 [shape = 's32[1]{0}', space=sflag, size = 0x4, scoped, tag = 'scoped memory for tpu_custom_call.1']
    #allocation11 [shape = 'u8[131072]{0}', space=vmem, size = 0x20000, scoped, tag = 'output window, operand 0']
    #allocation12 [shape = 'u8[131072]{0}', space=vmem, size = 0x20000, scoped, tag = 'output window, operand 1']
    #allocation13 [shape = 's32[2]{0}', space=sflag, size = 0x8, scoped, tag = 'scoped memory for tpu_custom_call.1']
    #allocation14 [shape = 'u8[131072]{0}', space=vmem, size = 0x20000, scoped, tag = 'output window, operand 2']
    #allocation15 [shape = 'u8[131072]{0}', space=vmem, size = 0x20000, scoped, tag = 'output window, operand 3']
    #allocation16 [shape = 's32[2]{0}', space=sflag, size = 0x8, scoped, tag = 'scoped memory for tpu_custom_call.1']
    %16 = vsyncpa [#allocation4], 0
    %s17 = scalar_lea.sflag [#allocation4], 1
    %18 = vsyncpa %s17, 0
    %19 = vsyncpa [#allocation7], 0
    %20 = vsyncpa [#allocation10], 0
    %21 = vsyncpa [#allocation5], 0
    %s22 = scalar_lea.sflag [#allocation5], 1
    %23 = vsyncpa %s22, 0
    %24 = vsyncpa [#allocation13], 0
    %s25 = scalar_lea.sflag [#allocation13], 1
    %26 = vsyncpa %s25, 0
    %27 = vsyncpa [#allocation16], 0
    %s28 = scalar_lea.sflag [#allocation16], 1
    %29 = vsyncpa %s28, 0
    loop: start=0, step=1, limit=4
    $region2: #{tpu_custom_call.1} parent=1 // loop_pre_header
      _
    $region3: #{tpu_custom_call.1} parent=1 // loop_header
      %s31 = sphi 0, %s35
      %p32 = scmp.ge.s32.totalorder %s31, 4
      %s41 = sphi 0, %s43
      %s44 = sphi 0, %s41
      %s45 = sphi 0, %s44
      %s61 = sphi 0, %s45
      %s65 = sphi 0, %s65
      %s67 = sphi 0, %s65
      %s68 = sphi 0, %s67
      %s82 = sphi 0, %s68
      %s86 = sphi 0, %s86
      %s88 = sphi 0, %s86
      %s89 = sphi 0, %s88
      %s103 = sphi 0, %s89
      %s107 = sphi 0, %s107
      %s109 = sphi 0, %s107
      %s110 = sphi 0, %s109
      %s124 = sphi 0, %s110
      %s128 = sphi 0, %s128
      %s130 = sphi 0, %s128
      %s131 = sphi 0, %s130
      %s145 = sphi 0, %s131
      %s149 = sphi 0, %s149
      %s151 = sphi 0, %s149
      %s152 = sphi 0, %s151
      %s166 = sphi 0, %s152
      %s170 = sphi 0, %s170
      %s172 = sphi 0, %s170
      %s173 = sphi 0, %s172
      %s187 = sphi 0, %s173
      %s193 = sphi 0, %s195
      %s196 = sphi 0, %s193
      %s197 = sphi 0, %s196
      %s213 = sphi 0, %s197
      %s219 = sphi 0, %s221
      %s222 = sphi 0, %s219
      %s223 = sphi 0, %s222
      %s239 = sphi 0, %s223
      %s245 = sphi 0, %s247
      %s248 = sphi 0, %s245
      %s249 = sphi 0, %s248
      %s265 = sphi 0, %s249
      %s271 = sphi 0, %s273
      %s274 = sphi 0, %s271
      %s275 = sphi 0, %s274
      %s291 = sphi 0, %s275
    $region4: #{tpu_custom_call.1} parent=1 // loop_header_branch
      %34 = sbr.rel (%p32) target = $region8
    $region5: #{tpu_custom_call.1} parent=1 // loop_body
      %s36 = ssub.s32 %s31, 1
      %s37 = ssub.s32 %s31, 2
      %s38 = sadd.s32 %s31, 1
      %s39 = ssub.s32 %s31, %s38
      %p40 = scmp.eq.s32.totalorder %s39, 0
      %s42 = sadd.s32 %s41, 1
      %s43 = scalar_select %p40, %s41, %s42
      %p46 = pneg %p40
      %p47 = scmp.eq.s32.totalorder %s31, 1
      %p48 = por %p46, %p47
      %p49 = scmp.ne.s32.totalorder %s41, %s44
      %p50 = scmp.eq.s32.totalorder %s31, 0
      %p51 = por %p49, %p50
      %p52 = scmp.ne.s32.totalorder %s41, %s44
      %p53 = scmp.eq.s32.totalorder %s36, 1
      %p54 = por %p52, %p53
      %p55 = scmp.ne.s32.totalorder %s44, %s45
      %p56 = scmp.eq.s32.totalorder %s36, 0
      %p57 = por %p55, %p56
      %p58 = scmp.ne.s32.totalorder %s44, %s45
      %p59 = scmp.eq.s32.totalorder %s37, 1
      %p60 = por %p58, %p59
      %p62 = scmp.ne.s32.totalorder %s45, %s61
      %p63 = scmp.eq.s32.totalorder %s37, 0
      %p64 = por %p62, %p63
      %s66 = sadd.s32 %s65, 1
      %p69 = scmp.eq.s32.totalorder %s31, 1
      %p70 = scmp.ne.s32.totalorder %s65, %s67
      %p71 = scmp.eq.s32.totalorder %s31, 0
      %p72 = por %p70, %p71
      %p73 = scmp.ne.s32.totalorder %s65, %s67
      %p74 = scmp.eq.s32.totalorder %s36, 1
      %p75 = por %p73, %p74
      %p76 = scmp.ne.s32.totalorder %s67, %s68
      %p77 = scmp.eq.s32.totalorder %s36, 0
      %p78 = por %p76, %p77
      %p79 = scmp.ne.s32.totalorder %s67, %s68
      %p80 = scmp.eq.s32.totalorder %s37, 1
      %p81 = por %p79, %p80
      %p83 = scmp.ne.s32.totalorder %s68, %s82
      %p84 = scmp.eq.s32.totalorder %s37, 0
      %p85 = por %p83, %p84
      %s87 = sadd.s32 %s86, 1
      %p90 = scmp.eq.s32.totalorder %s31, 1
      %p91 = scmp.ne.s32.totalorder %s86, %s88
      %p92 = scmp.eq.s32.totalorder %s31, 0
      %p93 = por %p91, %p92
      %p94 = scmp.ne.s32.totalorder %s86, %s88
      %p95 = scmp.eq.s32.totalorder %s36, 1
      %p96 = por %p94, %p95
      %p97 = scmp.ne.s32.totalorder %s88, %s89
      %p98 = scmp.eq.s32.totalorder %s36, 0
      %p99 = por %p97, %p98
      %p100 = scmp.ne.s32.totalorder %s88, %s89
      %p101 = scmp.eq.s32.totalorder %s37, 1
      %p102 = por %p100, %p101
      %p104 = scmp.ne.s32.totalorder %s89, %s103
      %p105 = scmp.eq.s32.totalorder %s37, 0
      %p106 = por %p104, %p105
      %s108 = sadd.s32 %s107, 1
      %p111 = scmp.eq.s32.totalorder %s31, 1
      %p112 = scmp.ne.s32.totalorder %s107, %s109
      %p113 = scmp.eq.s32.totalorder %s31, 0
      %p114 = por %p112, %p113
      %p115 = scmp.ne.s32.totalorder %s107, %s109
      %p116 = scmp.eq.s32.totalorder %s36, 1
      %p117 = por %p115, %p116
      %p118 = scmp.ne.s32.totalorder %s109, %s110
      %p119 = scmp.eq.s32.totalorder %s36, 0
      %p120 = por %p118, %p119
      %p121 = scmp.ne.s32.totalorder %s109, %s110
      %p122 = scmp.eq.s32.totalorder %s37, 1
      %p123 = por %p121, %p122
      %p125 = scmp.ne.s32.totalorder %s110, %s124
      %p126 = scmp.eq.s32.totalorder %s37, 0
      %p127 = por %p125, %p126
      %s129 = sadd.s32 %s128, 1
      %p132 = scmp.eq.s32.totalorder %s31, 1
      %p133 = scmp.ne.s32.totalorder %s128, %s130
      %p134 = scmp.eq.s32.totalorder %s31, 0
      %p135 = por %p133, %p134
      %p136 = scmp.ne.s32.totalorder %s128, %s130
      %p137 = scmp.eq.s32.totalorder %s36, 1
      %p138 = por %p136, %p137
      %p139 = scmp.ne.s32.totalorder %s130, %s131
      %p140 = scmp.eq.s32.totalorder %s36, 0
      %p141 = por %p139, %p140
      %p142 = scmp.ne.s32.totalorder %s130, %s131
      %p143 = scmp.eq.s32.totalorder %s37, 1
      %p144 = por %p142, %p143
      %p146 = scmp.ne.s32.totalorder %s131, %s145
      %p147 = scmp.eq.s32.totalorder %s37, 0
      %p148 = por %p146, %p147
      %s150 = sadd.s32 %s149, 1
      %p153 = scmp.eq.s32.totalorder %s31, 1
      %p154 = scmp.ne.s32.totalorder %s149, %s151
      %p155 = scmp.eq.s32.totalorder %s31, 0
      %p156 = por %p154, %p155
      %p157 = scmp.ne.s32.totalorder %s149, %s151
      %p158 = scmp.eq.s32.totalorder %s36, 1
      %p159 = por %p157, %p158
      %p160 = scmp.ne.s32.totalorder %s151, %s152
      %p161 = scmp.eq.s32.totalorder %s36, 0
      %p162 = por %p160, %p161
      %p163 = scmp.ne.s32.totalorder %s151, %s152
      %p164 = scmp.eq.s32.totalorder %s37, 1
      %p165 = por %p163, %p164
      %p167 = scmp.ne.s32.totalorder %s152, %s166
      %p168 = scmp.eq.s32.totalorder %s37, 0
      %p169 = por %p167, %p168
      %s171 = sadd.s32 %s170, 1
      %p174 = scmp.eq.s32.totalorder %s31, 1
      %p175 = scmp.ne.s32.totalorder %s170, %s172
      %p176 = scmp.eq.s32.totalorder %s31, 0
      %p177 = por %p175, %p176
      %p178 = scmp.ne.s32.totalorder %s170, %s172
      %p179 = scmp.eq.s32.totalorder %s36, 1
      %p180 = por %p178, %p179
      %p181 = scmp.ne.s32.totalorder %s172, %s173
      %p182 = scmp.eq.s32.totalorder %s36, 0
      %p183 = por %p181, %p182
      %p184 = scmp.ne.s32.totalorder %s172, %s173
      %p185 = scmp.eq.s32.totalorder %s37, 1
      %p186 = por %p184, %p185
      %p188 = scmp.ne.s32.totalorder %s173, %s187
      %p189 = scmp.eq.s32.totalorder %s37, 0
      %p190 = por %p188, %p189
      %s191 = ssub.s32 %s31, %s38
      %p192 = scmp.eq.s32.totalorder %s191, 0
      %s194 = sadd.s32 %s193, 1
      %s195 = scalar_select %p192, %s193, %s194
      %p198 = pneg %p192
      %p199 = scmp.eq.s32.totalorder %s31, 1
      %p200 = por %p198, %p199
      %p201 = scmp.ne.s32.totalorder %s193, %s196
      %p202 = scmp.eq.s32.totalorder %s31, 0
      %p203 = por %p201, %p202
      %p204 = scmp.ne.s32.totalorder %s193, %s196
      %p205 = scmp.eq.s32.totalorder %s36, 1
      %p206 = por %p204, %p205
      %p207 = scmp.ne.s32.totalorder %s196, %s197
      %p208 = scmp.eq.s32.totalorder %s36, 0
      %p209 = por %p207, %p208
      %p210 = scmp.ne.s32.totalorder %s196, %s197
      %p211 = scmp.eq.s32.totalorder %s37, 1
      %p212 = por %p210, %p211
      %p214 = scmp.ne.s32.totalorder %s197, %s213
      %p215 = scmp.eq.s32.totalorder %s37, 0
      %p216 = por %p214, %p215
      %s217 = ssub.s32 %s31, %s38
      %p218 = scmp.eq.s32.totalorder %s217, 0
      %s220 = sadd.s32 %s219, 1
      %s221 = scalar_select %p218, %s219, %s220
      %p224 = pneg %p218
      %p225 = scmp.eq.s32.totalorder %s31, 1
      %p226 = por %p224, %p225
      %p227 = scmp.ne.s32.totalorder %s219, %s222
      %p228 = scmp.eq.s32.totalorder %s31, 0
      %p229 = por %p227, %p228
      %p230 = scmp.ne.s32.totalorder %s219, %s222
      %p231 = scmp.eq.s32.totalorder %s36, 1
      %p232 = por %p230, %p231
      %p233 = scmp.ne.s32.totalorder %s222, %s223
      %p234 = scmp.eq.s32.totalorder %s36, 0
      %p235 = por %p233, %p234
      %p236 = scmp.ne.s32.totalorder %s222, %s223
      %p237 = scmp.eq.s32.totalorder %s37, 1
      %p238 = por %p236, %p237
      %p240 = scmp.ne.s32.totalorder %s223, %s239
      %p241 = scmp.eq.s32.totalorder %s37, 0
      %p242 = por %p240, %p241
      %s243 = ssub.s32 %s31, %s38
      %p244 = scmp.eq.s32.totalorder %s243, 0
      %s246 = sadd.s32 %s245, 1
      %s247 = scalar_select %p244, %s245, %s246
      %p250 = pneg %p244
      %p251 = scmp.eq.s32.totalorder %s31, 1
      %p252 = por %p250, %p251
      %p253 = scmp.ne.s32.totalorder %s245, %s248
      %p254 = scmp.eq.s32.totalorder %s31, 0
      %p255 = por %p253, %p254
      %p256 = scmp.ne.s32.totalorder %s245, %s248
      %p257 = scmp.eq.s32.totalorder %s36, 1
      %p258 = por %p256, %p257
      %p259 = scmp.ne.s32.totalorder %s248, %s249
      %p260 = scmp.eq.s32.totalorder %s36, 0
      %p261 = por %p259, %p260
      %p262 = scmp.ne.s32.totalorder %s248, %s249
      %p263 = scmp.eq.s32.totalorder %s37, 1
      %p264 = por %p262, %p263
      %p266 = scmp.ne.s32.totalorder %s249, %s265
      %p267 = scmp.eq.s32.totalorder %s37, 0
      %p268 = por %p266, %p267
      %s269 = ssub.s32 %s31, %s38
      %p270 = scmp.eq.s32.totalorder %s269, 0
      %s272 = sadd.s32 %s271, 1
      %s273 = scalar_select %p270, %s271, %s272
      %p276 = pneg %p270
      %p277 = scmp.eq.s32.totalorder %s31, 1
      %p278 = por %p276, %p277
      %p279 = scmp.ne.s32.totalorder %s271, %s274
      %p280 = scmp.eq.s32.totalorder %s31, 0
      %p281 = por %p279, %p280
      %p282 = scmp.ne.s32.totalorder %s271, %s274
      %p283 = scmp.eq.s32.totalorder %s36, 1
      %p284 = por %p282, %p283
      %p285 = scmp.ne.s32.totalorder %s274, %s275
      %p286 = scmp.eq.s32.totalorder %s36, 0
      %p287 = por %p285, %p286
      %p288 = scmp.ne.s32.totalorder %s274, %s275
      %p289 = scmp.eq.s32.totalorder %s37, 1
      %p290 = por %p288, %p289
      %p292 = scmp.ne.s32.totalorder %s275, %s291
      %p293 = scmp.eq.s32.totalorder %s37, 0
      %p294 = por %p292, %p293
      %p295 = scmp.le.s32.totalorder 1, %s31
      %p296 = scmp.lt.s32.totalorder %s31, 3
      %p297 = pnand %p295, %p296
      %p298 = pneg %p297
      // Predicated region
      $region9: #{tpu_custom_call.1} parent=5 // pred_check
        _
      $region10: #{tpu_custom_call.1} parent=5 // pred_check_branch
        %300 = sbr.rel (%p297) target = $region12
      $region11: #{tpu_custom_call.1} parent=5 // pred_region
        %s301 = ssub.s32 %s31, 1
        // Predicated region
        $region13: #{tpu_custom_call.1} parent=11 // pred_check
          %p302 = pneg %p78
        $region14: #{tpu_custom_call.1} parent=11 // pred_check_branch
          %304 = sbr.rel (%p302) target = $region16
        $region15: #{tpu_custom_call.1} parent=11 // pred_region
          %306 = vsyncadd [#allocation7], 0
          %s307 = sshll.u32 %s1, 4
          %s308 = int_to_ptr.hbm [resolvable:$true] %s307
          %s309 = sshll.u32 [#allocation6], 4
          %s310 = int_to_ptr.vmem [resolvable:$true] %s309
          %315 = dma.hbm_to_vmem [thread:$0]  %s308, 256, %s310, [#allocation7], 128, 128, 8
        $region16: #{tpu_custom_call.1} parent=11 // pred_fallthru
          _
        // Predicated region
        $region17: #{tpu_custom_call.1} parent=11 // pred_check
          %p316 = pneg %p99
        $region18: #{tpu_custom_call.1} parent=11 // pred_check_branch
          %318 = sbr.rel (%p316) target = $region20
        $region19: #{tpu_custom_call.1} parent=11 // pred_region
          %320 = vsyncadd [#allocation7], 0
          %s322 = sshll.u32 %s2, 4
          %s323 = int_to_ptr.hbm [resolvable:$true] %s322
          %s324 = sshll.u32 [#allocation8], 4
          %s325 = int_to_ptr.vmem [resolvable:$true] %s324
          %327 = dma.hbm_to_vmem [thread:$0]  %s323, 32, %s325, [#allocation7]
        $region20: #{tpu_custom_call.1} parent=11 // pred_fallthru
          _
        // Predicated region
        $region21: #{tpu_custom_call.1} parent=11 // pred_check
          %p328 = pneg %p120
        $region22: #{tpu_custom_call.1} parent=11 // pred_check_branch
          %330 = sbr.rel (%p328) target = $region24
        $region23: #{tpu_custom_call.1} parent=11 // pred_region
          _
        $region24: #{tpu_custom_call.1} parent=11 // pred_fallthru
          _
        // Predicated region
        $region25: #{tpu_custom_call.1} parent=11 // pred_check
          %p331 = pneg %p141
        $region26: #{tpu_custom_call.1} parent=11 // pred_check_branch
          %333 = sbr.rel (%p331) target = $region28
        $region27: #{tpu_custom_call.1} parent=11 // pred_region
          %335 = vsyncadd [#allocation10], 0
          %s336 = sshll.u32 %s4, 4
          %s337 = int_to_ptr.hbm [resolvable:$true] %s336
          %s338 = sshll.u32 [#allocation9], 4
          %s339 = int_to_ptr.vmem [resolvable:$true] %s338
          %344 = dma.hbm_to_vmem [thread:$0]  %s337, 128, %s339, [#allocation10], 64, 64, 4
        $region28: #{tpu_custom_call.1} parent=11 // pred_fallthru
          _
        // Predicated region
        $region29: #{tpu_custom_call.1} parent=11 // pred_check
          %p345 = pneg %p162
        $region30: #{tpu_custom_call.1} parent=11 // pred_check_branch
          %347 = sbr.rel (%p345) target = $region32
        $region31: #{tpu_custom_call.1} parent=11 // pred_region
          _
        $region32: #{tpu_custom_call.1} parent=11 // pred_fallthru
          _
        // Predicated region
        $region33: #{tpu_custom_call.1} parent=11 // pred_check
          %p348 = pneg %p183
        $region34: #{tpu_custom_call.1} parent=11 // pred_check_branch
          %350 = sbr.rel (%p348) target = $region36
        $region35: #{tpu_custom_call.1} parent=11 // pred_region
          _
        $region36: #{tpu_custom_call.1} parent=11 // pred_fallthru
          _
      $region12: #{tpu_custom_call.1} parent=5 // pred_fallthru
        _
      %p351 = scmp.lt.s32.totalorder %s31, 2
      // Predicated region
      $region37: #{tpu_custom_call.1} parent=5 // pred_check
        %p352 = pneg %p351
      $region38: #{tpu_custom_call.1} parent=5 // pred_check_branch
        %354 = sbr.rel (%p352) target = $region40
      $region39: #{tpu_custom_call.1} parent=5 // pred_region
        // Predicated region
        $region41: #{tpu_custom_call.1} parent=39 // pred_check
          %p355 = pneg %p51
        $region42: #{tpu_custom_call.1} parent=39 // pred_check_branch
          %357 = sbr.rel (%p355) target = $region44
        $region43: #{tpu_custom_call.1} parent=39 // pred_region
          %s358 = sand.u32 %s41, 1
          %s359 = scalar_lea.sflag [#allocation4], %s358
          %s360 = sand.u32 %s41, 1
          %s361 = smul.addr %s360, 128
          %s362 = scalar_lea.vmem [#allocation3], %s361
          %364 = vsyncadd %s359, 0
          %s365 = smul.addr %s31, 32
          %s366 = smul.addr %s365, 4
          %s367 = scalar_lea.hbm %s0, %s366
          %s368 = sshll.u32 %s367, 4
          %s369 = int_to_ptr.hbm [resolvable:$true] %s368
          %s370 = sshll.u32 %s362, 4
          %s371 = int_to_ptr.vmem [resolvable:$true] %s370
          %376 = dma.hbm_to_vmem [thread:$0]  %s369, 2048, %s371, %s359, 64, 64, 4
        $region44: #{tpu_custom_call.1} parent=39 // pred_fallthru
          _
      $region40: #{tpu_custom_call.1} parent=5 // pred_fallthru
        _
      %p377 = scmp.le.s32.totalorder 1, %s31
      %p378 = scmp.lt.s32.totalorder %s31, 3
      %p379 = pnand %p377, %p378
      %p380 = pneg %p379
      // Predicated region
      $region45: #{tpu_custom_call.1} parent=5 // pred_check
        _
      $region46: #{tpu_custom_call.1} parent=5 // pred_check_branch
        %382 = sbr.rel (%p379) target = $region48
      $region47: #{tpu_custom_call.1} parent=5 // pred_region
        %s383 = ssub.s32 %s31, 1
        %s384 = sand.u32 %s44, 1
        %s385 = scalar_lea.sflag [#allocation4], %s384
        %s386 = sand.u32 %s44, 1
        %s387 = smul.addr %s386, 128
        %s388 = scalar_lea.vmem [#allocation3], %s387
        // Predicated region
        $region49: #{tpu_custom_call.1} parent=47 // pred_check
          %p389 = pneg %p57
        $region50: #{tpu_custom_call.1} parent=47 // pred_check_branch
          %391 = sbr.rel (%p389) target = $region52
        $region51: #{tpu_custom_call.1} parent=47 // pred_region
          %393 = dma.done %s385, 2048
        $region52: #{tpu_custom_call.1} parent=47 // pred_fallthru
          _
        // Predicated region
        $region53: #{tpu_custom_call.1} parent=47 // pred_check
          %p394 = pneg %p78
        $region54: #{tpu_custom_call.1} parent=47 // pred_check_branch
          %396 = sbr.rel (%p394) target = $region56
        $region55: #{tpu_custom_call.1} parent=47 // pred_region
          %398 = dma.done [#allocation7], 256
        $region56: #{tpu_custom_call.1} parent=47 // pred_fallthru
          _
        // Predicated region
        $region57: #{tpu_custom_call.1} parent=47 // pred_check
          %p399 = pneg %p99
        $region58: #{tpu_custom_call.1} parent=47 // pred_check_branch
          %401 = sbr.rel (%p399) target = $region60
        $region59: #{tpu_custom_call.1} parent=47 // pred_region
          %403 = dma.done [#allocation7], 32
        $region60: #{tpu_custom_call.1} parent=47 // pred_fallthru
          _
        // Predicated region
        $region61: #{tpu_custom_call.1} parent=47 // pred_check
          %p404 = pneg %p141
        $region62: #{tpu_custom_call.1} parent=47 // pred_check_branch
          %406 = sbr.rel (%p404) target = $region64
        $region63: #{tpu_custom_call.1} parent=47 // pred_region
          %408 = dma.done [#allocation10], 128
        $region64: #{tpu_custom_call.1} parent=47 // pred_fallthru
          _
        %s409 = sand.u32 %s44, 1
        %s410 = scalar_lea.sflag [#allocation4], %s409
        %s411 = sand.u32 %s44, 1
        %s412 = smul.addr %s411, 128
        %s413 = scalar_lea.vmem [#allocation3], %s412
        %p414 = pneg %p57
        %p415 = pneg %p54
        %p416 = pneg %p78
        %p417 = pneg %p75
        %p418 = pneg %p99
        %p419 = pneg %p96
        %p420 = pneg %p120
        %p421 = pneg %p117
        %p422 = pneg %p141
        %p423 = pneg %p138
        %p424 = pneg %p162
        %p425 = pneg %p159
        %p426 = pneg %p183
        %p427 = pneg %p180
        %p428 = pneg %p209
        %p429 = pneg %p206
        %s430 = sand.u32 %s196, 1
        %s431 = scalar_lea.sflag [#allocation5], %s430
        %s432 = sand.u32 %s196, 1
        %s433 = smul.addr %s432, 128
        %s434 = scalar_lea.vmem [#allocation11], %s433
        %p435 = pneg %p235
        %p436 = pneg %p232
        %s437 = sand.u32 %s36, 1
        %s438 = scalar_lea.sflag [#allocation13], %s437
        %s439 = sand.u32 %s222, 1
        %s440 = smul.addr %s439, 128
        %s441 = scalar_lea.vmem [#allocation12], %s440
        %p442 = pneg %p261
        %p443 = pneg %p258
        %s444 = sand.u32 %s36, 1
        %s445 = scalar_lea.sflag [#allocation13], %s444
        %s446 = sand.u32 %s248, 1
        %s447 = smul.addr %s446, 128
        %s448 = scalar_lea.vmem [#allocation14], %s447
        %p449 = pneg %p287
        %p450 = pneg %p284
        %s451 = sand.u32 %s274, 1
        %s452 = scalar_lea.sflag [#allocation16], %s451
        %s453 = sand.u32 %s274, 1
        %s454 = smul.addr %s453, 128
        %s455 = scalar_lea.vmem [#allocation15], %s454
        %v457 = vld [vmem:[%s388] sm:$0xf]
        %v458 = vld [vmem:[%s388 + $0x4] sm:$0xf]
        %v459 = vld [vmem:[%s388 + $0x8] sm:$0xf]
        %v460 = vld [vmem:[%s388 + $0xc] sm:$0xf]
        %v461 = vld [vmem:[%s388 + $0x10] sm:$0xf]
        %v462 = vld [vmem:[%s388 + $0x14] sm:$0xf]
        %v463 = vld [vmem:[%s388 + $0x18] sm:$0xf]
        %v464 = vld [vmem:[%s388 + $0x1c] sm:$0xf]
        %v465 = vld [vmem:[%s388 + $0x20] sm:$0xf]
        %v466 = vld [vmem:[%s388 + $0x24] sm:$0xf]
        %v467 = vld [vmem:[%s388 + $0x28] sm:$0xf]
        %v468 = vld [vmem:[%s388 + $0x2c] sm:$0xf]
        %v469 = vld [vmem:[%s388 + $0x30] sm:$0xf]
        %v470 = vld [vmem:[%s388 + $0x34] sm:$0xf]
        %v471 = vld [vmem:[%s388 + $0x38] sm:$0xf]
        %v472 = vld [vmem:[%s388 + $0x3c] sm:$0xf]
        %v473 = vld [vmem:[%s388 + $0x40] sm:$0xf]
        %v474 = vld [vmem:[%s388 + $0x44] sm:$0xf]
        %v475 = vld [vmem:[%s388 + $0x48] sm:$0xf]
        %v476 = vld [vmem:[%s388 + $0x4c] sm:$0xf]
        %v477 = vld [vmem:[%s388 + $0x50] sm:$0xf]
        %v478 = vld [vmem:[%s388 + $0x54] sm:$0xf]
        %v479 = vld [vmem:[%s388 + $0x58] sm:$0xf]
        %v480 = vld [vmem:[%s388 + $0x5c] sm:$0xf]
        %v481 = vld [vmem:[%s388 + $0x60] sm:$0xf]
        %v482 = vld [vmem:[%s388 + $0x64] sm:$0xf]
        %v483 = vld [vmem:[%s388 + $0x68] sm:$0xf]
        %v484 = vld [vmem:[%s388 + $0x6c] sm:$0xf]
        %v485 = vld [vmem:[%s388 + $0x70] sm:$0xf]
        %v486 = vld [vmem:[%s388 + $0x74] sm:$0xf]
        %v487 = vld [vmem:[%s388 + $0x78] sm:$0xf]
        %v488 = vld [vmem:[%s388 + $0x7c] sm:$0xf]
        %v489 = vld [vmem:[#allocation6] sm:$0xff]
        %v490 = vld [vmem:[#allocation6 + $0x8] sm:$0xff]
        %v523 = vunpack.c.l.b16 %v457
        %v524 = vunpack.c.l.b16 %v458
        %v525 = vunpack.c.l.b16 %v459
        %v526 = vunpack.c.l.b16 %v460
        %v527 = vunpack.c.l.b16 %v461
        %v528 = vunpack.c.l.b16 %v462
        %v529 = vunpack.c.l.b16 %v463
        %v530 = vunpack.c.l.b16 %v464
        %v531 = vunpack.c.l.b16 %v465
        %v532 = vunpack.c.l.b16 %v466
        %v533 = vunpack.c.l.b16 %v467
        %v534 = vunpack.c.l.b16 %v468
        %v535 = vunpack.c.l.b16 %v469
        %v536 = vunpack.c.l.b16 %v470
        %v537 = vunpack.c.l.b16 %v471
        %v538 = vunpack.c.l.b16 %v472
        %v539 = vunpack.c.l.b16 %v473
        %v540 = vunpack.c.l.b16 %v474
        %v541 = vunpack.c.l.b16 %v475
        %v542 = vunpack.c.l.b16 %v476
        %v543 = vunpack.c.l.b16 %v477
        %v544 = vunpack.c.l.b16 %v478
        %v545 = vunpack.c.l.b16 %v479
        %v546 = vunpack.c.l.b16 %v480
        %v547 = vunpack.c.l.b16 %v481
        %v548 = vunpack.c.l.b16 %v482
        %v549 = vunpack.c.l.b16 %v483
        %v550 = vunpack.c.l.b16 %v484
        %v551 = vunpack.c.l.b16 %v485
        %v552 = vunpack.c.l.b16 %v486
        %v553 = vunpack.c.l.b16 %v487
        %v554 = vunpack.c.l.b16 %v488
        %v555 = vpack.c.b16 %v524, %v523
        %v556 = vpack.c.b16 %v526, %v525
        %v557 = vpack.c.b16 %v528, %v527
        %v558 = vpack.c.b16 %v530, %v529
        %v559 = vpack.c.b16 %v532, %v531
        %v560 = vpack.c.b16 %v534, %v533
        %v561 = vpack.c.b16 %v536, %v535
        %v562 = vpack.c.b16 %v538, %v537
        %v563 = vpack.c.b16 %v540, %v539
        %v564 = vpack.c.b16 %v542, %v541
        %v565 = vpack.c.b16 %v544, %v543
        %v566 = vpack.c.b16 %v546, %v545
        %v567 = vpack.c.b16 %v548, %v547
        %v568 = vpack.c.b16 %v550, %v549
        %v569 = vpack.c.b16 %v552, %v551
        %v570 = vpack.c.b16 %v554, %v553
        %v573 = vunpack.c.l.b16 %v489
        %v574 = vunpack.c.h.b16 %v489
        %v575 = vunpack.c.l.b16 %v490
        %v576 = vunpack.c.h.b16 %v490
        %v577 = vpack.c.b16 %v575, %v573
        %v578 = vpack.c.b16 %v576, %v574
        %vm581 = vcmask 130048
        %v583 = vsel %vm581, %v555, 0
        %v586 = vsel %vm581, %v556, 0
        %v589 = vsel %vm581, %v557, 0
        %v592 = vsel %vm581, %v558, 0
        %v595 = vsel %vm581, %v559, 0
        %v598 = vsel %vm581, %v560, 0
        %v601 = vsel %vm581, %v561, 0
        %v604 = vsel %vm581, %v562, 0
        %v607 = vsel %vm581, %v563, 0
        %v610 = vsel %vm581, %v564, 0
        %v613 = vsel %vm581, %v565, 0
        %v616 = vsel %vm581, %v566, 0
        %v619 = vsel %vm581, %v567, 0
        %v622 = vsel %vm581, %v568, 0
        %v625 = vsel %vm581, %v569, 0
        %v628 = vsel %vm581, %v570, 0
        %630 = vmatpush.bf16.msra.mxu0 0
        %631 = vmatpush.bf16.msra.mxu0 0
        %632 = vmatpush.bf16.msra.mxu0 0
        %633 = vmatpush.bf16.msra.mxu0 0
        %634 = vmatpush.bf16.msra.mxu0 0
        %635 = vmatpush.bf16.msra.mxu0 0
        %636 = vmatpush.bf16.msra.mxu0 0
        %637 = vmatpush.bf16.msra.mxu0 %v577
        %638 = vmatmul.bf16.gmra.mxu0 %v583
        %v639 = vpop.f32.mrf.mxu0
        %v640 = vadd.f32 0.0, %v639
        %v641 = vpop.f32.mrf.mxu0
        %v642 = vadd.f32 0.0, %v641
        %643 = vmatmul.bf16.gmra.mxu0 %v586
        %v644 = vpop.f32.mrf.mxu0
        %v645 = vadd.f32 0.0, %v644
        %v646 = vpop.f32.mrf.mxu0
        %v647 = vadd.f32 0.0, %v646
        %648 = vmatmul.bf16.gmra.mxu0 %v589
        %v649 = vpop.f32.mrf.mxu0
        %v650 = vadd.f32 0.0, %v649
        %v651 = vpop.f32.mrf.mxu0
        %v652 = vadd.f32 0.0, %v651
        %653 = vmatmul.bf16.gmra.mxu0 %v592
        %v654 = vpop.f32.mrf.mxu0
        %v655 = vadd.f32 0.0, %v654
        %v656 = vpop.f32.mrf.mxu0
        %v657 = vadd.f32 0.0, %v656
        %658 = vmatmul.bf16.gmra.mxu0 %v595
        %v659 = vpop.f32.mrf.mxu0
        %v660 = vadd.f32 0.0, %v659
        %v661 = vpop.f32.mrf.mxu0
        %v662 = vadd.f32 0.0, %v661
        %663 = vmatmul.bf16.gmra.mxu0 %v598
        %v664 = vpop.f32.mrf.mxu0
        %v665 = vadd.f32 0.0, %v664
        %v666 = vpop.f32.mrf.mxu0
        %v667 = vadd.f32 0.0, %v666
        %668 = vmatmul.bf16.gmra.mxu0 %v601
        %v669 = vpop.f32.mrf.mxu0
        %v670 = vadd.f32 0.0, %v669
        %v671 = vpop.f32.mrf.mxu0
        %v672 = vadd.f32 0.0, %v671
        %673 = vmatmul.bf16.gmra.mxu0 %v604
        %v674 = vpop.f32.mrf.mxu0
        %v675 = vadd.f32 0.0, %v674
        %v676 = vpop.f32.mrf.mxu0
        %v677 = vadd.f32 0.0, %v676
        %678 = vmatmul.bf16.gmra.mxu0 %v607
        %v679 = vpop.f32.mrf.mxu0
        %v680 = vadd.f32 0.0, %v679
        %v681 = vpop.f32.mrf.mxu0
        %v682 = vadd.f32 0.0, %v681
        %683 = vmatmul.bf16.gmra.mxu0 %v610
        %v684 = vpop.f32.mrf.mxu0
        %v685 = vadd.f32 0.0, %v684
        %v686 = vpop.f32.mrf.mxu0
        %v687 = vadd.f32 0.0, %v686
        %688 = vmatmul.bf16.gmra.mxu0 %v613
        %v689 = vpop.f32.mrf.mxu0
        %v690 = vadd.f32 0.0, %v689
        %v691 = vpop.f32.mrf.mxu0
        %v692 = vadd.f32 0.0, %v691
        %693 = vmatmul.bf16.gmra.mxu0 %v616
        %v694 = vpop.f32.mrf.mxu0
        %v695 = vadd.f32 0.0, %v694
        %v696 = vpop.f32.mrf.mxu0
        %v697 = vadd.f32 0.0, %v696
        %698 = vmatmul.bf16.gmra.mxu0 %v619
        %v699 = vpop.f32.mrf.mxu0
        %v700 = vadd.f32 0.0, %v699
        %v701 = vpop.f32.mrf.mxu0
        %v702 = vadd.f32 0.0, %v701
        %703 = vmatmul.bf16.gmra.mxu0 %v622
        %v704 = vpop.f32.mrf.mxu0
        %v705 = vadd.f32 0.0, %v704
        %v706 = vpop.f32.mrf.mxu0
        %v707 = vadd.f32 0.0, %v706
        %708 = vmatmul.bf16.gmra.mxu0 %v625
        %v709 = vpop.f32.mrf.mxu0
        %v710 = vadd.f32 0.0, %v709
        %v711 = vpop.f32.mrf.mxu0
        %v712 = vadd.f32 0.0, %v711
        %713 = vmatmul.bf16.gmra.mxu0 %v628
        %v714 = vpop.f32.mrf.mxu0
        %v715 = vadd.f32 0.0, %v714
        %v716 = vpop.f32.mrf.mxu0
        %v717 = vadd.f32 0.0, %v716
        %718 = vdwg.mxu0
        %719 = vmatpush.bf16.msra.mxu0 0
        %720 = vmatpush.bf16.msra.mxu0 0
        %721 = vmatpush.bf16.msra.mxu0 0
        %722 = vmatpush.bf16.msra.mxu0 0
        %723 = vmatpush.bf16.msra.mxu0 0
        %724 = vmatpush.bf16.msra.mxu0 0
        %725 = vmatpush.bf16.msra.mxu0 0
        %726 = vmatpush.bf16.msra.mxu0 %v578
        %727 = vmatmul.bf16.gmra.mxu0 %v583
        %v728 = vpop.f32.mrf.mxu0
        %v729 = vadd.f32 0.0, %v728
        %v730 = vpop.f32.mrf.mxu0
        %v731 = vadd.f32 0.0, %v730
        %732 = vmatmul.bf16.gmra.mxu0 %v586
        %v733 = vpop.f32.mrf.mxu0
        %v734 = vadd.f32 0.0, %v733
        %v735 = vpop.f32.mrf.mxu0
        %v736 = vadd.f32 0.0, %v735
        %737 = vmatmul.bf16.gmra.mxu0 %v589
        %v738 = vpop.f32.mrf.mxu0
        %v739 = vadd.f32 0.0, %v738
        %v740 = vpop.f32.mrf.mxu0
        %v741 = vadd.f32 0.0, %v740
        %742 = vmatmul.bf16.gmra.mxu0 %v592
        %v743 = vpop.f32.mrf.mxu0
        %v744 = vadd.f32 0.0, %v743
        %v745 = vpop.f32.mrf.mxu0
        %v746 = vadd.f32 0.0, %v745
        %747 = vmatmul.bf16.gmra.mxu0 %v595
        %v748 = vpop.f32.mrf.mxu0
        %v749 = vadd.f32 0.0, %v748
        %v750 = vpop.f32.mrf.mxu0
        %v751 = vadd.f32 0.0, %v750
        %752 = vmatmul.bf16.gmra.mxu0 %v598
        %v753 = vpop.f32.mrf.mxu0
        %v754 = vadd.f32 0.0, %v753
        %v755 = vpop.f32.mrf.mxu0
        %v756 = vadd.f32 0.0, %v755
        %757 = vmatmul.bf16.gmra.mxu0 %v601
        %v758 = vpop.f32.mrf.mxu0
        %v759 = vadd.f32 0.0, %v758
        %v760 = vpop.f32.mrf.mxu0
        %v761 = vadd.f32 0.0, %v760
        %762 = vmatmul.bf16.gmra.mxu0 %v604
        %v763 = vpop.f32.mrf.mxu0
        %v764 = vadd.f32 0.0, %v763
        %v765 = vpop.f32.mrf.mxu0
        %v766 = vadd.f32 0.0, %v765
        %767 = vmatmul.bf16.gmra.mxu0 %v607
        %v768 = vpop.f32.mrf.mxu0
        %v769 = vadd.f32 0.0, %v768
        %v770 = vpop.f32.mrf.mxu0
        %v771 = vadd.f32 0.0, %v770
        %772 = vmatmul.bf16.gmra.mxu0 %v610
        %v773 = vpop.f32.mrf.mxu0
        %v774 = vadd.f32 0.0, %v773
        %v775 = vpop.f32.mrf.mxu0
        %v776 = vadd.f32 0.0, %v775
        %777 = vmatmul.bf16.gmra.mxu0 %v613
        %v778 = vpop.f32.mrf.mxu0
        %v779 = vadd.f32 0.0, %v778
        %v780 = vpop.f32.mrf.mxu0
        %v781 = vadd.f32 0.0, %v780
        %782 = vmatmul.bf16.gmra.mxu0 %v616
        %v783 = vpop.f32.mrf.mxu0
        %v784 = vadd.f32 0.0, %v783
        %v785 = vpop.f32.mrf.mxu0
        %v786 = vadd.f32 0.0, %v785
        %787 = vmatmul.bf16.gmra.mxu0 %v619
        %v788 = vpop.f32.mrf.mxu0
        %v789 = vadd.f32 0.0, %v788
        %v790 = vpop.f32.mrf.mxu0
        %v791 = vadd.f32 0.0, %v790
        %792 = vmatmul.bf16.gmra.mxu0 %v622
        %v793 = vpop.f32.mrf.mxu0
        %v794 = vadd.f32 0.0, %v793
        %v795 = vpop.f32.mrf.mxu0
        %v796 = vadd.f32 0.0, %v795
        %797 = vmatmul.bf16.gmra.mxu0 %v625
        %v798 = vpop.f32.mrf.mxu0
        %v799 = vadd.f32 0.0, %v798
        %v800 = vpop.f32.mrf.mxu0
        %v801 = vadd.f32 0.0, %v800
        %802 = vmatmul.bf16.gmra.mxu0 %v628
        %v803 = vpop.f32.mrf.mxu0
        %v804 = vadd.f32 0.0, %v803
        %v805 = vpop.f32.mrf.mxu0
        %v806 = vadd.f32 0.0, %v805
        %807 = vdwg.mxu0
        %v808 = vld [vmem:[#allocation8] sm:$0x3]
        %v810 = vperm.slane %v808, 0
        %v811 = vperm.slane %v808, 1
        %v814 = vmul.f32 %v640, %v810
        %v815 = vmul.f32 %v729, %v811
        %v816 = vmul.f32 %v642, %v810
        %v817 = vmul.f32 %v731, %v811
        %v818 = vmul.f32 %v645, %v810
        %v819 = vmul.f32 %v734, %v811
        %v820 = vmul.f32 %v647, %v810
        %v821 = vmul.f32 %v736, %v811
        %v822 = vmul.f32 %v650, %v810
        %v823 = vmul.f32 %v739, %v811
        %v824 = vmul.f32 %v652, %v810
        %v825 = vmul.f32 %v741, %v811
        %v826 = vmul.f32 %v655, %v810
        %v827 = vmul.f32 %v744, %v811
        %v828 = vmul.f32 %v657, %v810
        %v829 = vmul.f32 %v746, %v811
        %v830 = vmul.f32 %v660, %v810
        %v831 = vmul.f32 %v749, %v811
        %v832 = vmul.f32 %v662, %v810
        %v833 = vmul.f32 %v751, %v811
        %v834 = vmul.f32 %v665, %v810
        %v835 = vmul.f32 %v754, %v811
        %v836 = vmul.f32 %v667, %v810
        %v837 = vmul.f32 %v756, %v811
        %v838 = vmul.f32 %v670, %v810
        %v839 = vmul.f32 %v759, %v811
        %v840 = vmul.f32 %v672, %v810
        %v841 = vmul.f32 %v761, %v811
        %v842 = vmul.f32 %v675, %v810
        %v843 = vmul.f32 %v764, %v811
        %v844 = vmul.f32 %v677, %v810
        %v845 = vmul.f32 %v766, %v811
        %v846 = vmul.f32 %v680, %v810
        %v847 = vmul.f32 %v769, %v811
        %v848 = vmul.f32 %v682, %v810
        %v849 = vmul.f32 %v771, %v811
        %v850 = vmul.f32 %v685, %v810
        %v851 = vmul.f32 %v774, %v811
        %v852 = vmul.f32 %v687, %v810
        %v853 = vmul.f32 %v776, %v811
        %v854 = vmul.f32 %v690, %v810
        %v855 = vmul.f32 %v779, %v811
        %v856 = vmul.f32 %v692, %v810
        %v857 = vmul.f32 %v781, %v811
        %v858 = vmul.f32 %v695, %v810
        %v859 = vmul.f32 %v784, %v811
        %v860 = vmul.f32 %v697, %v810
        %v861 = vmul.f32 %v786, %v811
        %v862 = vmul.f32 %v700, %v810
        %v863 = vmul.f32 %v789, %v811
        %v864 = vmul.f32 %v702, %v810
        %v865 = vmul.f32 %v791, %v811
        %v866 = vmul.f32 %v705, %v810
        %v867 = vmul.f32 %v794, %v811
        %v868 = vmul.f32 %v707, %v810
        %v869 = vmul.f32 %v796, %v811
        %v870 = vmul.f32 %v710, %v810
        %v871 = vmul.f32 %v799, %v811
        %v872 = vmul.f32 %v712, %v810
        %v873 = vmul.f32 %v801, %v811
        %v874 = vmul.f32 %v715, %v810
        %v875 = vmul.f32 %v804, %v811
        %v876 = vmul.f32 %v717, %v810
        %v877 = vmul.f32 %v806, %v811
        %v878 = vld [vmem:[%s3] sm:$0x3]
        %v880 = vperm.slane %v878, 0
        %v881 = vperm.slane %v878, 1
        %v884 = vadd.f32 %v814, %v880
        %v885 = vadd.f32 %v815, %v881
        %v886 = vadd.f32 %v816, %v880
        %v887 = vadd.f32 %v817, %v881
        %v888 = vadd.f32 %v818, %v880
        %v889 = vadd.f32 %v819, %v881
        %v890 = vadd.f32 %v820, %v880
        %v891 = vadd.f32 %v821, %v881
        %v892 = vadd.f32 %v822, %v880
        %v893 = vadd.f32 %v823, %v881
        %v894 = vadd.f32 %v824, %v880
        %v895 = vadd.f32 %v825, %v881
        %v896 = vadd.f32 %v826, %v880
        %v897 = vadd.f32 %v827, %v881
        %v898 = vadd.f32 %v828, %v880
        %v899 = vadd.f32 %v829, %v881
        %v900 = vadd.f32 %v830, %v880
        %v901 = vadd.f32 %v831, %v881
        %v902 = vadd.f32 %v832, %v880
        %v903 = vadd.f32 %v833, %v881
        %v904 = vadd.f32 %v834, %v880
        %v905 = vadd.f32 %v835, %v881
        %v906 = vadd.f32 %v836, %v880
        %v907 = vadd.f32 %v837, %v881
        %v908 = vadd.f32 %v838, %v880
        %v909 = vadd.f32 %v839, %v881
        %v910 = vadd.f32 %v840, %v880
        %v911 = vadd.f32 %v841, %v881
        %v912 = vadd.f32 %v842, %v880
        %v913 = vadd.f32 %v843, %v881
        %v914 = vadd.f32 %v844, %v880
        %v915 = vadd.f32 %v845, %v881
        %v916 = vadd.f32 %v846, %v880
        %v917 = vadd.f32 %v847, %v881
        %v918 = vadd.f32 %v848, %v880
        %v919 = vadd.f32 %v849, %v881
        %v920 = vadd.f32 %v850, %v880
        %v921 = vadd.f32 %v851, %v881
        %v922 = vadd.f32 %v852, %v880
        %v923 = vadd.f32 %v853, %v881
        %v924 = vadd.f32 %v854, %v880
        %v925 = vadd.f32 %v855, %v881
        %v926 = vadd.f32 %v856, %v880
        %v927 = vadd.f32 %v857, %v881
        %v928 = vadd.f32 %v858, %v880
        %v929 = vadd.f32 %v859, %v881
        %v930 = vadd.f32 %v860, %v880
        %v931 = vadd.f32 %v861, %v881
        %v932 = vadd.f32 %v862, %v880
        %v933 = vadd.f32 %v863, %v881
        %v934 = vadd.f32 %v864, %v880
        %v935 = vadd.f32 %v865, %v881
        %v936 = vadd.f32 %v866, %v880
        %v937 = vadd.f32 %v867, %v881
        %v938 = vadd.f32 %v868, %v880
        %v939 = vadd.f32 %v869, %v881
        %v940 = vadd.f32 %v870, %v880
        %v941 = vadd.f32 %v871, %v881
        %v942 = vadd.f32 %v872, %v880
        %v943 = vadd.f32 %v873, %v881
        %v944 = vadd.f32 %v874, %v880
        %v945 = vadd.f32 %v875, %v881
        %v946 = vadd.f32 %v876, %v880
        %v947 = vadd.f32 %v877, %v881
        %v948 = vmax.f32 %v884, 0.0
        %v949 = vmax.f32 %v885, 0.0
        %v950 = vmax.f32 %v886, 0.0
        %v951 = vmax.f32 %v887, 0.0
        %v952 = vmax.f32 %v888, 0.0
        %v953 = vmax.f32 %v889, 0.0
        %v954 = vmax.f32 %v890, 0.0
        %v955 = vmax.f32 %v891, 0.0
        %v956 = vmax.f32 %v892, 0.0
        %v957 = vmax.f32 %v893, 0.0
        %v958 = vmax.f32 %v894, 0.0
        %v959 = vmax.f32 %v895, 0.0
        %v960 = vmax.f32 %v896, 0.0
        %v961 = vmax.f32 %v897, 0.0
        %v962 = vmax.f32 %v898, 0.0
        %v963 = vmax.f32 %v899, 0.0
        %v964 = vmax.f32 %v900, 0.0
        %v965 = vmax.f32 %v901, 0.0
        %v966 = vmax.f32 %v902, 0.0
        %v967 = vmax.f32 %v903, 0.0
        %v968 = vmax.f32 %v904, 0.0
        %v969 = vmax.f32 %v905, 0.0
        %v970 = vmax.f32 %v906, 0.0
        %v971 = vmax.f32 %v907, 0.0
        %v972 = vmax.f32 %v908, 0.0
        %v973 = vmax.f32 %v909, 0.0
        %v974 = vmax.f32 %v910, 0.0
        %v975 = vmax.f32 %v911, 0.0
        %v976 = vmax.f32 %v912, 0.0
        %v977 = vmax.f32 %v913, 0.0
        %v978 = vmax.f32 %v914, 0.0
        %v979 = vmax.f32 %v915, 0.0
        %v980 = vmax.f32 %v916, 0.0
        %v981 = vmax.f32 %v917, 0.0
        %v982 = vmax.f32 %v918, 0.0
        %v983 = vmax.f32 %v919, 0.0
        %v984 = vmax.f32 %v920, 0.0
        %v985 = vmax.f32 %v921, 0.0
        %v986 = vmax.f32 %v922, 0.0
        %v987 = vmax.f32 %v923, 0.0
        %v988 = vmax.f32 %v924, 0.0
        %v989 = vmax.f32 %v925, 0.0
        %v990 = vmax.f32 %v926, 0.0
        %v991 = vmax.f32 %v927, 0.0
        %v992 = vmax.f32 %v928, 0.0
        %v993 = vmax.f32 %v929, 0.0
        %v994 = vmax.f32 %v930, 0.0
        %v995 = vmax.f32 %v931, 0.0
        %v996 = vmax.f32 %v932, 0.0
        %v997 = vmax.f32 %v933, 0.0
        %v998 = vmax.f32 %v934, 0.0
        %v999 = vmax.f32 %v935, 0.0
        %v1000 = vmax.f32 %v936, 0.0
        %v1001 = vmax.f32 %v937, 0.0
        %v1002 = vmax.f32 %v938, 0.0
        %v1003 = vmax.f32 %v939, 0.0
        %v1004 = vmax.f32 %v940, 0.0
        %v1005 = vmax.f32 %v941, 0.0
        %v1006 = vmax.f32 %v942, 0.0
        %v1007 = vmax.f32 %v943, 0.0
        %v1008 = vmax.f32 %v944, 0.0
        %v1009 = vmax.f32 %v945, 0.0
        %v1010 = vmax.f32 %v946, 0.0
        %v1011 = vmax.f32 %v947, 0.0
        %v1012 = vpack.c.bf16 %v948, %v948
        %v1013 = vpack.c.bf16 %v950, %v950
        %v1014 = vpack.c.bf16 %v952, %v952
        %v1015 = vpack.c.bf16 %v954, %v954
        %v1016 = vpack.c.bf16 %v956, %v956
        %v1017 = vpack.c.bf16 %v958, %v958
        %v1018 = vpack.c.bf16 %v960, %v960
        %v1019 = vpack.c.bf16 %v962, %v962
        %v1020 = vpack.c.bf16 %v964, %v964
        %v1021 = vpack.c.bf16 %v966, %v966
        %v1022 = vpack.c.bf16 %v968, %v968
        %v1023 = vpack.c.bf16 %v970, %v970
        %v1024 = vpack.c.bf16 %v972, %v972
        %v1025 = vpack.c.bf16 %v974, %v974
        %v1026 = vpack.c.bf16 %v976, %v976
        %v1027 = vpack.c.bf16 %v978, %v978
        %v1028 = vpack.c.bf16 %v980, %v980
        %v1029 = vpack.c.bf16 %v982, %v982
        %v1030 = vpack.c.bf16 %v984, %v984
        %v1031 = vpack.c.bf16 %v986, %v986
        %v1032 = vpack.c.bf16 %v988, %v988
        %v1033 = vpack.c.bf16 %v990, %v990
        %v1034 = vpack.c.bf16 %v992, %v992
        %v1035 = vpack.c.bf16 %v994, %v994
        %v1036 = vpack.c.bf16 %v996, %v996
        %v1037 = vpack.c.bf16 %v998, %v998
        %v1038 = vpack.c.bf16 %v1000, %v1000
        %v1039 = vpack.c.bf16 %v1002, %v1002
        %v1040 = vpack.c.bf16 %v1004, %v1004
        %v1041 = vpack.c.bf16 %v1006, %v1006
        %v1042 = vpack.c.bf16 %v1008, %v1008
        %v1043 = vpack.c.bf16 %v1010, %v1010
        %vm1044 = vcmask 519168
        %1045 = vst.msk [vmem:[%s434] sm:$0xf] %vm1044, %v1012
        %1046 = vst.msk [vmem:[%s434 + $0x4] sm:$0xf] %vm1044, %v1013
        %1047 = vst.msk [vmem:[%s434 + $0x8] sm:$0xf] %vm1044, %v1014
        %1048 = vst.msk [vmem:[%s434 + $0xc] sm:$0xf] %vm1044, %v1015
        %1049 = vst.msk [vmem:[%s434 + $0x10] sm:$0xf] %vm1044, %v1016
        %1050 = vst.msk [vmem:[%s434 + $0x14] sm:$0xf] %vm1044, %v1017
        %1051 = vst.msk [vmem:[%s434 + $0x18] sm:$0xf] %vm1044, %v1018
        %1052 = vst.msk [vmem:[%s434 + $0x1c] sm:$0xf] %vm1044, %v1019
        %1053 = vst.msk [vmem:[%s434 + $0x20] sm:$0xf] %vm1044, %v1020
        %1054 = vst.msk [vmem:[%s434 + $0x24] sm:$0xf] %vm1044, %v1021
        %1055 = vst.msk [vmem:[%s434 + $0x28] sm:$0xf] %vm1044, %v1022
        %1056 = vst.msk [vmem:[%s434 + $0x2c] sm:$0xf] %vm1044, %v1023
        %1057 = vst.msk [vmem:[%s434 + $0x30] sm:$0xf] %vm1044, %v1024
        %1058 = vst.msk [vmem:[%s434 + $0x34] sm:$0xf] %vm1044, %v1025
        %1059 = vst.msk [vmem:[%s434 + $0x38] sm:$0xf] %vm1044, %v1026
        %1060 = vst.msk [vmem:[%s434 + $0x3c] sm:$0xf] %vm1044, %v1027
        %1061 = vst.msk [vmem:[%s434 + $0x40] sm:$0xf] %vm1044, %v1028
        %1062 = vst.msk [vmem:[%s434 + $0x44] sm:$0xf] %vm1044, %v1029
        %1063 = vst.msk [vmem:[%s434 + $0x48] sm:$0xf] %vm1044, %v1030
        %1064 = vst.msk [vmem:[%s434 + $0x4c] sm:$0xf] %vm1044, %v1031
        %1065 = vst.msk [vmem:[%s434 + $0x50] sm:$0xf] %vm1044, %v1032
        %1066 = vst.msk [vmem:[%s434 + $0x54] sm:$0xf] %vm1044, %v1033
        %1067 = vst.msk [vmem:[%s434 + $0x58] sm:$0xf] %vm1044, %v1034
        %1068 = vst.msk [vmem:[%s434 + $0x5c] sm:$0xf] %vm1044, %v1035
        %1069 = vst.msk [vmem:[%s434 + $0x60] sm:$0xf] %vm1044, %v1036
        %1070 = vst.msk [vmem:[%s434 + $0x64] sm:$0xf] %vm1044, %v1037
        %1071 = vst.msk [vmem:[%s434 + $0x68] sm:$0xf] %vm1044, %v1038
        %1072 = vst.msk [vmem:[%s434 + $0x6c] sm:$0xf] %vm1044, %v1039
        %1073 = vst.msk [vmem:[%s434 + $0x70] sm:$0xf] %vm1044, %v1040
        %1074 = vst.msk [vmem:[%s434 + $0x74] sm:$0xf] %vm1044, %v1041
        %1075 = vst.msk [vmem:[%s434 + $0x78] sm:$0xf] %vm1044, %v1042
        %1076 = vst.msk [vmem:[%s434 + $0x7c] sm:$0xf] %vm1044, %v1043
        %1109 = vrot.lane.b32.xlu0 %v1012, 64
        %v1110 = vpop.permute.xlu0 %1109
        %1111 = vrot.lane.b32.xlu0 %v1013, 64
        %v1112 = vpop.permute.xlu0 %1111
        %1113 = vrot.lane.b32.xlu0 %v1014, 64
        %v1114 = vpop.permute.xlu0 %1113
        %1115 = vrot.lane.b32.xlu0 %v1015, 64
        %v1116 = vpop.permute.xlu0 %1115
        %1117 = vrot.lane.b32.xlu0 %v1016, 64
        %v1118 = vpop.permute.xlu0 %1117
        %1119 = vrot.lane.b32.xlu0 %v1017, 64
        %v1120 = vpop.permute.xlu0 %1119
        %1121 = vrot.lane.b32.xlu0 %v1018, 64
        %v1122 = vpop.permute.xlu0 %1121
        %1123 = vrot.lane.b32.xlu0 %v1019, 64
        %v1124 = vpop.permute.xlu0 %1123
        %1125 = vrot.lane.b32.xlu0 %v1020, 64
        %v1126 = vpop.permute.xlu0 %1125
        %1127 = vrot.lane.b32.xlu0 %v1021, 64
        %v1128 = vpop.permute.xlu0 %1127
        %1129 = vrot.lane.b32.xlu0 %v1022, 64
        %v1130 = vpop.permute.xlu0 %1129
        %1131 = vrot.lane.b32.xlu0 %v1023, 64
        %v1132 = vpop.permute.xlu0 %1131
        %1133 = vrot.lane.b32.xlu0 %v1024, 64
        %v1134 = vpop.permute.xlu0 %1133
        %1135 = vrot.lane.b32.xlu0 %v1025, 64
        %v1136 = vpop.permute.xlu0 %1135
        %1137 = vrot.lane.b32.xlu0 %v1026, 64
        %v1138 = vpop.permute.xlu0 %1137
        %1139 = vrot.lane.b32.xlu0 %v1027, 64
        %v1140 = vpop.permute.xlu0 %1139
        %1141 = vrot.lane.b32.xlu0 %v1028, 64
        %v1142 = vpop.permute.xlu0 %1141
        %1143 = vrot.lane.b32.xlu0 %v1029, 64
        %v1144 = vpop.permute.xlu0 %1143
        %1145 = vrot.lane.b32.xlu0 %v1030, 64
        %v1146 = vpop.permute.xlu0 %1145
        %1147 = vrot.lane.b32.xlu0 %v1031, 64
        %v1148 = vpop.permute.xlu0 %1147
        %1149 = vrot.lane.b32.xlu0 %v1032, 64
        %v1150 = vpop.permute.xlu0 %1149
        %1151 = vrot.lane.b32.xlu0 %v1033, 64
        %v1152 = vpop.permute.xlu0 %1151
        %1153 = vrot.lane.b32.xlu0 %v1034, 64
        %v1154 = vpop.permute.xlu0 %1153
        %1155 = vrot.lane.b32.xlu0 %v1035, 64
        %v1156 = vpop.permute.xlu0 %1155
        %1157 = vrot.lane.b32.xlu0 %v1036, 64
        %v1158 = vpop.permute.xlu0 %1157
        %1159 = vrot.lane.b32.xlu0 %v1037, 64
        %v1160 = vpop.permute.xlu0 %1159
        %1161 = vrot.lane.b32.xlu0 %v1038, 64
        %v1162 = vpop.permute.xlu0 %1161
        %1163 = vrot.lane.b32.xlu0 %v1039, 64
        %v1164 = vpop.permute.xlu0 %1163
        %1165 = vrot.lane.b32.xlu0 %v1040, 64
        %v1166 = vpop.permute.xlu0 %1165
        %1167 = vrot.lane.b32.xlu0 %v1041, 64
        %v1168 = vpop.permute.xlu0 %1167
        %1169 = vrot.lane.b32.xlu0 %v1042, 64
        %v1170 = vpop.permute.xlu0 %1169
        %1171 = vrot.lane.b32.xlu0 %v1043, 64
        %v1172 = vpop.permute.xlu0 %1171
        %vm1205 = vcmask 388096
        %1206 = vst.msk [vmem:[%s441] sm:$0xf] %vm1205, %v1110
        %1207 = vst.msk [vmem:[%s441 + $0x4] sm:$0xf] %vm1205, %v1112
        %1208 = vst.msk [vmem:[%s441 + $0x8] sm:$0xf] %vm1205, %v1114
        %1209 = vst.msk [vmem:[%s441 + $0xc] sm:$0xf] %vm1205, %v1116
        %1210 = vst.msk [vmem:[%s441 + $0x10] sm:$0xf] %vm1205, %v1118
        %1211 = vst.msk [vmem:[%s441 + $0x14] sm:$0xf] %vm1205, %v1120
        %1212 = vst.msk [vmem:[%s441 + $0x18] sm:$0xf] %vm1205, %v1122
        %1213 = vst.msk [vmem:[%s441 + $0x1c] sm:$0xf] %vm1205, %v1124
        %1214 = vst.msk [vmem:[%s441 + $0x20] sm:$0xf] %vm1205, %v1126
        %1215 = vst.msk [vmem:[%s441 + $0x24] sm:$0xf] %vm1205, %v1128
        %1216 = vst.msk [vmem:[%s441 + $0x28] sm:$0xf] %vm1205, %v1130
        %1217 = vst.msk [vmem:[%s441 + $0x2c] sm:$0xf] %vm1205, %v1132
        %1218 = vst.msk [vmem:[%s441 + $0x30] sm:$0xf] %vm1205, %v1134
        %1219 = vst.msk [vmem:[%s441 + $0x34] sm:$0xf] %vm1205, %v1136
        %1220 = vst.msk [vmem:[%s441 + $0x38] sm:$0xf] %vm1205, %v1138
        %1221 = vst.msk [vmem:[%s441 + $0x3c] sm:$0xf] %vm1205, %v1140
        %1222 = vst.msk [vmem:[%s441 + $0x40] sm:$0xf] %vm1205, %v1142
        %1223 = vst.msk [vmem:[%s441 + $0x44] sm:$0xf] %vm1205, %v1144
        %1224 = vst.msk [vmem:[%s441 + $0x48] sm:$0xf] %vm1205, %v1146
        %1225 = vst.msk [vmem:[%s441 + $0x4c] sm:$0xf] %vm1205, %v1148
        %1226 = vst.msk [vmem:[%s441 + $0x50] sm:$0xf] %vm1205, %v1150
        %1227 = vst.msk [vmem:[%s441 + $0x54] sm:$0xf] %vm1205, %v1152
        %1228 = vst.msk [vmem:[%s441 + $0x58] sm:$0xf] %vm1205, %v1154
        %1229 = vst.msk [vmem:[%s441 + $0x5c] sm:$0xf] %vm1205, %v1156
        %1230 = vst.msk [vmem:[%s441 + $0x60] sm:$0xf] %vm1205, %v1158
        %1231 = vst.msk [vmem:[%s441 + $0x64] sm:$0xf] %vm1205, %v1160
        %1232 = vst.msk [vmem:[%s441 + $0x68] sm:$0xf] %vm1205, %v1162
        %1233 = vst.msk [vmem:[%s441 + $0x6c] sm:$0xf] %vm1205, %v1164
        %1234 = vst.msk [vmem:[%s441 + $0x70] sm:$0xf] %vm1205, %v1166
        %1235 = vst.msk [vmem:[%s441 + $0x74] sm:$0xf] %vm1205, %v1168
        %1236 = vst.msk [vmem:[%s441 + $0x78] sm:$0xf] %vm1205, %v1170
        %1237 = vst.msk [vmem:[%s441 + $0x7c] sm:$0xf] %vm1205, %v1172
        %v1238 = vpack.c.bf16 %v949, %v948
        %v1239 = vpack.c.bf16 %v951, %v950
        %v1240 = vpack.c.bf16 %v953, %v952
        %v1241 = vpack.c.bf16 %v955, %v954
        %v1242 = vpack.c.bf16 %v957, %v956
        %v1243 = vpack.c.bf16 %v959, %v958
        %v1244 = vpack.c.bf16 %v961, %v960
        %v1245 = vpack.c.bf16 %v963, %v962
        %v1246 = vpack.c.bf16 %v965, %v964
        %v1247 = vpack.c.bf16 %v967, %v966
        %v1248 = vpack.c.bf16 %v969, %v968
        %v1249 = vpack.c.bf16 %v971, %v970
        %v1250 = vpack.c.bf16 %v973, %v972
        %v1251 = vpack.c.bf16 %v975, %v974
        %v1252 = vpack.c.bf16 %v977, %v976
        %v1253 = vpack.c.bf16 %v979, %v978
        %v1254 = vpack.c.bf16 %v981, %v980
        %v1255 = vpack.c.bf16 %v983, %v982
        %v1256 = vpack.c.bf16 %v985, %v984
        %v1257 = vpack.c.bf16 %v987, %v986
        %v1258 = vpack.c.bf16 %v989, %v988
        %v1259 = vpack.c.bf16 %v991, %v990
        %v1260 = vpack.c.bf16 %v993, %v992
        %v1261 = vpack.c.bf16 %v995, %v994
        %v1262 = vpack.c.bf16 %v997, %v996
        %v1263 = vpack.c.bf16 %v999, %v998
        %v1264 = vpack.c.bf16 %v1001, %v1000
        %v1265 = vpack.c.bf16 %v1003, %v1002
        %v1266 = vpack.c.bf16 %v1005, %v1004
        %v1267 = vpack.c.bf16 %v1007, %v1006
        %v1268 = vpack.c.bf16 %v1009, %v1008
        %v1269 = vpack.c.bf16 %v1011, %v1010
        %1302 = vrot.lane.b32.xlu0 %v1238, 16
        %v1303 = vpop.permute.xlu0 %1302
        %1304 = vrot.lane.b32.xlu0 %v1239, 16
        %v1305 = vpop.permute.xlu0 %1304
        %1306 = vrot.lane.b32.xlu0 %v1240, 16
        %v1307 = vpop.permute.xlu0 %1306
        %1308 = vrot.lane.b32.xlu0 %v1241, 16
        %v1309 = vpop.permute.xlu0 %1308
        %1310 = vrot.lane.b32.xlu0 %v1242, 16
        %v1311 = vpop.permute.xlu0 %1310
        %1312 = vrot.lane.b32.xlu0 %v1243, 16
        %v1313 = vpop.permute.xlu0 %1312
        %1314 = vrot.lane.b32.xlu0 %v1244, 16
        %v1315 = vpop.permute.xlu0 %1314
        %1316 = vrot.lane.b32.xlu0 %v1245, 16
        %v1317 = vpop.permute.xlu0 %1316
        %1318 = vrot.lane.b32.xlu0 %v1246, 16
        %v1319 = vpop.permute.xlu0 %1318
        %1320 = vrot.lane.b32.xlu0 %v1247, 16
        %v1321 = vpop.permute.xlu0 %1320
        %1322 = vrot.lane.b32.xlu0 %v1248, 16
        %v1323 = vpop.permute.xlu0 %1322
        %1324 = vrot.lane.b32.xlu0 %v1249, 16
        %v1325 = vpop.permute.xlu0 %1324
        %1326 = vrot.lane.b32.xlu0 %v1250, 16
        %v1327 = vpop.permute.xlu0 %1326
        %1328 = vrot.lane.b32.xlu0 %v1251, 16
        %v1329 = vpop.permute.xlu0 %1328
        %1330 = vrot.lane.b32.xlu0 %v1252, 16
        %v1331 = vpop.permute.xlu0 %1330
        %1332 = vrot.lane.b32.xlu0 %v1253, 16
        %v1333 = vpop.permute.xlu0 %1332
        %1334 = vrot.lane.b32.xlu0 %v1254, 16
        %v1335 = vpop.permute.xlu0 %1334
        %1336 = vrot.lane.b32.xlu0 %v1255, 16
        %v1337 = vpop.permute.xlu0 %1336
        %1338 = vrot.lane.b32.xlu0 %v1256, 16
        %v1339 = vpop.permute.xlu0 %1338
        %1340 = vrot.lane.b32.xlu0 %v1257, 16
        %v1341 = vpop.permute.xlu0 %1340
        %1342 = vrot.lane.b32.xlu0 %v1258, 16
        %v1343 = vpop.permute.xlu0 %1342
        %1344 = vrot.lane.b32.xlu0 %v1259, 16
        %v1345 = vpop.permute.xlu0 %1344
        %1346 = vrot.lane.b32.xlu0 %v1260, 16
        %v1347 = vpop.permute.xlu0 %1346
        %1348 = vrot.lane.b32.xlu0 %v1261, 16
        %v1349 = vpop.permute.xlu0 %1348
        %1350 = vrot.lane.b32.xlu0 %v1262, 16
        %v1351 = vpop.permute.xlu0 %1350
        %1352 = vrot.lane.b32.xlu0 %v1263, 16
        %v1353 = vpop.permute.xlu0 %1352
        %1354 = vrot.lane.b32.xlu0 %v1264, 16
        %v1355 = vpop.permute.xlu0 %1354
        %1356 = vrot.lane.b32.xlu0 %v1265, 16
        %v1357 = vpop.permute.xlu0 %1356
        %1358 = vrot.lane.b32.xlu0 %v1266, 16
        %v1359 = vpop.permute.xlu0 %1358
        %1360 = vrot.lane.b32.xlu0 %v1267, 16
        %v1361 = vpop.permute.xlu0 %1360
        %1362 = vrot.lane.b32.xlu0 %v1268, 16
        %v1363 = vpop.permute.xlu0 %1362
        %1364 = vrot.lane.b32.xlu0 %v1269, 16
        %v1365 = vpop.permute.xlu0 %1364
        %v1366 = vrot.slane %v1303, 4
        %v1367 = vrot.slane %v1305, 4
        %v1368 = vrot.slane %v1307, 4
        %v1369 = vrot.slane %v1309, 4
        %v1370 = vrot.slane %v1311, 4
        %v1371 = vrot.slane %v1313, 4
        %v1372 = vrot.slane %v1315, 4
        %v1373 = vrot.slane %v1317, 4
        %v1374 = vrot.slane %v1319, 4
        %v1375 = vrot.slane %v1321, 4
        %v1376 = vrot.slane %v1323, 4
        %v1377 = vrot.slane %v1325, 4
        %v1378 = vrot.slane %v1327, 4
        %v1379 = vrot.slane %v1329, 4
        %v1380 = vrot.slane %v1331, 4
        %v1381 = vrot.slane %v1333, 4
        %v1382 = vrot.slane %v1335, 4
        %v1383 = vrot.slane %v1337, 4
        %v1384 = vrot.slane %v1339, 4
        %v1385 = vrot.slane %v1341, 4
        %v1386 = vrot.slane %v1343, 4
        %v1387 = vrot.slane %v1345, 4
        %v1388 = vrot.slane %v1347, 4
        %v1389 = vrot.slane %v1349, 4
        %v1390 = vrot.slane %v1351, 4
        %v1391 = vrot.slane %v1353, 4
        %v1392 = vrot.slane %v1355, 4
        %v1393 = vrot.slane %v1357, 4
        %v1394 = vrot.slane %v1359, 4
        %v1395 = vrot.slane %v1361, 4
        %v1396 = vrot.slane %v1363, 4
        %v1397 = vrot.slane %v1365, 4
        %vm1398 = vcmask 130048
        %v1399 = vsel %vm1398, %v1303, %v1366
        %v1400 = vsel %vm1398, %v1305, %v1367
        %v1401 = vsel %vm1398, %v1307, %v1368
        %v1402 = vsel %vm1398, %v1309, %v1369
        %v1403 = vsel %vm1398, %v1311, %v1370
        %v1404 = vsel %vm1398, %v1313, %v1371
        %v1405 = vsel %vm1398, %v1315, %v1372
        %v1406 = vsel %vm1398, %v1317, %v1373
        %v1407 = vsel %vm1398, %v1319, %v1374
        %v1408 = vsel %vm1398, %v1321, %v1375
        %v1409 = vsel %vm1398, %v1323, %v1376
        %v1410 = vsel %vm1398, %v1325, %v1377
        %v1411 = vsel %vm1398, %v1327, %v1378
        %v1412 = vsel %vm1398, %v1329, %v1379
        %v1413 = vsel %vm1398, %v1331, %v1380
        %v1414 = vsel %vm1398, %v1333, %v1381
        %v1415 = vsel %vm1398, %v1335, %v1382
        %v1416 = vsel %vm1398, %v1337, %v1383
        %v1417 = vsel %vm1398, %v1339, %v1384
        %v1418 = vsel %vm1398, %v1341, %v1385
        %v1419 = vsel %vm1398, %v1343, %v1386
        %v1420 = vsel %vm1398, %v1345, %v1387
        %v1421 = vsel %vm1398, %v1347, %v1388
        %v1422 = vsel %vm1398, %v1349, %v1389
        %v1423 = vsel %vm1398, %v1351, %v1390
        %v1424 = vsel %vm1398, %v1353, %v1391
        %v1425 = vsel %vm1398, %v1355, %v1392
        %v1426 = vsel %vm1398, %v1357, %v1393
        %v1427 = vsel %vm1398, %v1359, %v1394
        %v1428 = vsel %vm1398, %v1361, %v1395
        %v1429 = vsel %vm1398, %v1363, %v1396
        %v1430 = vsel %vm1398, %v1365, %v1397
        %1463 = vst.msk [vmem:[%s448] sm:$0xf] %vm1044, %v1399
        %1464 = vst.msk [vmem:[%s448 + $0x4] sm:$0xf] %vm1044, %v1400
        %1465 = vst.msk [vmem:[%s448 + $0x8] sm:$0xf] %vm1044, %v1401
        %1466 = vst.msk [vmem:[%s448 + $0xc] sm:$0xf] %vm1044, %v1402
        %1467 = vst.msk [vmem:[%s448 + $0x10] sm:$0xf] %vm1044, %v1403
        %1468 = vst.msk [vmem:[%s448 + $0x14] sm:$0xf] %vm1044, %v1404
        %1469 = vst.msk [vmem:[%s448 + $0x18] sm:$0xf] %vm1044, %v1405
        %1470 = vst.msk [vmem:[%s448 + $0x1c] sm:$0xf] %vm1044, %v1406
        %1471 = vst.msk [vmem:[%s448 + $0x20] sm:$0xf] %vm1044, %v1407
        %1472 = vst.msk [vmem:[%s448 + $0x24] sm:$0xf] %vm1044, %v1408
        %1473 = vst.msk [vmem:[%s448 + $0x28] sm:$0xf] %vm1044, %v1409
        %1474 = vst.msk [vmem:[%s448 + $0x2c] sm:$0xf] %vm1044, %v1410
        %1475 = vst.msk [vmem:[%s448 + $0x30] sm:$0xf] %vm1044, %v1411
        %1476 = vst.msk [vmem:[%s448 + $0x34] sm:$0xf] %vm1044, %v1412
        %1477 = vst.msk [vmem:[%s448 + $0x38] sm:$0xf] %vm1044, %v1413
        %1478 = vst.msk [vmem:[%s448 + $0x3c] sm:$0xf] %vm1044, %v1414
        %1479 = vst.msk [vmem:[%s448 + $0x40] sm:$0xf] %vm1044, %v1415
        %1480 = vst.msk [vmem:[%s448 + $0x44] sm:$0xf] %vm1044, %v1416
        %1481 = vst.msk [vmem:[%s448 + $0x48] sm:$0xf] %vm1044, %v1417
        %1482 = vst.msk [vmem:[%s448 + $0x4c] sm:$0xf] %vm1044, %v1418
        %1483 = vst.msk [vmem:[%s448 + $0x50] sm:$0xf] %vm1044, %v1419
        %1484 = vst.msk [vmem:[%s448 + $0x54] sm:$0xf] %vm1044, %v1420
        %1485 = vst.msk [vmem:[%s448 + $0x58] sm:$0xf] %vm1044, %v1421
        %1486 = vst.msk [vmem:[%s448 + $0x5c] sm:$0xf] %vm1044, %v1422
        %1487 = vst.msk [vmem:[%s448 + $0x60] sm:$0xf] %vm1044, %v1423
        %1488 = vst.msk [vmem:[%s448 + $0x64] sm:$0xf] %vm1044, %v1424
        %1489 = vst.msk [vmem:[%s448 + $0x68] sm:$0xf] %vm1044, %v1425
        %1490 = vst.msk [vmem:[%s448 + $0x6c] sm:$0xf] %vm1044, %v1426
        %1491 = vst.msk [vmem:[%s448 + $0x70] sm:$0xf] %vm1044, %v1427
        %1492 = vst.msk [vmem:[%s448 + $0x74] sm:$0xf] %vm1044, %v1428
        %1493 = vst.msk [vmem:[%s448 + $0x78] sm:$0xf] %vm1044, %v1429
        %1494 = vst.msk [vmem:[%s448 + $0x7c] sm:$0xf] %vm1044, %v1430
        %vm1495 = vcmask 125952
        %1496 = vst.msk [vmem:[#allocation2] sm:$0xf] %vm1495, 0
        %1497 = vst.msk [vmem:[#allocation2 + $0x4] sm:$0xf] %vm1495, 0
        %vm1498 = vcmask 122880
        %1499 = vst.msk [vmem:[#allocation2 + $0x8] sm:$0x1] %vm1498, 0
        %1500 = vst.msk [vmem:[#allocation2 + $0xc] sm:$0xf] %vm1495, 0
        %1501 = vst.msk [vmem:[#allocation2 + $0x10] sm:$0xf] %vm1495, 0
        %1502 = vst.msk [vmem:[#allocation2 + $0x14] sm:$0x1] %vm1498, 0
        %1503 = vst.msk [vmem:[#allocation2 + $0x18] sm:$0xf] %vm1495, 0
        %1504 = vst.msk [vmem:[#allocation2 + $0x1c] sm:$0xf] %vm1495, 0
        %1505 = vst.msk [vmem:[#allocation2 + $0x20] sm:$0x1] %vm1498, 0
        %1506 = vst.msk [vmem:[#allocation2 + $0x24] sm:$0xf] %vm1495, 0
        %1507 = vst.msk [vmem:[#allocation2 + $0x28] sm:$0xf] %vm1495, 0
        %1508 = vst.msk [vmem:[#allocation2 + $0x2c] sm:$0x1] %vm1498, 0
        %1509 = vst.msk [vmem:[#allocation2 + $0x30] sm:$0xf] %vm1495, 0
        %1510 = vst.msk [vmem:[#allocation2 + $0x34] sm:$0xf] %vm1495, 0
        %1511 = vst.msk [vmem:[#allocation2 + $0x38] sm:$0x1] %vm1498, 0
        %1512 = vst.msk [vmem:[#allocation2 + $0x3c] sm:$0xf] %vm1495, 0
        %1513 = vst.msk [vmem:[#allocation2 + $0x40] sm:$0xf] %vm1495, 0
        %1514 = vst.msk [vmem:[#allocation2 + $0x44] sm:$0x1] %vm1498, 0
        %1515 = vst.msk [vmem:[#allocation2 + $0x48] sm:$0xf] %vm1495, 0
        %1516 = vst.msk [vmem:[#allocation2 + $0x4c] sm:$0xf] %vm1495, 0
        %1517 = vst.msk [vmem:[#allocation2 + $0x50] sm:$0x1] %vm1498, 0
        %1518 = vst.msk [vmem:[#allocation2 + $0x54] sm:$0xf] %vm1495, 0
        %1519 = vst.msk [vmem:[#allocation2 + $0x58] sm:$0xf] %vm1495, 0
        %1520 = vst.msk [vmem:[#allocation2 + $0x5c] sm:$0x1] %vm1498, 0
        %1521 = vst.msk [vmem:[#allocation2 + $0x60] sm:$0xf] %vm1495, 0
        %1522 = vst.msk [vmem:[#allocation2 + $0x64] sm:$0xf] %vm1495, 0
        %1523 = vst.msk [vmem:[#allocation2 + $0x68] sm:$0x1] %vm1498, 0
        %1524 = vst.msk [vmem:[#allocation2 + $0x6c] sm:$0xf] %vm1495, 0
        %1525 = vst.msk [vmem:[#allocation2 + $0x70] sm:$0xf] %vm1495, 0
        %1526 = vst.msk [vmem:[#allocation2 + $0x74] sm:$0x1] %vm1498, 0
        %1527 = vst.msk [vmem:[#allocation2 + $0x78] sm:$0xf] %vm1495, 0
        %1528 = vst.msk [vmem:[#allocation2 + $0x7c] sm:$0xf] %vm1495, 0
        %1529 = vst.msk [vmem:[#allocation2 + $0x80] sm:$0x1] %vm1498, 0
        %1530 = vst.msk [vmem:[#allocation2 + $0x84] sm:$0xf] %vm1495, 0
        %1531 = vst.msk [vmem:[#allocation2 + $0x88] sm:$0xf] %vm1495, 0
        %1532 = vst.msk [vmem:[#allocation2 + $0x8c] sm:$0x1] %vm1498, 0
        %1533 = vst.msk [vmem:[#allocation2 + $0x90] sm:$0xf] %vm1495, 0
        %1534 = vst.msk [vmem:[#allocation2 + $0x94] sm:$0xf] %vm1495, 0
        %1535 = vst.msk [vmem:[#allocation2 + $0x98] sm:$0x1] %vm1498, 0
        %1536 = vst.msk [vmem:[#allocation2 + $0x9c] sm:$0xf] %vm1495, 0
        %1537 = vst.msk [vmem:[#allocation2 + $0xa0] sm:$0xf] %vm1495, 0
        %1538 = vst.msk [vmem:[#allocation2 + $0xa4] sm:$0x1] %vm1498, 0
        %1539 = vst.msk [vmem:[#allocation2 + $0xa8] sm:$0xf] %vm1495, 0
        %1540 = vst.msk [vmem:[#allocation2 + $0xac] sm:$0xf] %vm1495, 0
        %1541 = vst.msk [vmem:[#allocation2 + $0xb0] sm:$0x1] %vm1498, 0
        %1542 = vst.msk [vmem:[#allocation2 + $0xb4] sm:$0xf] %vm1495, 0
        %1543 = vst.msk [vmem:[#allocation2 + $0xb8] sm:$0xf] %vm1495, 0
        %1544 = vst.msk [vmem:[#allocation2 + $0xbc] sm:$0x1] %vm1498, 0
        %1545 = vst.msk [vmem:[#allocation2 + $0xc0] sm:$0xf] %vm1495, 0
        %1546 = vst.msk [vmem:[#allocation2 + $0xc4] sm:$0xf] %vm1495, 0
        %1547 = vst.msk [vmem:[#allocation2 + $0xc8] sm:$0x1] %vm1498, 0
        %1548 = vst.msk [vmem:[#allocation2 + $0xcc] sm:$0xf] %vm1495, 0
        %1549 = vst.msk [vmem:[#allocation2 + $0xd0] sm:$0xf] %vm1495, 0
        %1550 = vst.msk [vmem:[#allocation2 + $0xd4] sm:$0x1] %vm1498, 0
        %vm1551 = vsmask.f32 256
        %vm1552 = vsmask.f32 4368
        %vm1553 = vmor %vm1551, %vm1552
        %v1555 = vshrl.u32 %v457, 16
        %v1557 = vrot.slane %v1555, 7
        %v1558 = vshll.u32 %v457, 16
        %v1560 = vor.u32 %v1557, %v1558
        %v1561 = vrot.slane %v1557, 4
        %v1563 = vshrl.u32 %v458, 16
        %v1565 = vrot.slane %v1563, 7
        %v1566 = vshll.u32 %v458, 16
        %v1568 = vor.u32 %v1565, %v1566
        %v1569 = vsel %vm1553, %v1561, %v1568
        %v1570 = vrot.slane %v1565, 4
        %v1572 = vshrl.u32 %v459, 16
        %v1574 = vrot.slane %v1572, 7
        %v1575 = vshll.u32 %v459, 16
        %v1577 = vor.u32 %v1574, %v1575
        %v1578 = vrot.slane %v1574, 4
        %v1580 = vshrl.u32 %v460, 16
        %v1582 = vrot.slane %v1580, 7
        %v1583 = vshll.u32 %v460, 16
        %v1585 = vor.u32 %v1582, %v1583
        %v1586 = vsel %vm1553, %v1578, %v1585
        %v1587 = vrot.slane %v1582, 4
        %v1589 = vshrl.u32 %v461, 16
        %v1591 = vrot.slane %v1589, 7
        %v1592 = vshll.u32 %v461, 16
        %v1594 = vor.u32 %v1591, %v1592
        %v1595 = vrot.slane %v1591, 4
        %v1597 = vshrl.u32 %v462, 16
        %v1599 = vrot.slane %v1597, 7
        %v1600 = vshll.u32 %v462, 16
        %v1602 = vor.u32 %v1599, %v1600
        %v1603 = vsel %vm1553, %v1595, %v1602
        %v1604 = vrot.slane %v1599, 4
        %v1606 = vshrl.u32 %v463, 16
        %v1608 = vrot.slane %v1606, 7
        %v1609 = vshll.u32 %v463, 16
        %v1611 = vor.u32 %v1608, %v1609
        %v1612 = vrot.slane %v1608, 4
        %v1614 = vshrl.u32 %v464, 16
        %v1616 = vrot.slane %v1614, 7
        %v1617 = vshll.u32 %v464, 16
        %v1619 = vor.u32 %v1616, %v1617
        %v1620 = vsel %vm1553, %v1612, %v1619
        %v1621 = vrot.slane %v1616, 4
        %v1623 = vshrl.u32 %v465, 16
        %v1625 = vrot.slane %v1623, 7
        %v1626 = vshll.u32 %v465, 16
        %v1628 = vor.u32 %v1625, %v1626
        %v1629 = vrot.slane %v1625, 4
        %v1631 = vshrl.u32 %v466, 16
        %v1633 = vrot.slane %v1631, 7
        %v1634 = vshll.u32 %v466, 16
        %v1636 = vor.u32 %v1633, %v1634
        %v1637 = vsel %vm1553, %v1629, %v1636
        %v1638 = vrot.slane %v1633, 4
        %v1640 = vshrl.u32 %v467, 16
        %v1642 = vrot.slane %v1640, 7
        %v1643 = vshll.u32 %v467, 16
        %v1645 = vor.u32 %v1642, %v1643
        %v1646 = vrot.slane %v1642, 4
        %v1648 = vshrl.u32 %v468, 16
        %v1650 = vrot.slane %v1648, 7
        %v1651 = vshll.u32 %v468, 16
        %v1653 = vor.u32 %v1650, %v1651
        %v1654 = vsel %vm1553, %v1646, %v1653
        %v1655 = vrot.slane %v1650, 4
        %v1657 = vshrl.u32 %v469, 16
        %v1659 = vrot.slane %v1657, 7
        %v1660 = vshll.u32 %v469, 16
        %v1662 = vor.u32 %v1659, %v1660
        %v1663 = vrot.slane %v1659, 4
        %v1665 = vshrl.u32 %v470, 16
        %v1667 = vrot.slane %v1665, 7
        %v1668 = vshll.u32 %v470, 16
        %v1670 = vor.u32 %v1667, %v1668
        %v1671 = vsel %vm1553, %v1663, %v1670
        %v1672 = vrot.slane %v1667, 4
        %v1674 = vshrl.u32 %v471, 16
        %v1676 = vrot.slane %v1674, 7
        %v1677 = vshll.u32 %v471, 16
        %v1679 = vor.u32 %v1676, %v1677
        %v1680 = vrot.slane %v1676, 4
        %v1682 = vshrl.u32 %v472, 16
        %v1684 = vrot.slane %v1682, 7
        %v1685 = vshll.u32 %v472, 16
        %v1687 = vor.u32 %v1684, %v1685
        %v1688 = vsel %vm1553, %v1680, %v1687
        %v1689 = vrot.slane %v1684, 4
        %v1691 = vshrl.u32 %v473, 16
        %v1693 = vrot.slane %v1691, 7
        %v1694 = vshll.u32 %v473, 16
        %v1696 = vor.u32 %v1693, %v1694
        %v1697 = vrot.slane %v1693, 4
        %v1699 = vshrl.u32 %v474, 16
        %v1701 = vrot.slane %v1699, 7
        %v1702 = vshll.u32 %v474, 16
        %v1704 = vor.u32 %v1701, %v1702
        %v1705 = vsel %vm1553, %v1697, %v1704
        %v1706 = vrot.slane %v1701, 4
        %v1708 = vshrl.u32 %v475, 16
        %v1710 = vrot.slane %v1708, 7
        %v1711 = vshll.u32 %v475, 16
        %v1713 = vor.u32 %v1710, %v1711
        %v1714 = vrot.slane %v1710, 4
        %v1716 = vshrl.u32 %v476, 16
        %v1718 = vrot.slane %v1716, 7
        %v1719 = vshll.u32 %v476, 16
        %v1721 = vor.u32 %v1718, %v1719
        %v1722 = vsel %vm1553, %v1714, %v1721
        %v1723 = vrot.slane %v1718, 4
        %v1725 = vshrl.u32 %v477, 16
        %v1727 = vrot.slane %v1725, 7
        %v1728 = vshll.u32 %v477, 16
        %v1730 = vor.u32 %v1727, %v1728
        %v1731 = vrot.slane %v1727, 4
        %v1733 = vshrl.u32 %v478, 16
        %v1735 = vrot.slane %v1733, 7
        %v1736 = vshll.u32 %v478, 16
        %v1738 = vor.u32 %v1735, %v1736
        %v1739 = vsel %vm1553, %v1731, %v1738
        %v1740 = vrot.slane %v1735, 4
        %v1742 = vshrl.u32 %v479, 16
        %v1744 = vrot.slane %v1742, 7
        %v1745 = vshll.u32 %v479, 16
        %v1747 = vor.u32 %v1744, %v1745
        %v1748 = vrot.slane %v1744, 4
        %v1750 = vshrl.u32 %v480, 16
        %v1752 = vrot.slane %v1750, 7
        %v1753 = vshll.u32 %v480, 16
        %v1755 = vor.u32 %v1752, %v1753
        %v1756 = vsel %vm1553, %v1748, %v1755
        %v1757 = vrot.slane %v1752, 4
        %v1759 = vshrl.u32 %v481, 16
        %v1761 = vrot.slane %v1759, 7
        %v1762 = vshll.u32 %v481, 16
        %v1764 = vor.u32 %v1761, %v1762
        %v1765 = vrot.slane %v1761, 4
        %v1767 = vshrl.u32 %v482, 16
        %v1769 = vrot.slane %v1767, 7
        %v1770 = vshll.u32 %v482, 16
        %v1772 = vor.u32 %v1769, %v1770
        %v1773 = vsel %vm1553, %v1765, %v1772
        %v1774 = vrot.slane %v1769, 4
        %v1776 = vshrl.u32 %v483, 16
        %v1778 = vrot.slane %v1776, 7
        %v1779 = vshll.u32 %v483, 16
        %v1781 = vor.u32 %v1778, %v1779
        %v1782 = vrot.slane %v1778, 4
        %v1784 = vshrl.u32 %v484, 16
        %v1786 = vrot.slane %v1784, 7
        %v1787 = vshll.u32 %v484, 16
        %v1789 = vor.u32 %v1786, %v1787
        %v1790 = vsel %vm1553, %v1782, %v1789
        %v1791 = vrot.slane %v1786, 4
        %v1793 = vshrl.u32 %v485, 16
        %v1795 = vrot.slane %v1793, 7
        %v1796 = vshll.u32 %v485, 16
        %v1798 = vor.u32 %v1795, %v1796
        %v1799 = vrot.slane %v1795, 4
        %v1801 = vshrl.u32 %v486, 16
        %v1803 = vrot.slane %v1801, 7
        %v1804 = vshll.u32 %v486, 16
        %v1806 = vor.u32 %v1803, %v1804
        %v1807 = vsel %vm1553, %v1799, %v1806
        %v1808 = vrot.slane %v1803, 4
        %v1810 = vshrl.u32 %v487, 16
        %v1812 = vrot.slane %v1810, 7
        %v1813 = vshll.u32 %v487, 16
        %v1815 = vor.u32 %v1812, %v1813
        %v1816 = vrot.slane %v1812, 4
        %v1818 = vshrl.u32 %v488, 16
        %v1820 = vrot.slane %v1818, 7
        %v1821 = vshll.u32 %v488, 16
        %v1823 = vor.u32 %v1820, %v1821
        %v1824 = vsel %vm1553, %v1816, %v1823
        %v1825 = vrot.slane %v1820, 4
        %s1874 = scalar_lea.vmem [#allocation2], 12
        %vm1875 = vcmask 125952
        %vm1876 = vsmask.f32 7938
        %vm1877 = vmand %vm1875, %vm1876
        %v1878 = vld [vmem:[%s1874] sm:$0xf]
        %v1879 = vsel %vm1877, %v1560, %v1878
        %1880 = vst [vmem:[%s1874] sm:$0xf] %v1879
        %1881 = vst.msk [vmem:[%s1874 + $0x4] sm:$0xf] %vm1495, %v1569
        %vm1882 = vcmask 122880
        %vm1883 = vmand %vm1882, %vm1551
        %v1884 = vld [vmem:[%s1874 + $0x8] sm:$0x1]
        %v1885 = vsel %vm1883, %v1570, %v1884
        %1886 = vst [vmem:[%s1874 + $0x8] sm:$0x1] %v1885
        %v1887 = vld [vmem:[%s1874 + $0xc] sm:$0xf]
        %v1888 = vsel %vm1877, %v1577, %v1887
        %1889 = vst [vmem:[%s1874 + $0xc] sm:$0xf] %v1888
        %1890 = vst.msk [vmem:[%s1874 + $0x10] sm:$0xf] %vm1495, %v1586
        %v1891 = vld [vmem:[%s1874 + $0x14] sm:$0x1]
        %v1892 = vsel %vm1883, %v1587, %v1891
        %1893 = vst [vmem:[%s1874 + $0x14] sm:$0x1] %v1892
        %v1894 = vld [vmem:[%s1874 + $0x18] sm:$0xf]
        %v1895 = vsel %vm1877, %v1594, %v1894
        %1896 = vst [vmem:[%s1874 + $0x18] sm:$0xf] %v1895
        %1897 = vst.msk [vmem:[%s1874 + $0x1c] sm:$0xf] %vm1495, %v1603
        %v1898 = vld [vmem:[%s1874 + $0x20] sm:$0x1]
        %v1899 = vsel %vm1883, %v1604, %v1898
        %1900 = vst [vmem:[%s1874 + $0x20] sm:$0x1] %v1899
        %v1901 = vld [vmem:[%s1874 + $0x24] sm:$0xf]
        %v1902 = vsel %vm1877, %v1611, %v1901
        %1903 = vst [vmem:[%s1874 + $0x24] sm:$0xf] %v1902
        %1904 = vst.msk [vmem:[%s1874 + $0x28] sm:$0xf] %vm1495, %v1620
        %v1905 = vld [vmem:[%s1874 + $0x2c] sm:$0x1]
        %v1906 = vsel %vm1883, %v1621, %v1905
        %1907 = vst [vmem:[%s1874 + $0x2c] sm:$0x1] %v1906
        %v1908 = vld [vmem:[%s1874 + $0x30] sm:$0xf]
        %v1909 = vsel %vm1877, %v1628, %v1908
        %1910 = vst [vmem:[%s1874 + $0x30] sm:$0xf] %v1909
        %1911 = vst.msk [vmem:[%s1874 + $0x34] sm:$0xf] %vm1495, %v1637
        %v1912 = vld [vmem:[%s1874 + $0x38] sm:$0x1]
        %v1913 = vsel %vm1883, %v1638, %v1912
        %1914 = vst [vmem:[%s1874 + $0x38] sm:$0x1] %v1913
        %v1915 = vld [vmem:[%s1874 + $0x3c] sm:$0xf]
        %v1916 = vsel %vm1877, %v1645, %v1915
        %1917 = vst [vmem:[%s1874 + $0x3c] sm:$0xf] %v1916
        %1918 = vst.msk [vmem:[%s1874 + $0x40] sm:$0xf] %vm1495, %v1654
        %v1919 = vld [vmem:[%s1874 + $0x44] sm:$0x1]
        %v1920 = vsel %vm1883, %v1655, %v1919
        %1921 = vst [vmem:[%s1874 + $0x44] sm:$0x1] %v1920
        %v1922 = vld [vmem:[%s1874 + $0x48] sm:$0xf]
        %v1923 = vsel %vm1877, %v1662, %v1922
        %1924 = vst [vmem:[%s1874 + $0x48] sm:$0xf] %v1923
        %1925 = vst.msk [vmem:[%s1874 + $0x4c] sm:$0xf] %vm1495, %v1671
        %v1926 = vld [vmem:[%s1874 + $0x50] sm:$0x1]
        %v1927 = vsel %vm1883, %v1672, %v1926
        %1928 = vst [vmem:[%s1874 + $0x50] sm:$0x1] %v1927
        %v1929 = vld [vmem:[%s1874 + $0x54] sm:$0xf]
        %v1930 = vsel %vm1877, %v1679, %v1929
        %1931 = vst [vmem:[%s1874 + $0x54] sm:$0xf] %v1930
        %1932 = vst.msk [vmem:[%s1874 + $0x58] sm:$0xf] %vm1495, %v1688
        %v1933 = vld [vmem:[%s1874 + $0x5c] sm:$0x1]
        %v1934 = vsel %vm1883, %v1689, %v1933
        %1935 = vst [vmem:[%s1874 + $0x5c] sm:$0x1] %v1934
        %v1936 = vld [vmem:[%s1874 + $0x60] sm:$0xf]
        %v1937 = vsel %vm1877, %v1696, %v1936
        %1938 = vst [vmem:[%s1874 + $0x60] sm:$0xf] %v1937
        %1939 = vst.msk [vmem:[%s1874 + $0x64] sm:$0xf] %vm1495, %v1705
        %v1940 = vld [vmem:[%s1874 + $0x68] sm:$0x1]
        %v1941 = vsel %vm1883, %v1706, %v1940
        %1942 = vst [vmem:[%s1874 + $0x68] sm:$0x1] %v1941
        %v1943 = vld [vmem:[%s1874 + $0x6c] sm:$0xf]
        %v1944 = vsel %vm1877, %v1713, %v1943
        %1945 = vst [vmem:[%s1874 + $0x6c] sm:$0xf] %v1944
        %1946 = vst.msk [vmem:[%s1874 + $0x70] sm:$0xf] %vm1495, %v1722
        %v1947 = vld [vmem:[%s1874 + $0x74] sm:$0x1]
        %v1948 = vsel %vm1883, %v1723, %v1947
        %1949 = vst [vmem:[%s1874 + $0x74] sm:$0x1] %v1948
        %v1950 = vld [vmem:[%s1874 + $0x78] sm:$0xf]
        %v1951 = vsel %vm1877, %v1730, %v1950
        %1952 = vst [vmem:[%s1874 + $0x78] sm:$0xf] %v1951
        %1953 = vst.msk [vmem:[%s1874 + $0x7c] sm:$0xf] %vm1495, %v1739
        %v1954 = vld [vmem:[%s1874 + $0x80] sm:$0x1]
        %v1955 = vsel %vm1883, %v1740, %v1954
        %1956 = vst [vmem:[%s1874 + $0x80] sm:$0x1] %v1955
        %v1957 = vld [vmem:[%s1874 + $0x84] sm:$0xf]
        %v1958 = vsel %vm1877, %v1747, %v1957
        %1959 = vst [vmem:[%s1874 + $0x84] sm:$0xf] %v1958
        %1960 = vst.msk [vmem:[%s1874 + $0x88] sm:$0xf] %vm1495, %v1756
        %v1961 = vld [vmem:[%s1874 + $0x8c] sm:$0x1]
        %v1962 = vsel %vm1883, %v1757, %v1961
        %1963 = vst [vmem:[%s1874 + $0x8c] sm:$0x1] %v1962
        %v1964 = vld [vmem:[%s1874 + $0x90] sm:$0xf]
        %v1965 = vsel %vm1877, %v1764, %v1964
        %1966 = vst [vmem:[%s1874 + $0x90] sm:$0xf] %v1965
        %1967 = vst.msk [vmem:[%s1874 + $0x94] sm:$0xf] %vm1495, %v1773
        %v1968 = vld [vmem:[%s1874 + $0x98] sm:$0x1]
        %v1969 = vsel %vm1883, %v1774, %v1968
        %1970 = vst [vmem:[%s1874 + $0x98] sm:$0x1] %v1969
        %v1971 = vld [vmem:[%s1874 + $0x9c] sm:$0xf]
        %v1972 = vsel %vm1877, %v1781, %v1971
        %1973 = vst [vmem:[%s1874 + $0x9c] sm:$0xf] %v1972
        %1974 = vst.msk [vmem:[%s1874 + $0xa0] sm:$0xf] %vm1495, %v1790
        %v1975 = vld [vmem:[%s1874 + $0xa4] sm:$0x1]
        %v1976 = vsel %vm1883, %v1791, %v1975
        %1977 = vst [vmem:[%s1874 + $0xa4] sm:$0x1] %v1976
        %v1978 = vld [vmem:[%s1874 + $0xa8] sm:$0xf]
        %v1979 = vsel %vm1877, %v1798, %v1978
        %1980 = vst [vmem:[%s1874 + $0xa8] sm:$0xf] %v1979
        %1981 = vst.msk [vmem:[%s1874 + $0xac] sm:$0xf] %vm1495, %v1807
        %v1982 = vld [vmem:[%s1874 + $0xb0] sm:$0x1]
        %v1983 = vsel %vm1883, %v1808, %v1982
        %1984 = vst [vmem:[%s1874 + $0xb0] sm:$0x1] %v1983
        %v1985 = vld [vmem:[%s1874 + $0xb4] sm:$0xf]
        %v1986 = vsel %vm1877, %v1815, %v1985
        %1987 = vst [vmem:[%s1874 + $0xb4] sm:$0xf] %v1986
        %1988 = vst.msk [vmem:[%s1874 + $0xb8] sm:$0xf] %vm1495, %v1824
        %v1989 = vld [vmem:[%s1874 + $0xbc] sm:$0x1]
        %v1990 = vsel %vm1883, %v1825, %v1989
        %1991 = vst [vmem:[%s1874 + $0xbc] sm:$0x1] %v1990
        %v1992 = vld [vmem:[#allocation2] sm:$0xf]
        %v1993 = vld [vmem:[#allocation2 + $0x4] sm:$0xf]
        %v1994 = vld [vmem:[#allocation2 + $0xc] sm:$0xf]
        %v1995 = vld [vmem:[#allocation2 + $0x10] sm:$0xf]
        %v1996 = vld [vmem:[#allocation2 + $0x18] sm:$0xf]
        %v1997 = vld [vmem:[#allocation2 + $0x1c] sm:$0xf]
        %v1998 = vld [vmem:[#allocation2 + $0x24] sm:$0xf]
        %v1999 = vld [vmem:[#allocation2 + $0x28] sm:$0xf]
        %v2000 = vld [vmem:[#allocation2 + $0x30] sm:$0xf]
        %v2001 = vld [vmem:[#allocation2 + $0x34] sm:$0xf]
        %v2002 = vld [vmem:[#allocation2 + $0x3c] sm:$0xf]
        %v2003 = vld [vmem:[#allocation2 + $0x40] sm:$0xf]
        %v2004 = vld [vmem:[#allocation2 + $0x48] sm:$0xf]
        %v2005 = vld [vmem:[#allocation2 + $0x4c] sm:$0xf]
        %v2006 = vld [vmem:[#allocation2 + $0x54] sm:$0xf]
        %v2007 = vld [vmem:[#allocation2 + $0x58] sm:$0xf]
        %v2008 = vld [vmem:[#allocation2 + $0x60] sm:$0xf]
        %v2009 = vld [vmem:[#allocation2 + $0x64] sm:$0xf]
        %v2010 = vld [vmem:[#allocation2 + $0x6c] sm:$0xf]
        %v2011 = vld [vmem:[#allocation2 + $0x70] sm:$0xf]
        %v2012 = vld [vmem:[#allocation2 + $0x78] sm:$0xf]
        %v2013 = vld [vmem:[#allocation2 + $0x7c] sm:$0xf]
        %v2014 = vld [vmem:[#allocation2 + $0x84] sm:$0xf]
        %v2015 = vld [vmem:[#allocation2 + $0x88] sm:$0xf]
        %v2016 = vld [vmem:[#allocation2 + $0x90] sm:$0xf]
        %v2017 = vld [vmem:[#allocation2 + $0x94] sm:$0xf]
        %v2018 = vld [vmem:[#allocation2 + $0x9c] sm:$0xf]
        %v2019 = vld [vmem:[#allocation2 + $0xa0] sm:$0xf]
        %v2020 = vld [vmem:[#allocation2 + $0xa8] sm:$0xf]
        %v2021 = vld [vmem:[#allocation2 + $0xac] sm:$0xf]
        %v2022 = vld [vmem:[#allocation2 + $0xb4] sm:$0xf]
        %v2023 = vld [vmem:[#allocation2 + $0xb8] sm:$0xf]
        %v2024 = vunpack.c.l.bf16 %v1992
        %v2025 = vunpack.c.l.bf16 %v1993
        %v2026 = vunpack.c.l.bf16 %v1994
        %v2027 = vunpack.c.l.bf16 %v1995
        %v2028 = vunpack.c.l.bf16 %v1996
        %v2029 = vunpack.c.l.bf16 %v1997
        %v2030 = vunpack.c.l.bf16 %v1998
        %v2031 = vunpack.c.l.bf16 %v1999
        %v2032 = vunpack.c.l.bf16 %v2000
        %v2033 = vunpack.c.l.bf16 %v2001
        %v2034 = vunpack.c.l.bf16 %v2002
        %v2035 = vunpack.c.l.bf16 %v2003
        %v2036 = vunpack.c.l.bf16 %v2004
        %v2037 = vunpack.c.l.bf16 %v2005
        %v2038 = vunpack.c.l.bf16 %v2006
        %v2039 = vunpack.c.l.bf16 %v2007
        %v2040 = vunpack.c.l.bf16 %v2008
        %v2041 = vunpack.c.l.bf16 %v2009
        %v2042 = vunpack.c.l.bf16 %v2010
        %v2043 = vunpack.c.l.bf16 %v2011
        %v2044 = vunpack.c.l.bf16 %v2012
        %v2045 = vunpack.c.l.bf16 %v2013
        %v2046 = vunpack.c.l.bf16 %v2014
        %v2047 = vunpack.c.l.bf16 %v2015
        %v2048 = vunpack.c.l.bf16 %v2016
        %v2049 = vunpack.c.l.bf16 %v2017
        %v2050 = vunpack.c.l.bf16 %v2018
        %v2051 = vunpack.c.l.bf16 %v2019
        %v2052 = vunpack.c.l.bf16 %v2020
        %v2053 = vunpack.c.l.bf16 %v2021
        %v2054 = vunpack.c.l.bf16 %v2022
        %v2055 = vunpack.c.l.bf16 %v2023
        %v2056 = vadd.f32 %v2024, 0.0
        %v2057 = vadd.f32 %v2025, 0.0
        %v2058 = vadd.f32 %v2026, 0.0
        %v2059 = vadd.f32 %v2027, 0.0
        %v2060 = vadd.f32 %v2028, 0.0
        %v2061 = vadd.f32 %v2029, 0.0
        %v2062 = vadd.f32 %v2030, 0.0
        %v2063 = vadd.f32 %v2031, 0.0
        %v2064 = vadd.f32 %v2032, 0.0
        %v2065 = vadd.f32 %v2033, 0.0
        %v2066 = vadd.f32 %v2034, 0.0
        %v2067 = vadd.f32 %v2035, 0.0
        %v2068 = vadd.f32 %v2036, 0.0
        %v2069 = vadd.f32 %v2037, 0.0
        %v2070 = vadd.f32 %v2038, 0.0
        %v2071 = vadd.f32 %v2039, 0.0
        %v2072 = vadd.f32 %v2040, 0.0
        %v2073 = vadd.f32 %v2041, 0.0
        %v2074 = vadd.f32 %v2042, 0.0
        %v2075 = vadd.f32 %v2043, 0.0
        %v2076 = vadd.f32 %v2044, 0.0
        %v2077 = vadd.f32 %v2045, 0.0
        %v2078 = vadd.f32 %v2046, 0.0
        %v2079 = vadd.f32 %v2047, 0.0
        %v2080 = vadd.f32 %v2048, 0.0
        %v2081 = vadd.f32 %v2049, 0.0
        %v2082 = vadd.f32 %v2050, 0.0
        %v2083 = vadd.f32 %v2051, 0.0
        %v2084 = vadd.f32 %v2052, 0.0
        %v2085 = vadd.f32 %v2053, 0.0
        %v2086 = vadd.f32 %v2054, 0.0
        %v2087 = vadd.f32 %v2055, 0.0
        %v2088 = vld [vmem:[#allocation2 + $0x8] sm:$0x1]
        %v2089 = vld [vmem:[#allocation2 + $0x14] sm:$0x1]
        %v2090 = vld [vmem:[#allocation2 + $0x20] sm:$0x1]
        %v2091 = vld [vmem:[#allocation2 + $0x2c] sm:$0x1]
        %v2092 = vld [vmem:[#allocation2 + $0x38] sm:$0x1]
        %v2093 = vld [vmem:[#allocation2 + $0x44] sm:$0x1]
        %v2094 = vld [vmem:[#allocation2 + $0x50] sm:$0x1]
        %v2095 = vld [vmem:[#allocation2 + $0x5c] sm:$0x1]
        %v2096 = vld [vmem:[#allocation2 + $0x68] sm:$0x1]
        %v2097 = vld [vmem:[#allocation2 + $0x74] sm:$0x1]
        %v2098 = vld [vmem:[#allocation2 + $0x80] sm:$0x1]
        %v2099 = vld [vmem:[#allocation2 + $0x8c] sm:$0x1]
        %v2100 = vld [vmem:[#allocation2 + $0x98] sm:$0x1]
        %v2101 = vld [vmem:[#allocation2 + $0xa4] sm:$0x1]
        %v2102 = vld [vmem:[#allocation2 + $0xb0] sm:$0x1]
        %v2103 = vld [vmem:[#allocation2 + $0xbc] sm:$0x1]
        %v2104 = vunpack.c.l.bf16 %v2088
        %v2105 = vunpack.c.l.bf16 %v2089
        %v2106 = vunpack.c.l.bf16 %v2090
        %v2107 = vunpack.c.l.bf16 %v2091
        %v2108 = vunpack.c.l.bf16 %v2092
        %v2109 = vunpack.c.l.bf16 %v2093
        %v2110 = vunpack.c.l.bf16 %v2094
        %v2111 = vunpack.c.l.bf16 %v2095
        %v2112 = vunpack.c.l.bf16 %v2096
        %v2113 = vunpack.c.l.bf16 %v2097
        %v2114 = vunpack.c.l.bf16 %v2098
        %v2115 = vunpack.c.l.bf16 %v2099
        %v2116 = vunpack.c.l.bf16 %v2100
        %v2117 = vunpack.c.l.bf16 %v2101
        %v2118 = vunpack.c.l.bf16 %v2102
        %v2119 = vunpack.c.l.bf16 %v2103
        %vm2168 = vcmask 1046528
        %v2169 = vrot.slane %v2024, 1
        %v2170 = vrot.slane %v2025, 1
        %v2171 = vsel %vm2168, %v2169, %v2170
        %v2172 = vrot.slane %v2104, 1
        %v2173 = vsel %vm2168, %v2170, %v2172
        %v2174 = vrot.slane %v2026, 1
        %v2175 = vrot.slane %v2027, 1
        %v2176 = vsel %vm2168, %v2174, %v2175
        %v2177 = vrot.slane %v2105, 1
        %v2178 = vsel %vm2168, %v2175, %v2177
        %v2179 = vrot.slane %v2028, 1
        %v2180 = vrot.slane %v2029, 1
        %v2181 = vsel %vm2168, %v2179, %v2180
        %v2182 = vrot.slane %v2106, 1
        %v2183 = vsel %vm2168, %v2180, %v2182
        %v2184 = vrot.slane %v2030, 1
        %v2185 = vrot.slane %v2031, 1
        %v2186 = vsel %vm2168, %v2184, %v2185
        %v2187 = vrot.slane %v2107, 1
        %v2188 = vsel %vm2168, %v2185, %v2187
        %v2189 = vrot.slane %v2032, 1
        %v2190 = vrot.slane %v2033, 1
        %v2191 = vsel %vm2168, %v2189, %v2190
        %v2192 = vrot.slane %v2108, 1
        %v2193 = vsel %vm2168, %v2190, %v2192
        %v2194 = vrot.slane %v2034, 1
        %v2195 = vrot.slane %v2035, 1
        %v2196 = vsel %vm2168, %v2194, %v2195
        %v2197 = vrot.slane %v2109, 1
        %v2198 = vsel %vm2168, %v2195, %v2197
        %v2199 = vrot.slane %v2036, 1
        %v2200 = vrot.slane %v2037, 1
        %v2201 = vsel %vm2168, %v2199, %v2200
        %v2202 = vrot.slane %v2110, 1
        %v2203 = vsel %vm2168, %v2200, %v2202
        %v2204 = vrot.slane %v2038, 1
        %v2205 = vrot.slane %v2039, 1
        %v2206 = vsel %vm2168, %v2204, %v2205
        %v2207 = vrot.slane %v2111, 1
        %v2208 = vsel %vm2168, %v2205, %v2207
        %v2209 = vrot.slane %v2040, 1
        %v2210 = vrot.slane %v2041, 1
        %v2211 = vsel %vm2168, %v2209, %v2210
        %v2212 = vrot.slane %v2112, 1
        %v2213 = vsel %vm2168, %v2210, %v2212
        %v2214 = vrot.slane %v2042, 1
        %v2215 = vrot.slane %v2043, 1
        %v2216 = vsel %vm2168, %v2214, %v2215
        %v2217 = vrot.slane %v2113, 1
        %v2218 = vsel %vm2168, %v2215, %v2217
        %v2219 = vrot.slane %v2044, 1
        %v2220 = vrot.slane %v2045, 1
        %v2221 = vsel %vm2168, %v2219, %v2220
        %v2222 = vrot.slane %v2114, 1
        %v2223 = vsel %vm2168, %v2220, %v2222
        %v2224 = vrot.slane %v2046, 1
        %v2225 = vrot.slane %v2047, 1
        %v2226 = vsel %vm2168, %v2224, %v2225
        %v2227 = vrot.slane %v2115, 1
        %v2228 = vsel %vm2168, %v2225, %v2227
        %v2229 = vrot.slane %v2048, 1
        %v2230 = vrot.slane %v2049, 1
        %v2231 = vsel %vm2168, %v2229, %v2230
        %v2232 = vrot.slane %v2116, 1
        %v2233 = vsel %vm2168, %v2230, %v2232
        %v2234 = vrot.slane %v2050, 1
        %v2235 = vrot.slane %v2051, 1
        %v2236 = vsel %vm2168, %v2234, %v2235
        %v2237 = vrot.slane %v2117, 1
        %v2238 = vsel %vm2168, %v2235, %v2237
        %v2239 = vrot.slane %v2052, 1
        %v2240 = vrot.slane %v2053, 1
        %v2241 = vsel %vm2168, %v2239, %v2240
        %v2242 = vrot.slane %v2118, 1
        %v2243 = vsel %vm2168, %v2240, %v2242
        %v2244 = vrot.slane %v2054, 1
        %v2245 = vrot.slane %v2055, 1
        %v2246 = vsel %vm2168, %v2244, %v2245
        %v2247 = vrot.slane %v2119, 1
        %v2248 = vsel %vm2168, %v2245, %v2247
        %v2281 = vadd.f32 %v2056, %v2171
        %v2282 = vadd.f32 %v2057, %v2173
        %v2283 = vadd.f32 %v2058, %v2176
        %v2284 = vadd.f32 %v2059, %v2178
        %v2285 = vadd.f32 %v2060, %v2181
        %v2286 = vadd.f32 %v2061, %v2183
        %v2287 = vadd.f32 %v2062, %v2186
        %v2288 = vadd.f32 %v2063, %v2188
        %v2289 = vadd.f32 %v2064, %v2191
        %v2290 = vadd.f32 %v2065, %v2193
        %v2291 = vadd.f32 %v2066, %v2196
        %v2292 = vadd.f32 %v2067, %v2198
        %v2293 = vadd.f32 %v2068, %v2201
        %v2294 = vadd.f32 %v2069, %v2203
        %v2295 = vadd.f32 %v2070, %v2206
        %v2296 = vadd.f32 %v2071, %v2208
        %v2297 = vadd.f32 %v2072, %v2211
        %v2298 = vadd.f32 %v2073, %v2213
        %v2299 = vadd.f32 %v2074, %v2216
        %v2300 = vadd.f32 %v2075, %v2218
        %v2301 = vadd.f32 %v2076, %v2221
        %v2302 = vadd.f32 %v2077, %v2223
        %v2303 = vadd.f32 %v2078, %v2226
        %v2304 = vadd.f32 %v2079, %v2228
        %v2305 = vadd.f32 %v2080, %v2231
        %v2306 = vadd.f32 %v2081, %v2233
        %v2307 = vadd.f32 %v2082, %v2236
        %v2308 = vadd.f32 %v2083, %v2238
        %v2309 = vadd.f32 %v2084, %v2241
        %v2310 = vadd.f32 %v2085, %v2243
        %v2311 = vadd.f32 %v2086, %v2246
        %v2312 = vadd.f32 %v2087, %v2248
        %v2313 = vld [vmem:[#allocation2] sm:$0xe]
        %v2314 = vld [vmem:[#allocation2 + $0xc] sm:$0xe]
        %v2315 = vld [vmem:[#allocation2 + $0x18] sm:$0xe]
        %v2316 = vld [vmem:[#allocation2 + $0x24] sm:$0xe]
        %v2317 = vld [vmem:[#allocation2 + $0x30] sm:$0xe]
        %v2318 = vld [vmem:[#allocation2 + $0x3c] sm:$0xe]
        %v2319 = vld [vmem:[#allocation2 + $0x48] sm:$0xe]
        %v2320 = vld [vmem:[#allocation2 + $0x54] sm:$0xe]
        %v2321 = vld [vmem:[#allocation2 + $0x60] sm:$0xe]
        %v2322 = vld [vmem:[#allocation2 + $0x6c] sm:$0xe]
        %v2323 = vld [vmem:[#allocation2 + $0x78] sm:$0xe]
        %v2324 = vld [vmem:[#allocation2 + $0x84] sm:$0xe]
        %v2325 = vld [vmem:[#allocation2 + $0x90] sm:$0xe]
        %v2326 = vld [vmem:[#allocation2 + $0x9c] sm:$0xe]
        %v2327 = vld [vmem:[#allocation2 + $0xa8] sm:$0xe]
        %v2328 = vld [vmem:[#allocation2 + $0xb4] sm:$0xe]
        %v2329 = vunpack.c.l.bf16 %v2313
        %v2330 = vunpack.c.l.bf16 %v2314
        %v2331 = vunpack.c.l.bf16 %v2315
        %v2332 = vunpack.c.l.bf16 %v2316
        %v2333 = vunpack.c.l.bf16 %v2317
        %v2334 = vunpack.c.l.bf16 %v2318
        %v2335 = vunpack.c.l.bf16 %v2319
        %v2336 = vunpack.c.l.bf16 %v2320
        %v2337 = vunpack.c.l.bf16 %v2321
        %v2338 = vunpack.c.l.bf16 %v2322
        %v2339 = vunpack.c.l.bf16 %v2323
        %v2340 = vunpack.c.l.bf16 %v2324
        %v2341 = vunpack.c.l.bf16 %v2325
        %v2342 = vunpack.c.l.bf16 %v2326
        %v2343 = vunpack.c.l.bf16 %v2327
        %v2344 = vunpack.c.l.bf16 %v2328
        %vm2361 = vcmask 1045504
        %v2362 = vrot.slane %v2329, 2
        %v2363 = vrot.slane %v2025, 2
        %v2364 = vsel %vm2361, %v2362, %v2363
        %v2365 = vrot.slane %v2104, 2
        %v2366 = vsel %vm2361, %v2363, %v2365
        %v2367 = vrot.slane %v2330, 2
        %v2368 = vrot.slane %v2027, 2
        %v2369 = vsel %vm2361, %v2367, %v2368
        %v2370 = vrot.slane %v2105, 2
        %v2371 = vsel %vm2361, %v2368, %v2370
        %v2372 = vrot.slane %v2331, 2
        %v2373 = vrot.slane %v2029, 2
        %v2374 = vsel %vm2361, %v2372, %v2373
        %v2375 = vrot.slane %v2106, 2
        %v2376 = vsel %vm2361, %v2373, %v2375
        %v2377 = vrot.slane %v2332, 2
        %v2378 = vrot.slane %v2031, 2
        %v2379 = vsel %vm2361, %v2377, %v2378
        %v2380 = vrot.slane %v2107, 2
        %v2381 = vsel %vm2361, %v2378, %v2380
        %v2382 = vrot.slane %v2333, 2
        %v2383 = vrot.slane %v2033, 2
        %v2384 = vsel %vm2361, %v2382, %v2383
        %v2385 = vrot.slane %v2108, 2
        %v2386 = vsel %vm2361, %v2383, %v2385
        %v2387 = vrot.slane %v2334, 2
        %v2388 = vrot.slane %v2035, 2
        %v2389 = vsel %vm2361, %v2387, %v2388
        %v2390 = vrot.slane %v2109, 2
        %v2391 = vsel %vm2361, %v2388, %v2390
        %v2392 = vrot.slane %v2335, 2
        %v2393 = vrot.slane %v2037, 2
        %v2394 = vsel %vm2361, %v2392, %v2393
        %v2395 = vrot.slane %v2110, 2
        %v2396 = vsel %vm2361, %v2393, %v2395
        %v2397 = vrot.slane %v2336, 2
        %v2398 = vrot.slane %v2039, 2
        %v2399 = vsel %vm2361, %v2397, %v2398
        %v2400 = vrot.slane %v2111, 2
        %v2401 = vsel %vm2361, %v2398, %v2400
        %v2402 = vrot.slane %v2337, 2
        %v2403 = vrot.slane %v2041, 2
        %v2404 = vsel %vm2361, %v2402, %v2403
        %v2405 = vrot.slane %v2112, 2
        %v2406 = vsel %vm2361, %v2403, %v2405
        %v2407 = vrot.slane %v2338, 2
        %v2408 = vrot.slane %v2043, 2
        %v2409 = vsel %vm2361, %v2407, %v2408
        %v2410 = vrot.slane %v2113, 2
        %v2411 = vsel %vm2361, %v2408, %v2410
        %v2412 = vrot.slane %v2339, 2
        %v2413 = vrot.slane %v2045, 2
        %v2414 = vsel %vm2361, %v2412, %v2413
        %v2415 = vrot.slane %v2114, 2
        %v2416 = vsel %vm2361, %v2413, %v2415
        %v2417 = vrot.slane %v2340, 2
        %v2418 = vrot.slane %v2047, 2
        %v2419 = vsel %vm2361, %v2417, %v2418
        %v2420 = vrot.slane %v2115, 2
        %v2421 = vsel %vm2361, %v2418, %v2420
        %v2422 = vrot.slane %v2341, 2
        %v2423 = vrot.slane %v2049, 2
        %v2424 = vsel %vm2361, %v2422, %v2423
        %v2425 = vrot.slane %v2116, 2
        %v2426 = vsel %vm2361, %v2423, %v2425
        %v2427 = vrot.slane %v2342, 2
        %v2428 = vrot.slane %v2051, 2
        %v2429 = vsel %vm2361, %v2427, %v2428
        %v2430 = vrot.slane %v2117, 2
        %v2431 = vsel %vm2361, %v2428, %v2430
        %v2432 = vrot.slane %v2343, 2
        %v2433 = vrot.slane %v2053, 2
        %v2434 = vsel %vm2361, %v2432, %v2433
        %v2435 = vrot.slane %v2118, 2
        %v2436 = vsel %vm2361, %v2433, %v2435
        %v2437 = vrot.slane %v2344, 2
        %v2438 = vrot.slane %v2055, 2
        %v2439 = vsel %vm2361, %v2437, %v2438
        %v2440 = vrot.slane %v2119, 2
        %v2441 = vsel %vm2361, %v2438, %v2440
        %v2474 = vadd.f32 %v2281, %v2364
        %v2475 = vadd.f32 %v2282, %v2366
        %v2476 = vadd.f32 %v2283, %v2369
        %v2477 = vadd.f32 %v2284, %v2371
        %v2478 = vadd.f32 %v2285, %v2374
        %v2479 = vadd.f32 %v2286, %v2376
        %v2480 = vadd.f32 %v2287, %v2379
        %v2481 = vadd.f32 %v2288, %v2381
        %v2482 = vadd.f32 %v2289, %v2384
        %v2483 = vadd.f32 %v2290, %v2386
        %v2484 = vadd.f32 %v2291, %v2389
        %v2485 = vadd.f32 %v2292, %v2391
        %v2486 = vadd.f32 %v2293, %v2394
        %v2487 = vadd.f32 %v2294, %v2396
        %v2488 = vadd.f32 %v2295, %v2399
        %v2489 = vadd.f32 %v2296, %v2401
        %v2490 = vadd.f32 %v2297, %v2404
        %v2491 = vadd.f32 %v2298, %v2406
        %v2492 = vadd.f32 %v2299, %v2409
        %v2493 = vadd.f32 %v2300, %v2411
        %v2494 = vadd.f32 %v2301, %v2414
        %v2495 = vadd.f32 %v2302, %v2416
        %v2496 = vadd.f32 %v2303, %v2419
        %v2497 = vadd.f32 %v2304, %v2421
        %v2498 = vadd.f32 %v2305, %v2424
        %v2499 = vadd.f32 %v2306, %v2426
        %v2500 = vadd.f32 %v2307, %v2429
        %v2501 = vadd.f32 %v2308, %v2431
        %v2502 = vadd.f32 %v2309, %v2434
        %v2503 = vadd.f32 %v2310, %v2436
        %v2504 = vadd.f32 %v2311, %v2439
        %v2505 = vadd.f32 %v2312, %v2441
        %v2506 = vld [vmem:[%s1874] sm:$0xf]
        %v2507 = vld [vmem:[%s1874 + $0x4] sm:$0xf]
        %v2508 = vld [vmem:[%s1874 + $0xc] sm:$0xf]
        %v2509 = vld [vmem:[%s1874 + $0x10] sm:$0xf]
        %v2510 = vld [vmem:[%s1874 + $0x18] sm:$0xf]
        %v2511 = vld [vmem:[%s1874 + $0x1c] sm:$0xf]
        %v2512 = vld [vmem:[%s1874 + $0x24] sm:$0xf]
        %v2513 = vld [vmem:[%s1874 + $0x28] sm:$0xf]
        %v2514 = vld [vmem:[%s1874 + $0x30] sm:$0xf]
        %v2515 = vld [vmem:[%s1874 + $0x34] sm:$0xf]
        %v2516 = vld [vmem:[%s1874 + $0x3c] sm:$0xf]
        %v2517 = vld [vmem:[%s1874 + $0x40] sm:$0xf]
        %v2518 = vld [vmem:[%s1874 + $0x48] sm:$0xf]
        %v2519 = vld [vmem:[%s1874 + $0x4c] sm:$0xf]
        %v2520 = vld [vmem:[%s1874 + $0x54] sm:$0xf]
        %v2521 = vld [vmem:[%s1874 + $0x58] sm:$0xf]
        %v2522 = vld [vmem:[%s1874 + $0x60] sm:$0xf]
        %v2523 = vld [vmem:[%s1874 + $0x64] sm:$0xf]
        %v2524 = vld [vmem:[%s1874 + $0x6c] sm:$0xf]
        %v2525 = vld [vmem:[%s1874 + $0x70] sm:$0xf]
        %v2526 = vld [vmem:[%s1874 + $0x78] sm:$0xf]
        %v2527 = vld [vmem:[%s1874 + $0x7c] sm:$0xf]
        %v2528 = vld [vmem:[%s1874 + $0x84] sm:$0xf]
        %v2529 = vld [vmem:[%s1874 + $0x88] sm:$0xf]
        %v2530 = vld [vmem:[%s1874 + $0x90] sm:$0xf]
        %v2531 = vld [vmem:[%s1874 + $0x94] sm:$0xf]
        %v2532 = vld [vmem:[%s1874 + $0x9c] sm:$0xf]
        %v2533 = vld [vmem:[%s1874 + $0xa0] sm:$0xf]
        %v2534 = vld [vmem:[%s1874 + $0xa8] sm:$0xf]
        %v2535 = vld [vmem:[%s1874 + $0xac] sm:$0xf]
        %v2536 = vld [vmem:[%s1874 + $0xb4] sm:$0xf]
        %v2537 = vld [vmem:[%s1874 + $0xb8] sm:$0xf]
        %v2538 = vunpack.c.l.bf16 %v2506
        %v2539 = vunpack.c.l.bf16 %v2507
        %v2540 = vunpack.c.l.bf16 %v2508
        %v2541 = vunpack.c.l.bf16 %v2509
        %v2542 = vunpack.c.l.bf16 %v2510
        %v2543 = vunpack.c.l.bf16 %v2511
        %v2544 = vunpack.c.l.bf16 %v2512
        %v2545 = vunpack.c.l.bf16 %v2513
        %v2546 = vunpack.c.l.bf16 %v2514
        %v2547 = vunpack.c.l.bf16 %v2515
        %v2548 = vunpack.c.l.bf16 %v2516
        %v2549 = vunpack.c.l.bf16 %v2517
        %v2550 = vunpack.c.l.bf16 %v2518
        %v2551 = vunpack.c.l.bf16 %v2519
        %v2552 = vunpack.c.l.bf16 %v2520
        %v2553 = vunpack.c.l.bf16 %v2521
        %v2554 = vunpack.c.l.bf16 %v2522
        %v2555 = vunpack.c.l.bf16 %v2523
        %v2556 = vunpack.c.l.bf16 %v2524
        %v2557 = vunpack.c.l.bf16 %v2525
        %v2558 = vunpack.c.l.bf16 %v2526
        %v2559 = vunpack.c.l.bf16 %v2527
        %v2560 = vunpack.c.l.bf16 %v2528
        %v2561 = vunpack.c.l.bf16 %v2529
        %v2562 = vunpack.c.l.bf16 %v2530
        %v2563 = vunpack.c.l.bf16 %v2531
        %v2564 = vunpack.c.l.bf16 %v2532
        %v2565 = vunpack.c.l.bf16 %v2533
        %v2566 = vunpack.c.l.bf16 %v2534
        %v2567 = vunpack.c.l.bf16 %v2535
        %v2568 = vunpack.c.l.bf16 %v2536
        %v2569 = vunpack.c.l.bf16 %v2537
        %v2570 = vadd.f32 %v2474, %v2538
        %v2571 = vadd.f32 %v2475, %v2539
        %v2572 = vadd.f32 %v2476, %v2540
        %v2573 = vadd.f32 %v2477, %v2541
        %v2574 = vadd.f32 %v2478, %v2542
        %v2575 = vadd.f32 %v2479, %v2543
        %v2576 = vadd.f32 %v2480, %v2544
        %v2577 = vadd.f32 %v2481, %v2545
        %v2578 = vadd.f32 %v2482, %v2546
        %v2579 = vadd.f32 %v2483, %v2547
        %v2580 = vadd.f32 %v2484, %v2548
        %v2581 = vadd.f32 %v2485, %v2549
        %v2582 = vadd.f32 %v2486, %v2550
        %v2583 = vadd.f32 %v2487, %v2551
        %v2584 = vadd.f32 %v2488, %v2552
        %v2585 = vadd.f32 %v2489, %v2553
        %v2586 = vadd.f32 %v2490, %v2554
        %v2587 = vadd.f32 %v2491, %v2555
        %v2588 = vadd.f32 %v2492, %v2556
        %v2589 = vadd.f32 %v2493, %v2557
        %v2590 = vadd.f32 %v2494, %v2558
        %v2591 = vadd.f32 %v2495, %v2559
        %v2592 = vadd.f32 %v2496, %v2560
        %v2593 = vadd.f32 %v2497, %v2561
        %v2594 = vadd.f32 %v2498, %v2562
        %v2595 = vadd.f32 %v2499, %v2563
        %v2596 = vadd.f32 %v2500, %v2564
        %v2597 = vadd.f32 %v2501, %v2565
        %v2598 = vadd.f32 %v2502, %v2566
        %v2599 = vadd.f32 %v2503, %v2567
        %v2600 = vadd.f32 %v2504, %v2568
        %v2601 = vadd.f32 %v2505, %v2569
        %v2602 = vld [vmem:[%s1874 + $0x8] sm:$0x1]
        %v2603 = vld [vmem:[%s1874 + $0x14] sm:$0x1]
        %v2604 = vld [vmem:[%s1874 + $0x20] sm:$0x1]
        %v2605 = vld [vmem:[%s1874 + $0x2c] sm:$0x1]
        %v2606 = vld [vmem:[%s1874 + $0x38] sm:$0x1]
        %v2607 = vld [vmem:[%s1874 + $0x44] sm:$0x1]
        %v2608 = vld [vmem:[%s1874 + $0x50] sm:$0x1]
        %v2609 = vld [vmem:[%s1874 + $0x5c] sm:$0x1]
        %v2610 = vld [vmem:[%s1874 + $0x68] sm:$0x1]
        %v2611 = vld [vmem:[%s1874 + $0x74] sm:$0x1]
        %v2612 = vld [vmem:[%s1874 + $0x80] sm:$0x1]
        %v2613 = vld [vmem:[%s1874 + $0x8c] sm:$0x1]
        %v2614 = vld [vmem:[%s1874 + $0x98] sm:$0x1]
        %v2615 = vld [vmem:[%s1874 + $0xa4] sm:$0x1]
        %v2616 = vld [vmem:[%s1874 + $0xb0] sm:$0x1]
        %v2617 = vld [vmem:[%s1874 + $0xbc] sm:$0x1]
        %v2618 = vunpack.c.l.bf16 %v2602
        %v2619 = vunpack.c.l.bf16 %v2603
        %v2620 = vunpack.c.l.bf16 %v2604
        %v2621 = vunpack.c.l.bf16 %v2605
        %v2622 = vunpack.c.l.bf16 %v2606
        %v2623 = vunpack.c.l.bf16 %v2607
        %v2624 = vunpack.c.l.bf16 %v2608
        %v2625 = vunpack.c.l.bf16 %v2609
        %v2626 = vunpack.c.l.bf16 %v2610
        %v2627 = vunpack.c.l.bf16 %v2611
        %v2628 = vunpack.c.l.bf16 %v2612
        %v2629 = vunpack.c.l.bf16 %v2613
        %v2630 = vunpack.c.l.bf16 %v2614
        %v2631 = vunpack.c.l.bf16 %v2615
        %v2632 = vunpack.c.l.bf16 %v2616
        %v2633 = vunpack.c.l.bf16 %v2617
        %v2682 = vrot.slane %v2538, 1
        %v2683 = vrot.slane %v2539, 1
        %v2684 = vsel %vm2168, %v2682, %v2683
        %v2685 = vrot.slane %v2618, 1
        %v2686 = vsel %vm2168, %v2683, %v2685
        %v2687 = vrot.slane %v2540, 1
        %v2688 = vrot.slane %v2541, 1
        %v2689 = vsel %vm2168, %v2687, %v2688
        %v2690 = vrot.slane %v2619, 1
        %v2691 = vsel %vm2168, %v2688, %v2690
        %v2692 = vrot.slane %v2542, 1
        %v2693 = vrot.slane %v2543, 1
        %v2694 = vsel %vm2168, %v2692, %v2693
        %v2695 = vrot.slane %v2620, 1
        %v2696 = vsel %vm2168, %v2693, %v2695
        %v2697 = vrot.slane %v2544, 1
        %v2698 = vrot.slane %v2545, 1
        %v2699 = vsel %vm2168, %v2697, %v2698
        %v2700 = vrot.slane %v2621, 1
        %v2701 = vsel %vm2168, %v2698, %v2700
        %v2702 = vrot.slane %v2546, 1
        %v2703 = vrot.slane %v2547, 1
        %v2704 = vsel %vm2168, %v2702, %v2703
        %v2705 = vrot.slane %v2622, 1
        %v2706 = vsel %vm2168, %v2703, %v2705
        %v2707 = vrot.slane %v2548, 1
        %v2708 = vrot.slane %v2549, 1
        %v2709 = vsel %vm2168, %v2707, %v2708
        %v2710 = vrot.slane %v2623, 1
        %v2711 = vsel %vm2168, %v2708, %v2710
        %v2712 = vrot.slane %v2550, 1
        %v2713 = vrot.slane %v2551, 1
        %v2714 = vsel %vm2168, %v2712, %v2713
        %v2715 = vrot.slane %v2624, 1
        %v2716 = vsel %vm2168, %v2713, %v2715
        %v2717 = vrot.slane %v2552, 1
        %v2718 = vrot.slane %v2553, 1
        %v2719 = vsel %vm2168, %v2717, %v2718
        %v2720 = vrot.slane %v2625, 1
        %v2721 = vsel %vm2168, %v2718, %v2720
        %v2722 = vrot.slane %v2554, 1
        %v2723 = vrot.slane %v2555, 1
        %v2724 = vsel %vm2168, %v2722, %v2723
        %v2725 = vrot.slane %v2626, 1
        %v2726 = vsel %vm2168, %v2723, %v2725
        %v2727 = vrot.slane %v2556, 1
        %v2728 = vrot.slane %v2557, 1
        %v2729 = vsel %vm2168, %v2727, %v2728
        %v2730 = vrot.slane %v2627, 1
        %v2731 = vsel %vm2168, %v2728, %v2730
        %v2732 = vrot.slane %v2558, 1
        %v2733 = vrot.slane %v2559, 1
        %v2734 = vsel %vm2168, %v2732, %v2733
        %v2735 = vrot.slane %v2628, 1
        %v2736 = vsel %vm2168, %v2733, %v2735
        %v2737 = vrot.slane %v2560, 1
        %v2738 = vrot.slane %v2561, 1
        %v2739 = vsel %vm2168, %v2737, %v2738
        %v2740 = vrot.slane %v2629, 1
        %v2741 = vsel %vm2168, %v2738, %v2740
        %v2742 = vrot.slane %v2562, 1
        %v2743 = vrot.slane %v2563, 1
        %v2744 = vsel %vm2168, %v2742, %v2743
        %v2745 = vrot.slane %v2630, 1
        %v2746 = vsel %vm2168, %v2743, %v2745
        %v2747 = vrot.slane %v2564, 1
        %v2748 = vrot.slane %v2565, 1
        %v2749 = vsel %vm2168, %v2747, %v2748
        %v2750 = vrot.slane %v2631, 1
        %v2751 = vsel %vm2168, %v2748, %v2750
        %v2752 = vrot.slane %v2566, 1
        %v2753 = vrot.slane %v2567, 1
        %v2754 = vsel %vm2168, %v2752, %v2753
        %v2755 = vrot.slane %v2632, 1
        %v2756 = vsel %vm2168, %v2753, %v2755
        %v2757 = vrot.slane %v2568, 1
        %v2758 = vrot.slane %v2569, 1
        %v2759 = vsel %vm2168, %v2757, %v2758
        %v2760 = vrot.slane %v2633, 1
        %v2761 = vsel %vm2168, %v2758, %v2760
        %v2794 = vadd.f32 %v2570, %v2684
        %v2795 = vadd.f32 %v2571, %v2686
        %v2796 = vadd.f32 %v2572, %v2689
        %v2797 = vadd.f32 %v2573, %v2691
        %v2798 = vadd.f32 %v2574, %v2694
        %v2799 = vadd.f32 %v2575, %v2696
        %v2800 = vadd.f32 %v2576, %v2699
        %v2801 = vadd.f32 %v2577, %v2701
        %v2802 = vadd.f32 %v2578, %v2704
        %v2803 = vadd.f32 %v2579, %v2706
        %v2804 = vadd.f32 %v2580, %v2709
        %v2805 = vadd.f32 %v2581, %v2711
        %v2806 = vadd.f32 %v2582, %v2714
        %v2807 = vadd.f32 %v2583, %v2716
        %v2808 = vadd.f32 %v2584, %v2719
        %v2809 = vadd.f32 %v2585, %v2721
        %v2810 = vadd.f32 %v2586, %v2724
        %v2811 = vadd.f32 %v2587, %v2726
        %v2812 = vadd.f32 %v2588, %v2729
        %v2813 = vadd.f32 %v2589, %v2731
        %v2814 = vadd.f32 %v2590, %v2734
        %v2815 = vadd.f32 %v2591, %v2736
        %v2816 = vadd.f32 %v2592, %v2739
        %v2817 = vadd.f32 %v2593, %v2741
        %v2818 = vadd.f32 %v2594, %v2744
        %v2819 = vadd.f32 %v2595, %v2746
        %v2820 = vadd.f32 %v2596, %v2749
        %v2821 = vadd.f32 %v2597, %v2751
        %v2822 = vadd.f32 %v2598, %v2754
        %v2823 = vadd.f32 %v2599, %v2756
        %v2824 = vadd.f32 %v2600, %v2759
        %v2825 = vadd.f32 %v2601, %v2761
        %v2826 = vld [vmem:[%s1874] sm:$0xe]
        %v2827 = vld [vmem:[%s1874 + $0xc] sm:$0xe]
        %v2828 = vld [vmem:[%s1874 + $0x18] sm:$0xe]
        %v2829 = vld [vmem:[%s1874 + $0x24] sm:$0xe]
        %v2830 = vld [vmem:[%s1874 + $0x30] sm:$0xe]
        %v2831 = vld [vmem:[%s1874 + $0x3c] sm:$0xe]
        %v2832 = vld [vmem:[%s1874 + $0x48] sm:$0xe]
        %v2833 = vld [vmem:[%s1874 + $0x54] sm:$0xe]
        %v2834 = vld [vmem:[%s1874 + $0x60] sm:$0xe]
        %v2835 = vld [vmem:[%s1874 + $0x6c] sm:$0xe]
        %v2836 = vld [vmem:[%s1874 + $0x78] sm:$0xe]
        %v2837 = vld [vmem:[%s1874 + $0x84] sm:$0xe]
        %v2838 = vld [vmem:[%s1874 + $0x90] sm:$0xe]
        %v2839 = vld [vmem:[%s1874 + $0x9c] sm:$0xe]
        %v2840 = vld [vmem:[%s1874 + $0xa8] sm:$0xe]
        %v2841 = vld [vmem:[%s1874 + $0xb4] sm:$0xe]
        %v2842 = vunpack.c.l.bf16 %v2826
        %v2843 = vunpack.c.l.bf16 %v2827
        %v2844 = vunpack.c.l.bf16 %v2828
        %v2845 = vunpack.c.l.bf16 %v2829
        %v2846 = vunpack.c.l.bf16 %v2830
        %v2847 = vunpack.c.l.bf16 %v2831
        %v2848 = vunpack.c.l.bf16 %v2832
        %v2849 = vunpack.c.l.bf16 %v2833
        %v2850 = vunpack.c.l.bf16 %v2834
        %v2851 = vunpack.c.l.bf16 %v2835
        %v2852 = vunpack.c.l.bf16 %v2836
        %v2853 = vunpack.c.l.bf16 %v2837
        %v2854 = vunpack.c.l.bf16 %v2838
        %v2855 = vunpack.c.l.bf16 %v2839
        %v2856 = vunpack.c.l.bf16 %v2840
        %v2857 = vunpack.c.l.bf16 %v2841
        %v2874 = vrot.slane %v2842, 2
        %v2875 = vrot.slane %v2539, 2
        %v2876 = vsel %vm2361, %v2874, %v2875
        %v2877 = vrot.slane %v2618, 2
        %v2878 = vsel %vm2361, %v2875, %v2877
        %v2879 = vrot.slane %v2843, 2
        %v2880 = vrot.slane %v2541, 2
        %v2881 = vsel %vm2361, %v2879, %v2880
        %v2882 = vrot.slane %v2619, 2
        %v2883 = vsel %vm2361, %v2880, %v2882
        %v2884 = vrot.slane %v2844, 2
        %v2885 = vrot.slane %v2543, 2
        %v2886 = vsel %vm2361, %v2884, %v2885
        %v2887 = vrot.slane %v2620, 2
        %v2888 = vsel %vm2361, %v2885, %v2887
        %v2889 = vrot.slane %v2845, 2
        %v2890 = vrot.slane %v2545, 2
        %v2891 = vsel %vm2361, %v2889, %v2890
        %v2892 = vrot.slane %v2621, 2
        %v2893 = vsel %vm2361, %v2890, %v2892
        %v2894 = vrot.slane %v2846, 2
        %v2895 = vrot.slane %v2547, 2
        %v2896 = vsel %vm2361, %v2894, %v2895
        %v2897 = vrot.slane %v2622, 2
        %v2898 = vsel %vm2361, %v2895, %v2897
        %v2899 = vrot.slane %v2847, 2
        %v2900 = vrot.slane %v2549, 2
        %v2901 = vsel %vm2361, %v2899, %v2900
        %v2902 = vrot.slane %v2623, 2
        %v2903 = vsel %vm2361, %v2900, %v2902
        %v2904 = vrot.slane %v2848, 2
        %v2905 = vrot.slane %v2551, 2
        %v2906 = vsel %vm2361, %v2904, %v2905
        %v2907 = vrot.slane %v2624, 2
        %v2908 = vsel %vm2361, %v2905, %v2907
        %v2909 = vrot.slane %v2849, 2
        %v2910 = vrot.slane %v2553, 2
        %v2911 = vsel %vm2361, %v2909, %v2910
        %v2912 = vrot.slane %v2625, 2
        %v2913 = vsel %vm2361, %v2910, %v2912
        %v2914 = vrot.slane %v2850, 2
        %v2915 = vrot.slane %v2555, 2
        %v2916 = vsel %vm2361, %v2914, %v2915
        %v2917 = vrot.slane %v2626, 2
        %v2918 = vsel %vm2361, %v2915, %v2917
        %v2919 = vrot.slane %v2851, 2
        %v2920 = vrot.slane %v2557, 2
        %v2921 = vsel %vm2361, %v2919, %v2920
        %v2922 = vrot.slane %v2627, 2
        %v2923 = vsel %vm2361, %v2920, %v2922
        %v2924 = vrot.slane %v2852, 2
        %v2925 = vrot.slane %v2559, 2
        %v2926 = vsel %vm2361, %v2924, %v2925
        %v2927 = vrot.slane %v2628, 2
        %v2928 = vsel %vm2361, %v2925, %v2927
        %v2929 = vrot.slane %v2853, 2
        %v2930 = vrot.slane %v2561, 2
        %v2931 = vsel %vm2361, %v2929, %v2930
        %v2932 = vrot.slane %v2629, 2
        %v2933 = vsel %vm2361, %v2930, %v2932
        %v2934 = vrot.slane %v2854, 2
        %v2935 = vrot.slane %v2563, 2
        %v2936 = vsel %vm2361, %v2934, %v2935
        %v2937 = vrot.slane %v2630, 2
        %v2938 = vsel %vm2361, %v2935, %v2937
        %v2939 = vrot.slane %v2855, 2
        %v2940 = vrot.slane %v2565, 2
        %v2941 = vsel %vm2361, %v2939, %v2940
        %v2942 = vrot.slane %v2631, 2
        %v2943 = vsel %vm2361, %v2940, %v2942
        %v2944 = vrot.slane %v2856, 2
        %v2945 = vrot.slane %v2567, 2
        %v2946 = vsel %vm2361, %v2944, %v2945
        %v2947 = vrot.slane %v2632, 2
        %v2948 = vsel %vm2361, %v2945, %v2947
        %v2949 = vrot.slane %v2857, 2
        %v2950 = vrot.slane %v2569, 2
        %v2951 = vsel %vm2361, %v2949, %v2950
        %v2952 = vrot.slane %v2633, 2
        %v2953 = vsel %vm2361, %v2950, %v2952
        %v2986 = vadd.f32 %v2794, %v2876
        %v2987 = vadd.f32 %v2795, %v2878
        %v2988 = vadd.f32 %v2796, %v2881
        %v2989 = vadd.f32 %v2797, %v2883
        %v2990 = vadd.f32 %v2798, %v2886
        %v2991 = vadd.f32 %v2799, %v2888
        %v2992 = vadd.f32 %v2800, %v2891
        %v2993 = vadd.f32 %v2801, %v2893
        %v2994 = vadd.f32 %v2802, %v2896
        %v2995 = vadd.f32 %v2803, %v2898
        %v2996 = vadd.f32 %v2804, %v2901
        %v2997 = vadd.f32 %v2805, %v2903
        %v2998 = vadd.f32 %v2806, %v2906
        %v2999 = vadd.f32 %v2807, %v2908
        %v3000 = vadd.f32 %v2808, %v2911
        %v3001 = vadd.f32 %v2809, %v2913
        %v3002 = vadd.f32 %v2810, %v2916
        %v3003 = vadd.f32 %v2811, %v2918
        %v3004 = vadd.f32 %v2812, %v2921
        %v3005 = vadd.f32 %v2813, %v2923
        %v3006 = vadd.f32 %v2814, %v2926
        %v3007 = vadd.f32 %v2815, %v2928
        %v3008 = vadd.f32 %v2816, %v2931
        %v3009 = vadd.f32 %v2817, %v2933
        %v3010 = vadd.f32 %v2818, %v2936
        %v3011 = vadd.f32 %v2819, %v2938
        %v3012 = vadd.f32 %v2820, %v2941
        %v3013 = vadd.f32 %v2821, %v2943
        %v3014 = vadd.f32 %v2822, %v2946
        %v3015 = vadd.f32 %v2823, %v2948
        %v3016 = vadd.f32 %v2824, %v2951
        %v3017 = vadd.f32 %v2825, %v2953
        %s3018 = scalar_lea.vmem [#allocation2], 24
        %v3019 = vld [vmem:[%s3018] sm:$0xf]
        %v3020 = vld [vmem:[%s3018 + $0x4] sm:$0xf]
        %v3021 = vld [vmem:[%s3018 + $0xc] sm:$0xf]
        %v3022 = vld [vmem:[%s3018 + $0x10] sm:$0xf]
        %v3023 = vld [vmem:[%s3018 + $0x18] sm:$0xf]
        %v3024 = vld [vmem:[%s3018 + $0x1c] sm:$0xf]
        %v3025 = vld [vmem:[%s3018 + $0x24] sm:$0xf]
        %v3026 = vld [vmem:[%s3018 + $0x28] sm:$0xf]
        %v3027 = vld [vmem:[%s3018 + $0x30] sm:$0xf]
        %v3028 = vld [vmem:[%s3018 + $0x34] sm:$0xf]
        %v3029 = vld [vmem:[%s3018 + $0x3c] sm:$0xf]
        %v3030 = vld [vmem:[%s3018 + $0x40] sm:$0xf]
        %v3031 = vld [vmem:[%s3018 + $0x48] sm:$0xf]
        %v3032 = vld [vmem:[%s3018 + $0x4c] sm:$0xf]
        %v3033 = vld [vmem:[%s3018 + $0x54] sm:$0xf]
        %v3034 = vld [vmem:[%s3018 + $0x58] sm:$0xf]
        %v3035 = vld [vmem:[%s3018 + $0x60] sm:$0xf]
        %v3036 = vld [vmem:[%s3018 + $0x64] sm:$0xf]
        %v3037 = vld [vmem:[%s3018 + $0x6c] sm:$0xf]
        %v3038 = vld [vmem:[%s3018 + $0x70] sm:$0xf]
        %v3039 = vld [vmem:[%s3018 + $0x78] sm:$0xf]
        %v3040 = vld [vmem:[%s3018 + $0x7c] sm:$0xf]
        %v3041 = vld [vmem:[%s3018 + $0x84] sm:$0xf]
        %v3042 = vld [vmem:[%s3018 + $0x88] sm:$0xf]
        %v3043 = vld [vmem:[%s3018 + $0x90] sm:$0xf]
        %v3044 = vld [vmem:[%s3018 + $0x94] sm:$0xf]
        %v3045 = vld [vmem:[%s3018 + $0x9c] sm:$0xf]
        %v3046 = vld [vmem:[%s3018 + $0xa0] sm:$0xf]
        %v3047 = vld [vmem:[%s3018 + $0xa8] sm:$0xf]
        %v3048 = vld [vmem:[%s3018 + $0xac] sm:$0xf]
        %v3049 = vld [vmem:[%s3018 + $0xb4] sm:$0xf]
        %v3050 = vld [vmem:[%s3018 + $0xb8] sm:$0xf]
        %v3051 = vunpack.c.l.bf16 %v3019
        %v3052 = vunpack.c.l.bf16 %v3020
        %v3053 = vunpack.c.l.bf16 %v3021
        %v3054 = vunpack.c.l.bf16 %v3022
        %v3055 = vunpack.c.l.bf16 %v3023
        %v3056 = vunpack.c.l.bf16 %v3024
        %v3057 = vunpack.c.l.bf16 %v3025
        %v3058 = vunpack.c.l.bf16 %v3026
        %v3059 = vunpack.c.l.bf16 %v3027
        %v3060 = vunpack.c.l.bf16 %v3028
        %v3061 = vunpack.c.l.bf16 %v3029
        %v3062 = vunpack.c.l.bf16 %v3030
        %v3063 = vunpack.c.l.bf16 %v3031
        %v3064 = vunpack.c.l.bf16 %v3032
        %v3065 = vunpack.c.l.bf16 %v3033
        %v3066 = vunpack.c.l.bf16 %v3034
        %v3067 = vunpack.c.l.bf16 %v3035
        %v3068 = vunpack.c.l.bf16 %v3036
        %v3069 = vunpack.c.l.bf16 %v3037
        %v3070 = vunpack.c.l.bf16 %v3038
        %v3071 = vunpack.c.l.bf16 %v3039
        %v3072 = vunpack.c.l.bf16 %v3040
        %v3073 = vunpack.c.l.bf16 %v3041
        %v3074 = vunpack.c.l.bf16 %v3042
        %v3075 = vunpack.c.l.bf16 %v3043
        %v3076 = vunpack.c.l.bf16 %v3044
        %v3077 = vunpack.c.l.bf16 %v3045
        %v3078 = vunpack.c.l.bf16 %v3046
        %v3079 = vunpack.c.l.bf16 %v3047
        %v3080 = vunpack.c.l.bf16 %v3048
        %v3081 = vunpack.c.l.bf16 %v3049
        %v3082 = vunpack.c.l.bf16 %v3050
        %v3083 = vadd.f32 %v2986, %v3051
        %v3084 = vadd.f32 %v2987, %v3052
        %v3085 = vadd.f32 %v2988, %v3053
        %v3086 = vadd.f32 %v2989, %v3054
        %v3087 = vadd.f32 %v2990, %v3055
        %v3088 = vadd.f32 %v2991, %v3056
        %v3089 = vadd.f32 %v2992, %v3057
        %v3090 = vadd.f32 %v2993, %v3058
        %v3091 = vadd.f32 %v2994, %v3059
        %v3092 = vadd.f32 %v2995, %v3060
        %v3093 = vadd.f32 %v2996, %v3061
        %v3094 = vadd.f32 %v2997, %v3062
        %v3095 = vadd.f32 %v2998, %v3063
        %v3096 = vadd.f32 %v2999, %v3064
        %v3097 = vadd.f32 %v3000, %v3065
        %v3098 = vadd.f32 %v3001, %v3066
        %v3099 = vadd.f32 %v3002, %v3067
        %v3100 = vadd.f32 %v3003, %v3068
        %v3101 = vadd.f32 %v3004, %v3069
        %v3102 = vadd.f32 %v3005, %v3070
        %v3103 = vadd.f32 %v3006, %v3071
        %v3104 = vadd.f32 %v3007, %v3072
        %v3105 = vadd.f32 %v3008, %v3073
        %v3106 = vadd.f32 %v3009, %v3074
        %v3107 = vadd.f32 %v3010, %v3075
        %v3108 = vadd.f32 %v3011, %v3076
        %v3109 = vadd.f32 %v3012, %v3077
        %v3110 = vadd.f32 %v3013, %v3078
        %v3111 = vadd.f32 %v3014, %v3079
        %v3112 = vadd.f32 %v3015, %v3080
        %v3113 = vadd.f32 %v3016, %v3081
        %v3114 = vadd.f32 %v3017, %v3082
        %v3115 = vld [vmem:[%s3018 + $0x8] sm:$0x1]
        %v3116 = vld [vmem:[%s3018 + $0x14] sm:$0x1]
        %v3117 = vld [vmem:[%s3018 + $0x20] sm:$0x1]
        %v3118 = vld [vmem:[%s3018 + $0x2c] sm:$0x1]
        %v3119 = vld [vmem:[%s3018 + $0x38] sm:$0x1]
        %v3120 = vld [vmem:[%s3018 + $0x44] sm:$0x1]
        %v3121 = vld [vmem:[%s3018 + $0x50] sm:$0x1]
        %v3122 = vld [vmem:[%s3018 + $0x5c] sm:$0x1]
        %v3123 = vld [vmem:[%s3018 + $0x68] sm:$0x1]
        %v3124 = vld [vmem:[%s3018 + $0x74] sm:$0x1]
        %v3125 = vld [vmem:[%s3018 + $0x80] sm:$0x1]
        %v3126 = vld [vmem:[%s3018 + $0x8c] sm:$0x1]
        %v3127 = vld [vmem:[%s3018 + $0x98] sm:$0x1]
        %v3128 = vld [vmem:[%s3018 + $0xa4] sm:$0x1]
        %v3129 = vld [vmem:[%s3018 + $0xb0] sm:$0x1]
        %v3130 = vld [vmem:[%s3018 + $0xbc] sm:$0x1]
        %v3131 = vunpack.c.l.bf16 %v3115
        %v3132 = vunpack.c.l.bf16 %v3116
        %v3133 = vunpack.c.l.bf16 %v3117
        %v3134 = vunpack.c.l.bf16 %v3118
        %v3135 = vunpack.c.l.bf16 %v3119
        %v3136 = vunpack.c.l.bf16 %v3120
        %v3137 = vunpack.c.l.bf16 %v3121
        %v3138 = vunpack.c.l.bf16 %v3122
        %v3139 = vunpack.c.l.bf16 %v3123
        %v3140 = vunpack.c.l.bf16 %v3124
        %v3141 = vunpack.c.l.bf16 %v3125
        %v3142 = vunpack.c.l.bf16 %v3126
        %v3143 = vunpack.c.l.bf16 %v3127
        %v3144 = vunpack.c.l.bf16 %v3128
        %v3145 = vunpack.c.l.bf16 %v3129
        %v3146 = vunpack.c.l.bf16 %v3130
        %v3195 = vrot.slane %v3051, 1
        %v3196 = vrot.slane %v3052, 1
        %v3197 = vsel %vm2168, %v3195, %v3196
        %v3198 = vrot.slane %v3131, 1
        %v3199 = vsel %vm2168, %v3196, %v3198
        %v3200 = vrot.slane %v3053, 1
        %v3201 = vrot.slane %v3054, 1
        %v3202 = vsel %vm2168, %v3200, %v3201
        %v3203 = vrot.slane %v3132, 1
        %v3204 = vsel %vm2168, %v3201, %v3203
        %v3205 = vrot.slane %v3055, 1
        %v3206 = vrot.slane %v3056, 1
        %v3207 = vsel %vm2168, %v3205, %v3206
        %v3208 = vrot.slane %v3133, 1
        %v3209 = vsel %vm2168, %v3206, %v3208
        %v3210 = vrot.slane %v3057, 1
        %v3211 = vrot.slane %v3058, 1
        %v3212 = vsel %vm2168, %v3210, %v3211
        %v3213 = vrot.slane %v3134, 1
        %v3214 = vsel %vm2168, %v3211, %v3213
        %v3215 = vrot.slane %v3059, 1
        %v3216 = vrot.slane %v3060, 1
        %v3217 = vsel %vm2168, %v3215, %v3216
        %v3218 = vrot.slane %v3135, 1
        %v3219 = vsel %vm2168, %v3216, %v3218
        %v3220 = vrot.slane %v3061, 1
        %v3221 = vrot.slane %v3062, 1
        %v3222 = vsel %vm2168, %v3220, %v3221
        %v3223 = vrot.slane %v3136, 1
        %v3224 = vsel %vm2168, %v3221, %v3223
        %v3225 = vrot.slane %v3063, 1
        %v3226 = vrot.slane %v3064, 1
        %v3227 = vsel %vm2168, %v3225, %v3226
        %v3228 = vrot.slane %v3137, 1
        %v3229 = vsel %vm2168, %v3226, %v3228
        %v3230 = vrot.slane %v3065, 1
        %v3231 = vrot.slane %v3066, 1
        %v3232 = vsel %vm2168, %v3230, %v3231
        %v3233 = vrot.slane %v3138, 1
        %v3234 = vsel %vm2168, %v3231, %v3233
        %v3235 = vrot.slane %v3067, 1
        %v3236 = vrot.slane %v3068, 1
        %v3237 = vsel %vm2168, %v3235, %v3236
        %v3238 = vrot.slane %v3139, 1
        %v3239 = vsel %vm2168, %v3236, %v3238
        %v3240 = vrot.slane %v3069, 1
        %v3241 = vrot.slane %v3070, 1
        %v3242 = vsel %vm2168, %v3240, %v3241
        %v3243 = vrot.slane %v3140, 1
        %v3244 = vsel %vm2168, %v3241, %v3243
        %v3245 = vrot.slane %v3071, 1
        %v3246 = vrot.slane %v3072, 1
        %v3247 = vsel %vm2168, %v3245, %v3246
        %v3248 = vrot.slane %v3141, 1
        %v3249 = vsel %vm2168, %v3246, %v3248
        %v3250 = vrot.slane %v3073, 1
        %v3251 = vrot.slane %v3074, 1
        %v3252 = vsel %vm2168, %v3250, %v3251
        %v3253 = vrot.slane %v3142, 1
        %v3254 = vsel %vm2168, %v3251, %v3253
        %v3255 = vrot.slane %v3075, 1
        %v3256 = vrot.slane %v3076, 1
        %v3257 = vsel %vm2168, %v3255, %v3256
        %v3258 = vrot.slane %v3143, 1
        %v3259 = vsel %vm2168, %v3256, %v3258
        %v3260 = vrot.slane %v3077, 1
        %v3261 = vrot.slane %v3078, 1
        %v3262 = vsel %vm2168, %v3260, %v3261
        %v3263 = vrot.slane %v3144, 1
        %v3264 = vsel %vm2168, %v3261, %v3263
        %v3265 = vrot.slane %v3079, 1
        %v3266 = vrot.slane %v3080, 1
        %v3267 = vsel %vm2168, %v3265, %v3266
        %v3268 = vrot.slane %v3145, 1
        %v3269 = vsel %vm2168, %v3266, %v3268
        %v3270 = vrot.slane %v3081, 1
        %v3271 = vrot.slane %v3082, 1
        %v3272 = vsel %vm2168, %v3270, %v3271
        %v3273 = vrot.slane %v3146, 1
        %v3274 = vsel %vm2168, %v3271, %v3273
        %v3307 = vadd.f32 %v3083, %v3197
        %v3308 = vadd.f32 %v3084, %v3199
        %v3309 = vadd.f32 %v3085, %v3202
        %v3310 = vadd.f32 %v3086, %v3204
        %v3311 = vadd.f32 %v3087, %v3207
        %v3312 = vadd.f32 %v3088, %v3209
        %v3313 = vadd.f32 %v3089, %v3212
        %v3314 = vadd.f32 %v3090, %v3214
        %v3315 = vadd.f32 %v3091, %v3217
        %v3316 = vadd.f32 %v3092, %v3219
        %v3317 = vadd.f32 %v3093, %v3222
        %v3318 = vadd.f32 %v3094, %v3224
        %v3319 = vadd.f32 %v3095, %v3227
        %v3320 = vadd.f32 %v3096, %v3229
        %v3321 = vadd.f32 %v3097, %v3232
        %v3322 = vadd.f32 %v3098, %v3234
        %v3323 = vadd.f32 %v3099, %v3237
        %v3324 = vadd.f32 %v3100, %v3239
        %v3325 = vadd.f32 %v3101, %v3242
        %v3326 = vadd.f32 %v3102, %v3244
        %v3327 = vadd.f32 %v3103, %v3247
        %v3328 = vadd.f32 %v3104, %v3249
        %v3329 = vadd.f32 %v3105, %v3252
        %v3330 = vadd.f32 %v3106, %v3254
        %v3331 = vadd.f32 %v3107, %v3257
        %v3332 = vadd.f32 %v3108, %v3259
        %v3333 = vadd.f32 %v3109, %v3262
        %v3334 = vadd.f32 %v3110, %v3264
        %v3335 = vadd.f32 %v3111, %v3267
        %v3336 = vadd.f32 %v3112, %v3269
        %v3337 = vadd.f32 %v3113, %v3272
        %v3338 = vadd.f32 %v3114, %v3274
        %v3339 = vld [vmem:[%s3018] sm:$0xe]
        %v3340 = vld [vmem:[%s3018 + $0xc] sm:$0xe]
        %v3341 = vld [vmem:[%s3018 + $0x18] sm:$0xe]
        %v3342 = vld [vmem:[%s3018 + $0x24] sm:$0xe]
        %v3343 = vld [vmem:[%s3018 + $0x30] sm:$0xe]
        %v3344 = vld [vmem:[%s3018 + $0x3c] sm:$0xe]
        %v3345 = vld [vmem:[%s3018 + $0x48] sm:$0xe]
        %v3346 = vld [vmem:[%s3018 + $0x54] sm:$0xe]
        %v3347 = vld [vmem:[%s3018 + $0x60] sm:$0xe]
        %v3348 = vld [vmem:[%s3018 + $0x6c] sm:$0xe]
        %v3349 = vld [vmem:[%s3018 + $0x78] sm:$0xe]
        %v3350 = vld [vmem:[%s3018 + $0x84] sm:$0xe]
        %v3351 = vld [vmem:[%s3018 + $0x90] sm:$0xe]
        %v3352 = vld [vmem:[%s3018 + $0x9c] sm:$0xe]
        %v3353 = vld [vmem:[%s3018 + $0xa8] sm:$0xe]
        %v3354 = vld [vmem:[%s3018 + $0xb4] sm:$0xe]
        %v3355 = vunpack.c.l.bf16 %v3339
        %v3356 = vunpack.c.l.bf16 %v3340
        %v3357 = vunpack.c.l.bf16 %v3341
        %v3358 = vunpack.c.l.bf16 %v3342
        %v3359 = vunpack.c.l.bf16 %v3343
        %v3360 = vunpack.c.l.bf16 %v3344
        %v3361 = vunpack.c.l.bf16 %v3345
        %v3362 = vunpack.c.l.bf16 %v3346
        %v3363 = vunpack.c.l.bf16 %v3347
        %v3364 = vunpack.c.l.bf16 %v3348
        %v3365 = vunpack.c.l.bf16 %v3349
        %v3366 = vunpack.c.l.bf16 %v3350
        %v3367 = vunpack.c.l.bf16 %v3351
        %v3368 = vunpack.c.l.bf16 %v3352
        %v3369 = vunpack.c.l.bf16 %v3353
        %v3370 = vunpack.c.l.bf16 %v3354
        %v3387 = vrot.slane %v3355, 2
        %v3388 = vrot.slane %v3052, 2
        %v3389 = vsel %vm2361, %v3387, %v3388
        %v3390 = vrot.slane %v3131, 2
        %v3391 = vsel %vm2361, %v3388, %v3390
        %v3392 = vrot.slane %v3356, 2
        %v3393 = vrot.slane %v3054, 2
        %v3394 = vsel %vm2361, %v3392, %v3393
        %v3395 = vrot.slane %v3132, 2
        %v3396 = vsel %vm2361, %v3393, %v3395
        %v3397 = vrot.slane %v3357, 2
        %v3398 = vrot.slane %v3056, 2
        %v3399 = vsel %vm2361, %v3397, %v3398
        %v3400 = vrot.slane %v3133, 2
        %v3401 = vsel %vm2361, %v3398, %v3400
        %v3402 = vrot.slane %v3358, 2
        %v3403 = vrot.slane %v3058, 2
        %v3404 = vsel %vm2361, %v3402, %v3403
        %v3405 = vrot.slane %v3134, 2
        %v3406 = vsel %vm2361, %v3403, %v3405
        %v3407 = vrot.slane %v3359, 2
        %v3408 = vrot.slane %v3060, 2
        %v3409 = vsel %vm2361, %v3407, %v3408
        %v3410 = vrot.slane %v3135, 2
        %v3411 = vsel %vm2361, %v3408, %v3410
        %v3412 = vrot.slane %v3360, 2
        %v3413 = vrot.slane %v3062, 2
        %v3414 = vsel %vm2361, %v3412, %v3413
        %v3415 = vrot.slane %v3136, 2
        %v3416 = vsel %vm2361, %v3413, %v3415
        %v3417 = vrot.slane %v3361, 2
        %v3418 = vrot.slane %v3064, 2
        %v3419 = vsel %vm2361, %v3417, %v3418
        %v3420 = vrot.slane %v3137, 2
        %v3421 = vsel %vm2361, %v3418, %v3420
        %v3422 = vrot.slane %v3362, 2
        %v3423 = vrot.slane %v3066, 2
        %v3424 = vsel %vm2361, %v3422, %v3423
        %v3425 = vrot.slane %v3138, 2
        %v3426 = vsel %vm2361, %v3423, %v3425
        %v3427 = vrot.slane %v3363, 2
        %v3428 = vrot.slane %v3068, 2
        %v3429 = vsel %vm2361, %v3427, %v3428
        %v3430 = vrot.slane %v3139, 2
        %v3431 = vsel %vm2361, %v3428, %v3430
        %v3432 = vrot.slane %v3364, 2
        %v3433 = vrot.slane %v3070, 2
        %v3434 = vsel %vm2361, %v3432, %v3433
        %v3435 = vrot.slane %v3140, 2
        %v3436 = vsel %vm2361, %v3433, %v3435
        %v3437 = vrot.slane %v3365, 2
        %v3438 = vrot.slane %v3072, 2
        %v3439 = vsel %vm2361, %v3437, %v3438
        %v3440 = vrot.slane %v3141, 2
        %v3441 = vsel %vm2361, %v3438, %v3440
        %v3442 = vrot.slane %v3366, 2
        %v3443 = vrot.slane %v3074, 2
        %v3444 = vsel %vm2361, %v3442, %v3443
        %v3445 = vrot.slane %v3142, 2
        %v3446 = vsel %vm2361, %v3443, %v3445
        %v3447 = vrot.slane %v3367, 2
        %v3448 = vrot.slane %v3076, 2
        %v3449 = vsel %vm2361, %v3447, %v3448
        %v3450 = vrot.slane %v3143, 2
        %v3451 = vsel %vm2361, %v3448, %v3450
        %v3452 = vrot.slane %v3368, 2
        %v3453 = vrot.slane %v3078, 2
        %v3454 = vsel %vm2361, %v3452, %v3453
        %v3455 = vrot.slane %v3144, 2
        %v3456 = vsel %vm2361, %v3453, %v3455
        %v3457 = vrot.slane %v3369, 2
        %v3458 = vrot.slane %v3080, 2
        %v3459 = vsel %vm2361, %v3457, %v3458
        %v3460 = vrot.slane %v3145, 2
        %v3461 = vsel %vm2361, %v3458, %v3460
        %v3462 = vrot.slane %v3370, 2
        %v3463 = vrot.slane %v3082, 2
        %v3464 = vsel %vm2361, %v3462, %v3463
        %v3465 = vrot.slane %v3146, 2
        %v3466 = vsel %vm2361, %v3463, %v3465
        %v3499 = vadd.f32 %v3307, %v3389
        %v3500 = vadd.f32 %v3308, %v3391
        %v3501 = vadd.f32 %v3309, %v3394
        %v3502 = vadd.f32 %v3310, %v3396
        %v3503 = vadd.f32 %v3311, %v3399
        %v3504 = vadd.f32 %v3312, %v3401
        %v3505 = vadd.f32 %v3313, %v3404
        %v3506 = vadd.f32 %v3314, %v3406
        %v3507 = vadd.f32 %v3315, %v3409
        %v3508 = vadd.f32 %v3316, %v3411
        %v3509 = vadd.f32 %v3317, %v3414
        %v3510 = vadd.f32 %v3318, %v3416
        %v3511 = vadd.f32 %v3319, %v3419
        %v3512 = vadd.f32 %v3320, %v3421
        %v3513 = vadd.f32 %v3321, %v3424
        %v3514 = vadd.f32 %v3322, %v3426
        %v3515 = vadd.f32 %v3323, %v3429
        %v3516 = vadd.f32 %v3324, %v3431
        %v3517 = vadd.f32 %v3325, %v3434
        %v3518 = vadd.f32 %v3326, %v3436
        %v3519 = vadd.f32 %v3327, %v3439
        %v3520 = vadd.f32 %v3328, %v3441
        %v3521 = vadd.f32 %v3329, %v3444
        %v3522 = vadd.f32 %v3330, %v3446
        %v3523 = vadd.f32 %v3331, %v3449
        %v3524 = vadd.f32 %v3332, %v3451
        %v3525 = vadd.f32 %v3333, %v3454
        %v3526 = vadd.f32 %v3334, %v3456
        %v3527 = vadd.f32 %v3335, %v3459
        %v3528 = vadd.f32 %v3336, %v3461
        %v3529 = vadd.f32 %v3337, %v3464
        %v3530 = vadd.f32 %v3338, %v3466
        %v3531 = vmul.f32 %v3499, 0.11111111
        %v3532 = vmul.f32 %v3500, 0.11111111
        %v3533 = vmul.f32 %v3501, 0.11111111
        %v3534 = vmul.f32 %v3502, 0.11111111
        %v3535 = vmul.f32 %v3503, 0.11111111
        %v3536 = vmul.f32 %v3504, 0.11111111
        %v3537 = vmul.f32 %v3505, 0.11111111
        %v3538 = vmul.f32 %v3506, 0.11111111
        %v3539 = vmul.f32 %v3507, 0.11111111
        %v3540 = vmul.f32 %v3508, 0.11111111
        %v3541 = vmul.f32 %v3509, 0.11111111
        %v3542 = vmul.f32 %v3510, 0.11111111
        %v3543 = vmul.f32 %v3511, 0.11111111
        %v3544 = vmul.f32 %v3512, 0.11111111
        %v3545 = vmul.f32 %v3513, 0.11111111
        %v3546 = vmul.f32 %v3514, 0.11111111
        %v3547 = vmul.f32 %v3515, 0.11111111
        %v3548 = vmul.f32 %v3516, 0.11111111
        %v3549 = vmul.f32 %v3517, 0.11111111
        %v3550 = vmul.f32 %v3518, 0.11111111
        %v3551 = vmul.f32 %v3519, 0.11111111
        %v3552 = vmul.f32 %v3520, 0.11111111
        %v3553 = vmul.f32 %v3521, 0.11111111
        %v3554 = vmul.f32 %v3522, 0.11111111
        %v3555 = vmul.f32 %v3523, 0.11111111
        %v3556 = vmul.f32 %v3524, 0.11111111
        %v3557 = vmul.f32 %v3525, 0.11111111
        %v3558 = vmul.f32 %v3526, 0.11111111
        %v3559 = vmul.f32 %v3527, 0.11111111
        %v3560 = vmul.f32 %v3528, 0.11111111
        %v3561 = vmul.f32 %v3529, 0.11111111
        %v3562 = vmul.f32 %v3530, 0.11111111
        %v3563 = vpack.c.bf16 %v3532, %v3531
        %v3564 = vpack.c.bf16 %v3534, %v3533
        %v3565 = vpack.c.bf16 %v3536, %v3535
        %v3566 = vpack.c.bf16 %v3538, %v3537
        %v3567 = vpack.c.bf16 %v3540, %v3539
        %v3568 = vpack.c.bf16 %v3542, %v3541
        %v3569 = vpack.c.bf16 %v3544, %v3543
        %v3570 = vpack.c.bf16 %v3546, %v3545
        %v3571 = vpack.c.bf16 %v3548, %v3547
        %v3572 = vpack.c.bf16 %v3550, %v3549
        %v3573 = vpack.c.bf16 %v3552, %v3551
        %v3574 = vpack.c.bf16 %v3554, %v3553
        %v3575 = vpack.c.bf16 %v3556, %v3555
        %v3576 = vpack.c.bf16 %v3558, %v3557
        %v3577 = vpack.c.bf16 %v3560, %v3559
        %v3578 = vpack.c.bf16 %v3562, %v3561
        %v3579 = vld [vmem:[#allocation9] sm:$0xf]
        %v3580 = vld [vmem:[#allocation9 + $0x4] sm:$0xf]
        %v3583 = vunpack.c.l.b16 %v3579
        %v3584 = vunpack.c.l.b16 %v3580
        %v3585 = vpack.c.b16 %v3584, %v3583
        %v3588 = vsel %vm581, %v3563, 0
        %v3591 = vsel %vm581, %v3564, 0
        %v3594 = vsel %vm581, %v3565, 0
        %v3597 = vsel %vm581, %v3566, 0
        %v3600 = vsel %vm581, %v3567, 0
        %v3603 = vsel %vm581, %v3568, 0
        %v3606 = vsel %vm581, %v3569, 0
        %v3609 = vsel %vm581, %v3570, 0
        %v3612 = vsel %vm581, %v3571, 0
        %v3615 = vsel %vm581, %v3572, 0
        %v3618 = vsel %vm581, %v3573, 0
        %v3621 = vsel %vm581, %v3574, 0
        %v3624 = vsel %vm581, %v3575, 0
        %v3627 = vsel %vm581, %v3576, 0
        %v3630 = vsel %vm581, %v3577, 0
        %v3633 = vsel %vm581, %v3578, 0
        %3635 = vmatpush.bf16.msra.mxu0 0
        %3636 = vmatpush.bf16.msra.mxu0 0
        %3637 = vmatpush.bf16.msra.mxu0 0
        %3638 = vmatpush.bf16.msra.mxu0 0
        %3639 = vmatpush.bf16.msra.mxu0 0
        %3640 = vmatpush.bf16.msra.mxu0 0
        %3641 = vmatpush.bf16.msra.mxu0 0
        %3642 = vmatpush.bf16.msra.mxu0 %v3585
        %3643 = vmatmul.bf16.gmra.mxu0 %v3588
        %v3644 = vpop.f32.mrf.mxu0
        %v3645 = vadd.f32 0.0, %v3644
        %v3646 = vpop.f32.mrf.mxu0
        %v3647 = vadd.f32 0.0, %v3646
        %3648 = vmatmul.bf16.gmra.mxu0 %v3591
        %v3649 = vpop.f32.mrf.mxu0
        %v3650 = vadd.f32 0.0, %v3649
        %v3651 = vpop.f32.mrf.mxu0
        %v3652 = vadd.f32 0.0, %v3651
        %3653 = vmatmul.bf16.gmra.mxu0 %v3594
        %v3654 = vpop.f32.mrf.mxu0
        %v3655 = vadd.f32 0.0, %v3654
        %v3656 = vpop.f32.mrf.mxu0
        %v3657 = vadd.f32 0.0, %v3656
        %3658 = vmatmul.bf16.gmra.mxu0 %v3597
        %v3659 = vpop.f32.mrf.mxu0
        %v3660 = vadd.f32 0.0, %v3659
        %v3661 = vpop.f32.mrf.mxu0
        %v3662 = vadd.f32 0.0, %v3661
        %3663 = vmatmul.bf16.gmra.mxu0 %v3600
        %v3664 = vpop.f32.mrf.mxu0
        %v3665 = vadd.f32 0.0, %v3664
        %v3666 = vpop.f32.mrf.mxu0
        %v3667 = vadd.f32 0.0, %v3666
        %3668 = vmatmul.bf16.gmra.mxu0 %v3603
        %v3669 = vpop.f32.mrf.mxu0
        %v3670 = vadd.f32 0.0, %v3669
        %v3671 = vpop.f32.mrf.mxu0
        %v3672 = vadd.f32 0.0, %v3671
        %3673 = vmatmul.bf16.gmra.mxu0 %v3606
        %v3674 = vpop.f32.mrf.mxu0
        %v3675 = vadd.f32 0.0, %v3674
        %v3676 = vpop.f32.mrf.mxu0
        %v3677 = vadd.f32 0.0, %v3676
        %3678 = vmatmul.bf16.gmra.mxu0 %v3609
        %v3679 = vpop.f32.mrf.mxu0
        %v3680 = vadd.f32 0.0, %v3679
        %v3681 = vpop.f32.mrf.mxu0
        %v3682 = vadd.f32 0.0, %v3681
        %3683 = vmatmul.bf16.gmra.mxu0 %v3612
        %v3684 = vpop.f32.mrf.mxu0
        %v3685 = vadd.f32 0.0, %v3684
        %v3686 = vpop.f32.mrf.mxu0
        %v3687 = vadd.f32 0.0, %v3686
        %3688 = vmatmul.bf16.gmra.mxu0 %v3615
        %v3689 = vpop.f32.mrf.mxu0
        %v3690 = vadd.f32 0.0, %v3689
        %v3691 = vpop.f32.mrf.mxu0
        %v3692 = vadd.f32 0.0, %v3691
        %3693 = vmatmul.bf16.gmra.mxu0 %v3618
        %v3694 = vpop.f32.mrf.mxu0
        %v3695 = vadd.f32 0.0, %v3694
        %v3696 = vpop.f32.mrf.mxu0
        %v3697 = vadd.f32 0.0, %v3696
        %3698 = vmatmul.bf16.gmra.mxu0 %v3621
        %v3699 = vpop.f32.mrf.mxu0
        %v3700 = vadd.f32 0.0, %v3699
        %v3701 = vpop.f32.mrf.mxu0
        %v3702 = vadd.f32 0.0, %v3701
        %3703 = vmatmul.bf16.gmra.mxu0 %v3624
        %v3704 = vpop.f32.mrf.mxu0
        %v3705 = vadd.f32 0.0, %v3704
        %v3706 = vpop.f32.mrf.mxu0
        %v3707 = vadd.f32 0.0, %v3706
        %3708 = vmatmul.bf16.gmra.mxu0 %v3627
        %v3709 = vpop.f32.mrf.mxu0
        %v3710 = vadd.f32 0.0, %v3709
        %v3711 = vpop.f32.mrf.mxu0
        %v3712 = vadd.f32 0.0, %v3711
        %3713 = vmatmul.bf16.gmra.mxu0 %v3630
        %v3714 = vpop.f32.mrf.mxu0
        %v3715 = vadd.f32 0.0, %v3714
        %v3716 = vpop.f32.mrf.mxu0
        %v3717 = vadd.f32 0.0, %v3716
        %3718 = vmatmul.bf16.gmra.mxu0 %v3633
        %v3719 = vpop.f32.mrf.mxu0
        %v3720 = vadd.f32 0.0, %v3719
        %v3721 = vpop.f32.mrf.mxu0
        %v3722 = vadd.f32 0.0, %v3721
        %3723 = vdwg.mxu0
        %v3724 = vld [vmem:[%s5] sm:$0x1]
        %v3726 = vperm.slane %v3724, 0
        %v3728 = vmul.f32 %v3645, %v3726
        %v3729 = vmul.f32 %v3647, %v3726
        %v3730 = vmul.f32 %v3650, %v3726
        %v3731 = vmul.f32 %v3652, %v3726
        %v3732 = vmul.f32 %v3655, %v3726
        %v3733 = vmul.f32 %v3657, %v3726
        %v3734 = vmul.f32 %v3660, %v3726
        %v3735 = vmul.f32 %v3662, %v3726
        %v3736 = vmul.f32 %v3665, %v3726
        %v3737 = vmul.f32 %v3667, %v3726
        %v3738 = vmul.f32 %v3670, %v3726
        %v3739 = vmul.f32 %v3672, %v3726
        %v3740 = vmul.f32 %v3675, %v3726
        %v3741 = vmul.f32 %v3677, %v3726
        %v3742 = vmul.f32 %v3680, %v3726
        %v3743 = vmul.f32 %v3682, %v3726
        %v3744 = vmul.f32 %v3685, %v3726
        %v3745 = vmul.f32 %v3687, %v3726
        %v3746 = vmul.f32 %v3690, %v3726
        %v3747 = vmul.f32 %v3692, %v3726
        %v3748 = vmul.f32 %v3695, %v3726
        %v3749 = vmul.f32 %v3697, %v3726
        %v3750 = vmul.f32 %v3700, %v3726
        %v3751 = vmul.f32 %v3702, %v3726
        %v3752 = vmul.f32 %v3705, %v3726
        %v3753 = vmul.f32 %v3707, %v3726
        %v3754 = vmul.f32 %v3710, %v3726
        %v3755 = vmul.f32 %v3712, %v3726
        %v3756 = vmul.f32 %v3715, %v3726
        %v3757 = vmul.f32 %v3717, %v3726
        %v3758 = vmul.f32 %v3720, %v3726
        %v3759 = vmul.f32 %v3722, %v3726
        %v3760 = vld [vmem:[%s6] sm:$0x1]
        %v3762 = vperm.slane %v3760, 0
        %v3764 = vadd.f32 %v3728, %v3762
        %v3765 = vadd.f32 %v3729, %v3762
        %v3766 = vadd.f32 %v3730, %v3762
        %v3767 = vadd.f32 %v3731, %v3762
        %v3768 = vadd.f32 %v3732, %v3762
        %v3769 = vadd.f32 %v3733, %v3762
        %v3770 = vadd.f32 %v3734, %v3762
        %v3771 = vadd.f32 %v3735, %v3762
        %v3772 = vadd.f32 %v3736, %v3762
        %v3773 = vadd.f32 %v3737, %v3762
        %v3774 = vadd.f32 %v3738, %v3762
        %v3775 = vadd.f32 %v3739, %v3762
        %v3776 = vadd.f32 %v3740, %v3762
        %v3777 = vadd.f32 %v3741, %v3762
        %v3778 = vadd.f32 %v3742, %v3762
        %v3779 = vadd.f32 %v3743, %v3762
        %v3780 = vadd.f32 %v3744, %v3762
        %v3781 = vadd.f32 %v3745, %v3762
        %v3782 = vadd.f32 %v3746, %v3762
        %v3783 = vadd.f32 %v3747, %v3762
        %v3784 = vadd.f32 %v3748, %v3762
        %v3785 = vadd.f32 %v3749, %v3762
        %v3786 = vadd.f32 %v3750, %v3762
        %v3787 = vadd.f32 %v3751, %v3762
        %v3788 = vadd.f32 %v3752, %v3762
        %v3789 = vadd.f32 %v3753, %v3762
        %v3790 = vadd.f32 %v3754, %v3762
        %v3791 = vadd.f32 %v3755, %v3762
        %v3792 = vadd.f32 %v3756, %v3762
        %v3793 = vadd.f32 %v3757, %v3762
        %v3794 = vadd.f32 %v3758, %v3762
        %v3795 = vadd.f32 %v3759, %v3762
        %v3796 = vmax.f32 %v3764, 0.0
        %v3797 = vmax.f32 %v3765, 0.0
        %v3798 = vmax.f32 %v3766, 0.0
        %v3799 = vmax.f32 %v3767, 0.0
        %v3800 = vmax.f32 %v3768, 0.0
        %v3801 = vmax.f32 %v3769, 0.0
        %v3802 = vmax.f32 %v3770, 0.0
        %v3803 = vmax.f32 %v3771, 0.0
        %v3804 = vmax.f32 %v3772, 0.0
        %v3805 = vmax.f32 %v3773, 0.0
        %v3806 = vmax.f32 %v3774, 0.0
        %v3807 = vmax.f32 %v3775, 0.0
        %v3808 = vmax.f32 %v3776, 0.0
        %v3809 = vmax.f32 %v3777, 0.0
        %v3810 = vmax.f32 %v3778, 0.0
        %v3811 = vmax.f32 %v3779, 0.0
        %v3812 = vmax.f32 %v3780, 0.0
        %v3813 = vmax.f32 %v3781, 0.0
        %v3814 = vmax.f32 %v3782, 0.0
        %v3815 = vmax.f32 %v3783, 0.0
        %v3816 = vmax.f32 %v3784, 0.0
        %v3817 = vmax.f32 %v3785, 0.0
        %v3818 = vmax.f32 %v3786, 0.0
        %v3819 = vmax.f32 %v3787, 0.0
        %v3820 = vmax.f32 %v3788, 0.0
        %v3821 = vmax.f32 %v3789, 0.0
        %v3822 = vmax.f32 %v3790, 0.0
        %v3823 = vmax.f32 %v3791, 0.0
        %v3824 = vmax.f32 %v3792, 0.0
        %v3825 = vmax.f32 %v3793, 0.0
        %v3826 = vmax.f32 %v3794, 0.0
        %v3827 = vmax.f32 %v3795, 0.0
        %v3828 = vpack.c.bf16 %v3796, %v3796
        %v3829 = vpack.c.bf16 %v3797, %v3797
        %v3830 = vpack.c.bf16 %v3798, %v3798
        %v3831 = vpack.c.bf16 %v3799, %v3799
        %v3832 = vpack.c.bf16 %v3800, %v3800
        %v3833 = vpack.c.bf16 %v3801, %v3801
        %v3834 = vpack.c.bf16 %v3802, %v3802
        %v3835 = vpack.c.bf16 %v3803, %v3803
        %v3836 = vpack.c.bf16 %v3804, %v3804
        %v3837 = vpack.c.bf16 %v3805, %v3805
        %v3838 = vpack.c.bf16 %v3806, %v3806
        %v3839 = vpack.c.bf16 %v3807, %v3807
        %v3840 = vpack.c.bf16 %v3808, %v3808
        %v3841 = vpack.c.bf16 %v3809, %v3809
        %v3842 = vpack.c.bf16 %v3810, %v3810
        %v3843 = vpack.c.bf16 %v3811, %v3811
        %v3844 = vpack.c.bf16 %v3812, %v3812
        %v3845 = vpack.c.bf16 %v3813, %v3813
        %v3846 = vpack.c.bf16 %v3814, %v3814
        %v3847 = vpack.c.bf16 %v3815, %v3815
        %v3848 = vpack.c.bf16 %v3816, %v3816
        %v3849 = vpack.c.bf16 %v3817, %v3817
        %v3850 = vpack.c.bf16 %v3818, %v3818
        %v3851 = vpack.c.bf16 %v3819, %v3819
        %v3852 = vpack.c.bf16 %v3820, %v3820
        %v3853 = vpack.c.bf16 %v3821, %v3821
        %v3854 = vpack.c.bf16 %v3822, %v3822
        %v3855 = vpack.c.bf16 %v3823, %v3823
        %v3856 = vpack.c.bf16 %v3824, %v3824
        %v3857 = vpack.c.bf16 %v3825, %v3825
        %v3858 = vpack.c.bf16 %v3826, %v3826
        %v3859 = vpack.c.bf16 %v3827, %v3827
        %vm3860 = vcmask 257024
        %3861 = vst.msk [vmem:[%s455] sm:$0xf] %vm3860, %v3828
        %3862 = vst.msk [vmem:[%s455 + $0x4] sm:$0xf] %vm3860, %v3829
        %3863 = vst.msk [vmem:[%s455 + $0x8] sm:$0xf] %vm3860, %v3830
        %3864 = vst.msk [vmem:[%s455 + $0xc] sm:$0xf] %vm3860, %v3831
        %3865 = vst.msk [vmem:[%s455 + $0x10] sm:$0xf] %vm3860, %v3832
        %3866 = vst.msk [vmem:[%s455 + $0x14] sm:$0xf] %vm3860, %v3833
        %3867 = vst.msk [vmem:[%s455 + $0x18] sm:$0xf] %vm3860, %v3834
        %3868 = vst.msk [vmem:[%s455 + $0x1c] sm:$0xf] %vm3860, %v3835
        %3869 = vst.msk [vmem:[%s455 + $0x20] sm:$0xf] %vm3860, %v3836
        %3870 = vst.msk [vmem:[%s455 + $0x24] sm:$0xf] %vm3860, %v3837
        %3871 = vst.msk [vmem:[%s455 + $0x28] sm:$0xf] %vm3860, %v3838
        %3872 = vst.msk [vmem:[%s455 + $0x2c] sm:$0xf] %vm3860, %v3839
        %3873 = vst.msk [vmem:[%s455 + $0x30] sm:$0xf] %vm3860, %v3840
        %3874 = vst.msk [vmem:[%s455 + $0x34] sm:$0xf] %vm3860, %v3841
        %3875 = vst.msk [vmem:[%s455 + $0x38] sm:$0xf] %vm3860, %v3842
        %3876 = vst.msk [vmem:[%s455 + $0x3c] sm:$0xf] %vm3860, %v3843
        %3877 = vst.msk [vmem:[%s455 + $0x40] sm:$0xf] %vm3860, %v3844
        %3878 = vst.msk [vmem:[%s455 + $0x44] sm:$0xf] %vm3860, %v3845
        %3879 = vst.msk [vmem:[%s455 + $0x48] sm:$0xf] %vm3860, %v3846
        %3880 = vst.msk [vmem:[%s455 + $0x4c] sm:$0xf] %vm3860, %v3847
        %3881 = vst.msk [vmem:[%s455 + $0x50] sm:$0xf] %vm3860, %v3848
        %3882 = vst.msk [vmem:[%s455 + $0x54] sm:$0xf] %vm3860, %v3849
        %3883 = vst.msk [vmem:[%s455 + $0x58] sm:$0xf] %vm3860, %v3850
        %3884 = vst.msk [vmem:[%s455 + $0x5c] sm:$0xf] %vm3860, %v3851
        %3885 = vst.msk [vmem:[%s455 + $0x60] sm:$0xf] %vm3860, %v3852
        %3886 = vst.msk [vmem:[%s455 + $0x64] sm:$0xf] %vm3860, %v3853
        %3887 = vst.msk [vmem:[%s455 + $0x68] sm:$0xf] %vm3860, %v3854
        %3888 = vst.msk [vmem:[%s455 + $0x6c] sm:$0xf] %vm3860, %v3855
        %3889 = vst.msk [vmem:[%s455 + $0x70] sm:$0xf] %vm3860, %v3856
        %3890 = vst.msk [vmem:[%s455 + $0x74] sm:$0xf] %vm3860, %v3857
        %3891 = vst.msk [vmem:[%s455 + $0x78] sm:$0xf] %vm3860, %v3858
        %3892 = vst.msk [vmem:[%s455 + $0x7c] sm:$0xf] %vm3860, %v3859
        %s3893 = sand.u32 %s196, 1
        %s3894 = scalar_lea.sflag [#allocation5], %s3893
        %s3895 = sand.u32 %s196, 1
        %s3896 = smul.addr %s3895, 128
        %s3897 = scalar_lea.vmem [#allocation11], %s3896
        %s3898 = sand.u32 %s36, 1
        %s3899 = scalar_lea.sflag [#allocation13], %s3898
        %s3900 = sand.u32 %s222, 1
        %s3901 = smul.addr %s3900, 128
        %s3902 = scalar_lea.vmem [#allocation12], %s3901
        %s3903 = sand.u32 %s36, 1
        %s3904 = scalar_lea.sflag [#allocation13], %s3903
        %s3905 = sand.u32 %s248, 1
        %s3906 = smul.addr %s3905, 128
        %s3907 = scalar_lea.vmem [#allocation14], %s3906
        %s3908 = sand.u32 %s274, 1
        %s3909 = scalar_lea.sflag [#allocation16], %s3908
        %s3910 = sand.u32 %s274, 1
        %s3911 = smul.addr %s3910, 128
        %s3912 = scalar_lea.vmem [#allocation15], %s3911
        // Predicated region
        $region65: #{tpu_custom_call.1} parent=47 // pred_check
          %p3913 = pneg %p206
        $region66: #{tpu_custom_call.1} parent=47 // pred_check_branch
          %3915 = sbr.rel (%p3913) target = $region68
        $region67: #{tpu_custom_call.1} parent=47 // pred_region
          %3917 = vsyncadd %s3894, 0
          %s3918 = smul.addr %s36, 32
          %s3919 = smul.addr %s3918, 4
          %s3920 = scalar_lea.hbm %s7, %s3919
          %s3921 = sshll.u32 %s3897, 4
          %s3922 = int_to_ptr.vmem [resolvable:$true] %s3921
          %s3923 = sshll.u32 %s3920, 4
          %s3924 = int_to_ptr.hbm [resolvable:$true] %s3923
          %3929 = dma.vmem_to_hbm [thread:$0]  %s3922, 2048, %s3924, %s3894, 64, 64, 4
        $region68: #{tpu_custom_call.1} parent=47 // pred_fallthru
          _
        // Predicated region
        $region69: #{tpu_custom_call.1} parent=47 // pred_check
          %p3930 = pneg %p232
        $region70: #{tpu_custom_call.1} parent=47 // pred_check_branch
          %3932 = sbr.rel (%p3930) target = $region72
        $region71: #{tpu_custom_call.1} parent=47 // pred_region
          %3934 = vsyncadd %s3899, 0
          %s3935 = smul.addr %s36, 32
          %s3936 = smul.addr %s3935, 4
          %s3937 = scalar_lea.hbm %s8, %s3936
          %s3938 = sshll.u32 %s3902, 4
          %s3939 = int_to_ptr.vmem [resolvable:$true] %s3938
          %s3940 = sshll.u32 %s3937, 4
          %s3941 = int_to_ptr.hbm [resolvable:$true] %s3940
          %3946 = dma.vmem_to_hbm [thread:$0]  %s3939, 2048, %s3941, %s3899, 64, 64, 4
        $region72: #{tpu_custom_call.1} parent=47 // pred_fallthru
          _
        // Predicated region
        $region73: #{tpu_custom_call.1} parent=47 // pred_check
          %p3947 = pneg %p258
        $region74: #{tpu_custom_call.1} parent=47 // pred_check_branch
          %3949 = sbr.rel (%p3947) target = $region76
        $region75: #{tpu_custom_call.1} parent=47 // pred_region
          %3951 = vsyncadd %s3904, 0
          %s3952 = smul.addr %s36, 32
          %s3953 = smul.addr %s3952, 4
          %s3954 = scalar_lea.hbm %s9, %s3953
          %s3955 = sshll.u32 %s3907, 4
          %s3956 = int_to_ptr.vmem [resolvable:$true] %s3955
          %s3957 = sshll.u32 %s3954, 4
          %s3958 = int_to_ptr.hbm [resolvable:$true] %s3957
          %3963 = dma.vmem_to_hbm [thread:$0]  %s3956, 2048, %s3958, %s3904, 64, 64, 4
        $region76: #{tpu_custom_call.1} parent=47 // pred_fallthru
          _
        // Predicated region
        $region77: #{tpu_custom_call.1} parent=47 // pred_check
          %p3964 = pneg %p284
        $region78: #{tpu_custom_call.1} parent=47 // pred_check_branch
          %3966 = sbr.rel (%p3964) target = $region80
        $region79: #{tpu_custom_call.1} parent=47 // pred_region
          %3968 = vsyncadd %s3909, 0
          %s3969 = smul.addr %s36, 32
          %s3970 = smul.addr %s3969, 4
          %s3971 = scalar_lea.hbm %s10, %s3970
          %s3972 = sshll.u32 %s3912, 4
          %s3973 = int_to_ptr.vmem [resolvable:$true] %s3972
          %s3974 = sshll.u32 %s3971, 4
          %s3975 = int_to_ptr.hbm [resolvable:$true] %s3974
          %3980 = dma.vmem_to_hbm [thread:$0]  %s3973, 2048, %s3975, %s3909, 64, 64, 4
        $region80: #{tpu_custom_call.1} parent=47 // pred_fallthru
          _
      $region48: #{tpu_custom_call.1} parent=5 // pred_fallthru
        _
      %p3981 = scmp.le.s32.totalorder 2, %s31
      // Predicated region
      $region81: #{tpu_custom_call.1} parent=5 // pred_check
        %p3982 = pneg %p3981
      $region82: #{tpu_custom_call.1} parent=5 // pred_check_branch
        %3984 = sbr.rel (%p3982) target = $region84
      $region83: #{tpu_custom_call.1} parent=5 // pred_region
        %s3985 = ssub.s32 %s31, 2
        // Predicated region
        $region85: #{tpu_custom_call.1} parent=83 // pred_check
          %p3986 = pneg %p212
        $region86: #{tpu_custom_call.1} parent=83 // pred_check_branch
          %3988 = sbr.rel (%p3986) target = $region88
        $region87: #{tpu_custom_call.1} parent=83 // pred_region
          %s3989 = sand.u32 %s197, 1
          %s3990 = scalar_lea.sflag [#allocation5], %s3989
          %s3991 = sand.u32 %s197, 1
          %s3992 = smul.addr %s3991, 128
          %s3993 = scalar_lea.vmem [#allocation11], %s3992
          %3995 = dma.done %s3990, 2048
        $region88: #{tpu_custom_call.1} parent=83 // pred_fallthru
          _
        // Predicated region
        $region89: #{tpu_custom_call.1} parent=83 // pred_check
          %p3996 = pneg %p238
        $region90: #{tpu_custom_call.1} parent=83 // pred_check_branch
          %3998 = sbr.rel (%p3996) target = $region92
        $region91: #{tpu_custom_call.1} parent=83 // pred_region
          %s3999 = sand.u32 %s37, 1
          %s4000 = scalar_lea.sflag [#allocation13], %s3999
          %s4001 = sand.u32 %s223, 1
          %s4002 = smul.addr %s4001, 128
          %s4003 = scalar_lea.vmem [#allocation12], %s4002
          %4005 = dma.done %s4000, 2048
        $region92: #{tpu_custom_call.1} parent=83 // pred_fallthru
          _
        // Predicated region
        $region93: #{tpu_custom_call.1} parent=83 // pred_check
          %p4006 = pneg %p264
        $region94: #{tpu_custom_call.1} parent=83 // pred_check_branch
          %4008 = sbr.rel (%p4006) target = $region96
        $region95: #{tpu_custom_call.1} parent=83 // pred_region
          %s4009 = sand.u32 %s37, 1
          %s4010 = scalar_lea.sflag [#allocation13], %s4009
          %s4011 = sand.u32 %s249, 1
          %s4012 = smul.addr %s4011, 128
          %s4013 = scalar_lea.vmem [#allocation14], %s4012
          %4015 = dma.done %s4010, 2048
        $region96: #{tpu_custom_call.1} parent=83 // pred_fallthru
          _
        // Predicated region
        $region97: #{tpu_custom_call.1} parent=83 // pred_check
          %p4016 = pneg %p290
        $region98: #{tpu_custom_call.1} parent=83 // pred_check_branch
          %4018 = sbr.rel (%p4016) target = $region100
        $region99: #{tpu_custom_call.1} parent=83 // pred_region
          %s4019 = sand.u32 %s275, 1
          %s4020 = scalar_lea.sflag [#allocation16], %s4019
          %s4021 = sand.u32 %s275, 1
          %s4022 = smul.addr %s4021, 128
          %s4023 = scalar_lea.vmem [#allocation15], %s4022
          %4025 = dma.done %s4020, 2048
        $region100: #{tpu_custom_call.1} parent=83 // pred_fallthru
          _
      $region84: #{tpu_custom_call.1} parent=5 // pred_fallthru
        _
    $region6: #{tpu_custom_call.1} parent=1 // loop_footer
      %s35 = sadd.s32 1, %s31
    $region7: #{tpu_custom_call.1} parent=1 // loop_footer_branch
      %30 = sbr.rel target = $region3
    $region8: #{tpu_custom_call.1} parent=1 // loop_exit
      _
    %4026 = vsyncpa [#allocation4], 1
    %s4027 = scalar_lea.sflag [#allocation4], 1
    %4028 = vsyncpa %s4027, 1
    %4029 = vsyncpa [#allocation7], 1
    %4030 = vsyncpa [#allocation10], 1
    %4031 = vsyncpa [#allocation5], 1
    %s4032 = scalar_lea.sflag [#allocation5], 1
    %4033 = vsyncpa %s4032, 1
    %4034 = vsyncpa [#allocation13], 1
    %s4035 = scalar_lea.sflag [#allocation13], 1
    %4036 = vsyncpa %s4035, 1
    %4037 = vsyncpa [#allocation16], 1
    %s4038 = scalar_lea.sflag [#allocation16], 1
    %4039 = vsyncpa %s4038, 1

</llo_original>
